<compile_context>
chip_gen: v7x
topology: tpu7x:2x2x1
jax: 0.10.0
libtpu: 0.0.40
codegen_flags: <defaults>
</compile_context>

<pallas_src>
import functools

import jax
import jax.numpy as jnp
from jax import lax
from jax.experimental import pallas as pl
from jax.experimental.pallas import tpu as pltpu


# ----------------------------- fused forward kernel ---------------------------
def _stgp_kernel(
    x_ref,                                    # (T, BB, Cin)  batch tile, time-major
    cw1, cb1, cw2, cb2, cw3, cb3,             # conv weights (3, Cin, Cout) / (1, Cout)
    wih1, whh1, bih1, bhh1,                   # GRU1 (64,192)/(64,192)/(1,192)/(1,192), gates [r|z|n]
    wih2, whh2, bih2, bhh2,                   # GRU2 padded to 128 gate cols
    fcw, fcb,                                 # FC  (32, 2*num_steps) / (1, 2*num_steps)
    out_ref,                                  # (BB, 2*num_steps)
    xp1, xp2, xp3,                            # zero-padded conv scratches ((T+2d)*BB, C)
    gi1_s,                                    # GRU1 gate pre-activations (T*BB, 192)
    *, T, BB, H1, H2, mm_dtype):
  f32 = jnp.float32
  R = T * BB                                  # rows of the (t, b)-flattened activations

  # ---- zero the conv pads (cheap; scratch may be stale between grid steps) ---
  def zero_pads(ref, pr):
    z = jnp.zeros((pr, ref.shape[-1]), f32)
    ref[0:pr, :] = z
    ref[pr + R:pr + R + pr, :] = z

  zero_pads(xp1, 1 * BB)
  zero_pads(xp2, 2 * BB)
  zero_pads(xp3, 4 * BB)

  # ---- dilated conv stack: rows ordered row = t*BB + b, so a time shift of d
  # is a row shift of d*BB (batch innermost -> no cross-batch leakage).
  # Each layer accumulates directly into the interior of the next layer's
  # padded scratch and applies bias + ReLU in place.
  def conv_relu_into(src_ref, dst_ref, dst_off, w_ref, b_ref, d):
    def tap(k):
      s = k * d * BB
      return src_ref[s:s + R, :].astype(mm_dtype)

    dst_ref[dst_off:dst_off + R, :] = (
        jnp.dot(tap(0), w_ref[0].astype(mm_dtype), preferred_element_type=f32)
        + b_ref[...])
    dst_ref[dst_off:dst_off + R, :] += jnp.dot(
        tap(1), w_ref[1].astype(mm_dtype), preferred_element_type=f32)
    dst_ref[dst_off:dst_off + R, :] += jnp.dot(
        tap(2), w_ref[2].astype(mm_dtype), preferred_element_type=f32)
    dst_ref[dst_off:dst_off + R, :] = jnp.maximum(
        dst_ref[dst_off:dst_off + R, :], 0.0)

  xp1[BB:BB + R, :] = x_ref[...].reshape(R, x_ref.shape[-1])     # conv1 interior
  conv_relu_into(xp1, xp2, 2 * BB, cw1, cb1, 1)                  # conv1 -> xp2 interior
  conv_relu_into(xp2, xp3, 4 * BB, cw2, cb2, 2)                  # conv2 -> xp3 interior
  conv_relu_into(xp3, xp2, 2 * BB, cw3, cb3, 4)                  # conv3 -> reuse xp2 interior

  # ---- GRU1 input projection hoisted out of the sequential time loop --------
  h3 = xp2[2 * BB:2 * BB + R, :].astype(mm_dtype)                # conv stack output
  gi1_s[...] = (jnp.dot(h3, wih1[...].astype(mm_dtype), preferred_element_type=f32)
                + bih1[...])

  # hoist small per-step constants out of the loop
  wih2_mm = wih2[...].astype(mm_dtype)

  def gru1_step(t, h_prev):
    start = pl.multiple_of(t * BB, BB)
    gi_t = gi1_s[pl.ds(start, BB), :]                            # (BB, 192)
    gh = jnp.dot(h_prev, whh1[...], preferred_element_type=f32) + bhh1[...]
    rz = jax.nn.sigmoid(gi_t[:, :2 * H1] + gh[:, :2 * H1])       # fused r|z, 128 lanes
    r = rz[:, :H1]
    z = rz[:, H1:]
    n = jnp.tanh(gi_t[:, 2 * H1:] + r * gh[:, 2 * H1:])
    return (1.0 - z) * n + z * h_prev

  def gru2_step(x_t, h_prev):
    # gate width padded to 128 -> full-lane slabs; gate slices stay [0:32],[32:64],[64:96]
    gi = (jnp.dot(x_t.astype(mm_dtype), wih2_mm, preferred_element_type=f32)
          + bih2[...])
    gh = jnp.dot(h_prev, whh2[...], preferred_element_type=f32) + bhh2[...]
    rz = jax.nn.sigmoid(gi[:, :2 * H2] + gh[:, :2 * H2])
    r = rz[:, :H2]
    z = rz[:, H2:]
    n = jnp.tanh(gi[:, 2 * H2:3 * H2] + r * gh[:, 2 * H2:3 * H2])
    return (1.0 - z) * n + z * h_prev

  # ---- software-pipelined GRUs: GRU2 runs one step behind GRU1 --------------
  h1 = gru1_step(0, jnp.zeros((BB, H1), f32))
  h2 = jnp.zeros((BB, H2), f32)

  def body(t, carry):
    h1_prev, h2_prev = carry
    return (gru1_step(t, h1_prev),        # GRU1 step t
            gru2_step(h1_prev, h2_prev))  # GRU2 step t-1 (independent of GRU1 step t)

  trip = T - 1
  unroll = trip if 0 < trip <= 16 else 8
  if trip > 0:
    h1, h2 = lax.fori_loop(1, T, body, (h1, h2), unroll=unroll)
  h2 = gru2_step(h1, h2)                  # drain the pipeline: GRU2 step T-1

  # ---- FC fused into the same kernel ----------------------------------------
  out_ref[...] = (jnp.dot(h2, fcw[...], preferred_element_type=f32)
                  + fcb[...]).astype(out_ref.dtype)


# --------------------------------- wrapper -------------------------------------
def init_params(key, input_dim, num_steps):
  ks = jax.random.split(key, 16)

  def u(k, shape, scale=0.1):
    return jax.random.uniform(k, shape, jnp.float32, -scale, scale)

  return {
      # conv weights stored as (K=3, Cin, Cout)  (== torch (Cout, Cin, K) transposed)
      "conv1_w": u(ks[0], (3, input_dim, 64)), "conv1_b": u(ks[1], (1, 64)),
      "conv2_w": u(ks[2], (3, 64, 64)),        "conv2_b": u(ks[3], (1, 64)),
      "conv3_w": u(ks[4], (3, 64, 64)),        "conv3_b": u(ks[5], (1, 64)),
      # GRU weights stored transposed: (Cin, 3H) / (H, 3H); gate column order [r|z|n]
      "gru1_wih": u(ks[6], (64, 192)), "gru1_whh": u(ks[7], (64, 192)),
      "gru1_bih": u(ks[8], (1, 192)),  "gru1_bhh": u(ks[9], (1, 192)),
      "gru2_wih": u(ks[10], (64, 96)), "gru2_whh": u(ks[11], (32, 96)),
      "gru2_bih": u(ks[12], (1, 96)),  "gru2_bhh": u(ks[13], (1, 96)),
      # fc stored transposed: (32, 2*num_steps)
      "fc_w": u(ks[14], (32, 2 * num_steps)), "fc_b": u(ks[15], (1, 2 * num_steps)),
  }


def _round_up(x, m):
  return ((x + m - 1) // m) * m


def _pick_bb(B, T, Cin, vmem_budget_bytes=40 << 20):
  """Batch tile: as large as the VMEM budget allows (<=128), >=2 tiles if possible."""
  per_tb = 4 * (Cin + 64 + 64 + 192)            # xp1 + xp2 + xp3 + gi1 bytes per (t, b)
  cap = vmem_budget_bytes // max(1, per_tb * T)
  bb = max(8, (int(min(128, cap)) // 8) * 8)
  b_pad8 = _round_up(max(B, 1), 8)
  if b_pad8 <= 8:
    return 8
  # keep at least 2 grid tiles so both v7x TensorCores get work
  half = _round_up((b_pad8 + 1) // 2, 8)
  return max(8, min(bb, half))


def stgp_forward(params, x, *, num_steps, mm_dtype=jnp.float32):
  """x: (B, T, input_dim) -> (B, num_steps, 2).  Matches STGPModel.forward."""
  B, T, Cin = x.shape
  H1, H2 = 64, 32
  out_dim = 2 * num_steps

  BB = _pick_bb(B, T, Cin)
  B_pad = _round_up(B, BB)

  x_tm = jnp.transpose(x, (1, 0, 2)).astype(jnp.float32)   # (T, B, Cin) time-major
  if B_pad != B:
    x_tm = jnp.pad(x_tm, ((0, 0), (0, B_pad - B), (0, 0)))

  # pad GRU2 gate width 96 -> 128 with zeros (full 128-lane per-step slabs)
  def pad_gates(a, width=128):
    return jnp.pad(a, ((0, 0), (0, width - a.shape[-1])))

  wih2 = pad_gates(params["gru2_wih"])
  whh2 = pad_gates(params["gru2_whh"])
  bih2 = pad_gates(params["gru2_bih"])
  bhh2 = pad_gates(params["gru2_bhh"])

  weight_args = (
      params["conv1_w"], params["conv1_b"], params["conv2_w"], params["conv2_b"],
      params["conv3_w"], params["conv3_b"],
      params["gru1_wih"], params["gru1_whh"], params["gru1_bih"], params["gru1_bhh"],
      wih2, whh2, bih2, bhh2,
      params["fc_w"], params["fc_b"],
  )

  def const_spec(a):
    if a.ndim == 3:
      return pl.BlockSpec(a.shape, lambda i: (0, 0, 0))
    return pl.BlockSpec(a.shape, lambda i: (0, 0))

  in_specs = [pl.BlockSpec((T, BB, Cin), lambda i: (0, i, 0))]
  in_specs += [const_spec(a) for a in weight_args]

  scratch_shapes = [
      pltpu.VMEM(((T + 2) * BB, Cin), jnp.float32),   # conv1 zero-padded input
      pltpu.VMEM(((T + 4) * BB, 64), jnp.float32),    # conv2 padded in / conv3 out (reused)
      pltpu.VMEM(((T + 8) * BB, 64), jnp.float32),    # conv3 zero-padded input
      pltpu.VMEM((T * BB, 3 * H1), jnp.float32),      # GRU1 gate pre-activations
  ]

  scratch_bytes = 4 * ((T + 2) * BB * Cin + (T + 4) * BB * 64
                       + (T + 8) * BB * 64 + T * BB * 3 * H1)
  io_bytes = 4 * 2 * (T * BB * Cin + BB * out_dim)            # double-buffered blocks
  w_bytes = 4 * sum(int(a.size) for a in weight_args)
  vmem_limit = int(min(max(2 * (scratch_bytes + io_bytes + w_bytes), 32 << 20), 64 << 20))

  kernel = functools.partial(_stgp_kernel, T=T, BB=BB, H1=H1, H2=H2, mm_dtype=mm_dtype)
  out = pl.pallas_call(
      kernel,
      out_shape=jax.ShapeDtypeStruct((B_pad, out_dim), jnp.float32),
      grid_spec=pltpu.PrefetchScalarGridSpec(
          num_scalar_prefetch=0,
          grid=(B_pad // BB,),
          in_specs=in_specs,
          out_specs=pl.BlockSpec((BB, out_dim), lambda i: (i, 0)),
          scratch_shapes=scratch_shapes,
      ),
      compiler_params=pltpu.CompilerParams(
          dimension_semantics=("parallel",),
          vmem_limit_bytes=vmem_limit,
      ),
  )(x_tm, *weight_args)
  return out[:B].reshape(B, num_steps, 2)


# ------------------------- pure-JAX reference (for checking) -------------------
def stgp_reference(params, x, *, num_steps):
  def conv_relu(h, w, b, d):
    Bd, T, _ = h.shape
    hp = jnp.pad(h, ((0, 0), (d, d), (0, 0)))
    y = jnp.zeros((Bd, T, w.shape[2]), jnp.float32)
    for k in range(3):
      y = y + jnp.einsum("btc,co->bto", hp[:, k * d:k * d + T, :], w[k])
    return jax.nn.relu(y + b[None])

  def gru(hseq, wih, whh, bih, bhh):
    Bd, T, _ = hseq.shape
    H = whh.shape[0]

    def step(h, x_t):
      gi = x_t @ wih + bih
      gh = h @ whh + bhh
      r = jax.nn.sigmoid(gi[:, :H] + gh[:, :H])
      z = jax.nn.sigmoid(gi[:, H:2 * H] + gh[:, H:2 * H])
      n = jnp.tanh(gi[:, 2 * H:] + r * gh[:, 2 * H:])
      h_new = (1.0 - z) * n + z * h
      return h_new, h_new

    _, ys = lax.scan(step, jnp.zeros((Bd, H), jnp.float32),
                     jnp.transpose(hseq, (1, 0, 2)))
    return jnp.transpose(ys, (1, 0, 2))

  h = conv_relu(x, params["conv1_w"], params["conv1_b"], 1)
  h = conv_relu(h, params["conv2_w"], params["conv2_b"], 2)
  h = conv_relu(h, params["conv3_w"], params["conv3_b"], 4)
  h = gru(h, params["gru1_wih"], params["gru1_whh"], params["gru1_bih"], params["gru1_bhh"])
  h = gru(h, params["gru2_wih"], params["gru2_whh"], params["gru2_bih"], params["gru2_bhh"])
  out = h[:, -1, :] @ params["fc_w"] + params["fc_b"]
  return out.reshape(-1, num_steps, 2)


if __name__ == "__main__":
  B, T, input_dim, num_steps = 2, 8, 4, 4
  key = jax.random.PRNGKey(0)
  kp, kx = jax.random.split(key)
  params = init_params(kp, input_dim, num_steps)
  x = jax.random.normal(kx, (B, T, input_dim), jnp.float32)

  ref = stgp_reference(params, x, num_steps=num_steps)

  # exact-parity f32 path
  fwd = jax.jit(functools.partial(stgp_forward, num_steps=num_steps))
  out = fwd(params, x)
  jax.block_until_ready(out)
  assert out.shape == (B, num_steps, 2), out.shape
  err = float(jnp.max(jnp.abs(out - ref)))
  assert err < 1e-3, f"f32 max abs err {err}"

  # bf16-MXU-operand path (f32 accumulate) -- looser tolerance
  fwd_bf16 = jax.jit(functools.partial(stgp_forward, num_steps=num_steps,
                                       mm_dtype=jnp.bfloat16))
  out_bf16 = fwd_bf16(params, x)
  jax.block_until_ready(out_bf16)
  err_bf16 = float(jnp.max(jnp.abs(out_bf16 - ref)))
  assert err_bf16 < 5e-2, f"bf16 max abs err {err_bf16}"

  print("KERNEL_OK")
</pallas_src>

<mosaic_0001>
module attributes {stable_mosaic.version = 11 : i64} {
  func.func @_stgp_kernel(%arg0: i32, %arg1: memref<8x8x4xf32, #tpu.memory_space<vmem>>, %arg2: memref<3x4x64xf32, #tpu.memory_space<vmem>>, %arg3: memref<1x64xf32, #tpu.memory_space<vmem>>, %arg4: memref<3x64x64xf32, #tpu.memory_space<vmem>>, %arg5: memref<1x64xf32, #tpu.memory_space<vmem>>, %arg6: memref<3x64x64xf32, #tpu.memory_space<vmem>>, %arg7: memref<1x64xf32, #tpu.memory_space<vmem>>, %arg8: memref<64x192xf32, #tpu.memory_space<vmem>>, %arg9: memref<64x192xf32, #tpu.memory_space<vmem>>, %arg10: memref<1x192xf32, #tpu.memory_space<vmem>>, %arg11: memref<1x192xf32, #tpu.memory_space<vmem>>, %arg12: memref<64x128xf32, #tpu.memory_space<vmem>>, %arg13: memref<32x128xf32, #tpu.memory_space<vmem>>, %arg14: memref<1x128xf32, #tpu.memory_space<vmem>>, %arg15: memref<1x128xf32, #tpu.memory_space<vmem>>, %arg16: memref<32x8xf32, #tpu.memory_space<vmem>>, %arg17: memref<1x8xf32, #tpu.memory_space<vmem>>, %arg18: memref<8x8xf32, #tpu.memory_space<vmem>>, %arg19: memref<80x4xf32, #tpu.memory_space<vmem>>, %arg20: memref<96x64xf32, #tpu.memory_space<vmem>>, %arg21: memref<128x64xf32, #tpu.memory_space<vmem>>, %arg22: memref<64x192xf32, #tpu.memory_space<vmem>>) attributes {dimension_semantics = [#tpu.dimension_semantics<parallel>], iteration_bounds = array<i64: 1>, scalar_prefetch = 0 : i64, scratch_operands = 4 : i64, tpu.core_type = #tpu.core_type<tc>, window_params = [{transform_indices = @transform_0, window_bounds = array<i64: 8, 8, 4>}, {pipeline_mode = #tpu.pipeline_mode<synchronous>, transform_indices = @transform_1, window_bounds = array<i64: 3, 4, 64>}, {pipeline_mode = #tpu.pipeline_mode<synchronous>, transform_indices = @transform_2, window_bounds = array<i64: 1, 64>}, {pipeline_mode = #tpu.pipeline_mode<synchronous>, transform_indices = @transform_3, window_bounds = array<i64: 3, 64, 64>}, {pipeline_mode = #tpu.pipeline_mode<synchronous>, transform_indices = @transform_4, window_bounds = array<i64: 1, 64>}, {pipeline_mode = #tpu.pipeline_mode<synchronous>, transform_indices = @transform_5, window_bounds = array<i64: 3, 64, 64>}, {pipeline_mode = #tpu.pipeline_mode<synchronous>, transform_indices = @transform_6, window_bounds = array<i64: 1, 64>}, {pipeline_mode = #tpu.pipeline_mode<synchronous>, transform_indices = @transform_7, window_bounds = array<i64: 64, 192>}, {pipeline_mode = #tpu.pipeline_mode<synchronous>, transform_indices = @transform_8, window_bounds = array<i64: 64, 192>}, {pipeline_mode = #tpu.pipeline_mode<synchronous>, transform_indices = @transform_9, window_bounds = array<i64: 1, 192>}, {pipeline_mode = #tpu.pipeline_mode<synchronous>, transform_indices = @transform_10, window_bounds = array<i64: 1, 192>}, {pipeline_mode = #tpu.pipeline_mode<synchronous>, transform_indices = @transform_11, window_bounds = array<i64: 64, 128>}, {pipeline_mode = #tpu.pipeline_mode<synchronous>, transform_indices = @transform_12, window_bounds = array<i64: 32, 128>}, {pipeline_mode = #tpu.pipeline_mode<synchronous>, transform_indices = @transform_13, window_bounds = array<i64: 1, 128>}, {pipeline_mode = #tpu.pipeline_mode<synchronous>, transform_indices = @transform_14, window_bounds = array<i64: 1, 128>}, {pipeline_mode = #tpu.pipeline_mode<synchronous>, transform_indices = @transform_15, window_bounds = array<i64: 32, 8>}, {pipeline_mode = #tpu.pipeline_mode<synchronous>, transform_indices = @transform_16, window_bounds = array<i64: 1, 8>}, {transform_indices = @transform_17, window_bounds = array<i64: 8, 8>}]} {
    %cst = arith.constant 0.000000e+00 : f32
    %0 = vector.broadcast %cst : f32 to vector<8x4xf32>
    %c0 = arith.constant 0 : index
    %c0_0 = arith.constant 0 : index
    %1 = vector.load %arg19[%c0, %c0_0] : memref<80x4xf32, #tpu.memory_space<vmem>>, vector<8x4xf32>
    tpu.vector_store %arg19[%c0, %c0_0], %0 {strides = array<i32>} : memref<80x4xf32, #tpu.memory_space<vmem>>, vector<8x4xf32>,
    %c72 = arith.constant 72 : index
    %c0_1 = arith.constant 0 : index
    %2 = vector.load %arg19[%c72, %c0_1] : memref<80x4xf32, #tpu.memory_space<vmem>>, vector<8x4xf32>
    tpu.vector_store %arg19[%c72, %c0_1], %0 {strides = array<i32>} : memref<80x4xf32, #tpu.memory_space<vmem>>, vector<8x4xf32>,
    %cst_2 = arith.constant 0.000000e+00 : f32
    %3 = vector.broadcast %cst_2 : f32 to vector<16x64xf32>
    %c0_3 = arith.constant 0 : index
    %c0_4 = arith.constant 0 : index
    %4 = vector.load %arg20[%c0_3, %c0_4] : memref<96x64xf32, #tpu.memory_space<vmem>>, vector<16x64xf32>
    tpu.vector_store %arg20[%c0_3, %c0_4], %3 {strides = array<i32>} : memref<96x64xf32, #tpu.memory_space<vmem>>, vector<16x64xf32>,
    %c80 = arith.constant 80 : index
    %c0_5 = arith.constant 0 : index
    %5 = vector.load %arg20[%c80, %c0_5] : memref<96x64xf32, #tpu.memory_space<vmem>>, vector<16x64xf32>
    tpu.vector_store %arg20[%c80, %c0_5], %3 {strides = array<i32>} : memref<96x64xf32, #tpu.memory_space<vmem>>, vector<16x64xf32>,
    %cst_6 = arith.constant 0.000000e+00 : f32
    %6 = vector.broadcast %cst_6 : f32 to vector<32x64xf32>
    %c0_7 = arith.constant 0 : index
    %c0_8 = arith.constant 0 : index
    %7 = vector.load %arg21[%c0_7, %c0_8] : memref<128x64xf32, #tpu.memory_space<vmem>>, vector<32x64xf32>
    tpu.vector_store %arg21[%c0_7, %c0_8], %6 {strides = array<i32>} : memref<128x64xf32, #tpu.memory_space<vmem>>, vector<32x64xf32>,
    %c96 = arith.constant 96 : index
    %c0_9 = arith.constant 0 : index
    %8 = vector.load %arg21[%c96, %c0_9] : memref<128x64xf32, #tpu.memory_space<vmem>>, vector<32x64xf32>
    tpu.vector_store %arg21[%c96, %c0_9], %6 {strides = array<i32>} : memref<128x64xf32, #tpu.memory_space<vmem>>, vector<32x64xf32>,
    %c0_10 = arith.constant 0 : index
    %c0_11 = arith.constant 0 : index
    %c0_12 = arith.constant 0 : index
    %9 = vector.load %arg1[%c0_10, %c0_11, %c0_12] : memref<8x8x4xf32, #tpu.memory_space<vmem>>, vector<8x8x4xf32>
    %10 = vector.shape_cast %9 : vector<8x8x4xf32> to vector<64x4xf32>
    %c8 = arith.constant 8 : index
    %c0_13 = arith.constant 0 : index
    %11 = vector.load %arg19[%c8, %c0_13] : memref<80x4xf32, #tpu.memory_space<vmem>>, vector<64x4xf32>
    tpu.vector_store %arg19[%c8, %c0_13], %10 {strides = array<i32>} : memref<80x4xf32, #tpu.memory_space<vmem>>, vector<64x4xf32>,
    %c0_14 = arith.constant 0 : index
    %c0_15 = arith.constant 0 : index
    %12 = vector.load %arg19[%c0_14, %c0_15] : memref<80x4xf32, #tpu.memory_space<vmem>>, vector<64x4xf32>
    %c0_16 = arith.constant 0 : index
    %c0_17 = arith.constant 0 : index
    %c0_18 = arith.constant 0 : index
    %13 = vector.load %arg2[%c0_16, %c0_17, %c0_18] : memref<3x4x64xf32, #tpu.memory_space<vmem>>, vector<1x4x64xf32>
    %14 = vector.shape_cast %13 : vector<1x4x64xf32> to vector<4x64xf32>
    %cst_19 = arith.constant dense<0.000000e+00> : vector<64x64xf32>
    %15 = tpu.matmul %12, %14, %cst_19 {dimension_numbers = #tpu.dot_dimension_numbers<[1], [0], [0], [1], [0, 0, 1, 1], [], []>} : vector<64x4xf32>, vector<4x64xf32>, vector<64x64xf32> -> vector<64x64xf32>
    %c0_20 = arith.constant 0 : index
    %c0_21 = arith.constant 0 : index
    %16 = vector.load %arg3[%c0_20, %c0_21] : memref<1x64xf32, #tpu.memory_space<vmem>>, vector<1x64xf32>
    %17 = vector.broadcast %16 : vector<1x64xf32> to vector<64x64xf32>
    %18 = arith.addf %15, %17 : vector<64x64xf32>
    %c16 = arith.constant 16 : index
    %c0_22 = arith.constant 0 : index
    %19 = vector.load %arg20[%c16, %c0_22] : memref<96x64xf32, #tpu.memory_space<vmem>>, vector<64x64xf32>
    tpu.vector_store %arg20[%c16, %c0_22], %18 {strides = array<i32>} : memref<96x64xf32, #tpu.memory_space<vmem>>, vector<64x64xf32>,
    %c16_23 = arith.constant 16 : index
    %c0_24 = arith.constant 0 : index
    %20 = vector.load %arg20[%c16_23, %c0_24] : memref<96x64xf32, #tpu.memory_space<vmem>>, vector<64x64xf32>
    %c8_25 = arith.constant 8 : index
    %c0_26 = arith.constant 0 : index
    %21 = vector.load %arg19[%c8_25, %c0_26] : memref<80x4xf32, #tpu.memory_space<vmem>>, vector<64x4xf32>
    %c1 = arith.constant 1 : index
    %c0_27 = arith.constant 0 : index
    %c0_28 = arith.constant 0 : index
    %22 = vector.load %arg2[%c1, %c0_27, %c0_28] : memref<3x4x64xf32, #tpu.memory_space<vmem>>, vector<1x4x64xf32>
    %23 = vector.shape_cast %22 : vector<1x4x64xf32> to vector<4x64xf32>
    %cst_29 = arith.constant dense<0.000000e+00> : vector<64x64xf32>
    %24 = tpu.matmul %21, %23, %cst_29 {dimension_numbers = #tpu.dot_dimension_numbers<[1], [0], [0], [1], [0, 0, 1, 1], [], []>} : vector<64x4xf32>, vector<4x64xf32>, vector<64x64xf32> -> vector<64x64xf32>
    %25 = arith.addf %20, %24 : vector<64x64xf32>
    %c16_30 = arith.constant 16 : index
    %c0_31 = arith.constant 0 : index
    %26 = vector.load %arg20[%c16_30, %c0_31] : memref<96x64xf32, #tpu.memory_space<vmem>>, vector<64x64xf32>
    tpu.vector_store %arg20[%c16_30, %c0_31], %25 {strides = array<i32>} : memref<96x64xf32, #tpu.memory_space<vmem>>, vector<64x64xf32>,
    %c16_32 = arith.constant 16 : index
    %c0_33 = arith.constant 0 : index
    %27 = vector.load %arg20[%c16_32, %c0_33] : memref<96x64xf32, #tpu.memory_space<vmem>>, vector<64x64xf32>
    %c16_34 = arith.constant 16 : index
    %c0_35 = arith.constant 0 : index
    %28 = vector.load %arg19[%c16_34, %c0_35] : memref<80x4xf32, #tpu.memory_space<vmem>>, vector<64x4xf32>
    %c2 = arith.constant 2 : index
    %c0_36 = arith.constant 0 : index
    %c0_37 = arith.constant 0 : index
    %29 = vector.load %arg2[%c2, %c0_36, %c0_37] : memref<3x4x64xf32, #tpu.memory_space<vmem>>, vector<1x4x64xf32>
    %30 = vector.shape_cast %29 : vector<1x4x64xf32> to vector<4x64xf32>
    %cst_38 = arith.constant dense<0.000000e+00> : vector<64x64xf32>
    %31 = tpu.matmul %28, %30, %cst_38 {dimension_numbers = #tpu.dot_dimension_numbers<[1], [0], [0], [1], [0, 0, 1, 1], [], []>} : vector<64x4xf32>, vector<4x64xf32>, vector<64x64xf32> -> vector<64x64xf32>
    %32 = arith.addf %27, %31 : vector<64x64xf32>
    %c16_39 = arith.constant 16 : index
    %c0_40 = arith.constant 0 : index
    %33 = vector.load %arg20[%c16_39, %c0_40] : memref<96x64xf32, #tpu.memory_space<vmem>>, vector<64x64xf32>
    tpu.vector_store %arg20[%c16_39, %c0_40], %32 {strides = array<i32>} : memref<96x64xf32, #tpu.memory_space<vmem>>, vector<64x64xf32>,
    %c16_41 = arith.constant 16 : index
    %c0_42 = arith.constant 0 : index
    %34 = vector.load %arg20[%c16_41, %c0_42] : memref<96x64xf32, #tpu.memory_space<vmem>>, vector<64x64xf32>
    %cst_43 = arith.constant 0.000000e+00 : f32
    %35 = vector.broadcast %cst_43 : f32 to vector<64x64xf32>
    %36 = arith.maximumf %34, %35 : vector<64x64xf32>
    %c16_44 = arith.constant 16 : index
    %c0_45 = arith.constant 0 : index
    %37 = vector.load %arg20[%c16_44, %c0_45] : memref<96x64xf32, #tpu.memory_space<vmem>>, vector<64x64xf32>
    tpu.vector_store %arg20[%c16_44, %c0_45], %36 {strides = array<i32>} : memref<96x64xf32, #tpu.memory_space<vmem>>, vector<64x64xf32>,
    %c0_46 = arith.constant 0 : index
    %c0_47 = arith.constant 0 : index
    %38 = vector.load %arg20[%c0_46, %c0_47] : memref<96x64xf32, #tpu.memory_space<vmem>>, vector<64x64xf32>
    %c0_48 = arith.constant 0 : index
    %c0_49 = arith.constant 0 : index
    %c0_50 = arith.constant 0 : index
    %39 = vector.load %arg4[%c0_48, %c0_49, %c0_50] : memref<3x64x64xf32, #tpu.memory_space<vmem>>, vector<1x64x64xf32>
    %40 = vector.shape_cast %39 : vector<1x64x64xf32> to vector<64x64xf32>
    %cst_51 = arith.constant dense<0.000000e+00> : vector<64x64xf32>
    %41 = tpu.matmul %38, %40, %cst_51 {dimension_numbers = #tpu.dot_dimension_numbers<[1], [0], [0], [1], [0, 0, 1, 1], [], []>} : vector<64x64xf32>, vector<64x64xf32>, vector<64x64xf32> -> vector<64x64xf32>
    %c0_52 = arith.constant 0 : index
    %c0_53 = arith.constant 0 : index
    %42 = vector.load %arg5[%c0_52, %c0_53] : memref<1x64xf32, #tpu.memory_space<vmem>>, vector<1x64xf32>
    %43 = vector.broadcast %42 : vector<1x64xf32> to vector<64x64xf32>
    %44 = arith.addf %41, %43 : vector<64x64xf32>
    %c32 = arith.constant 32 : index
    %c0_54 = arith.constant 0 : index
    %45 = vector.load %arg21[%c32, %c0_54] : memref<128x64xf32, #tpu.memory_space<vmem>>, vector<64x64xf32>
    tpu.vector_store %arg21[%c32, %c0_54], %44 {strides = array<i32>} : memref<128x64xf32, #tpu.memory_space<vmem>>, vector<64x64xf32>,
    %c32_55 = arith.constant 32 : index
    %c0_56 = arith.constant 0 : index
    %46 = vector.load %arg21[%c32_55, %c0_56] : memref<128x64xf32, #tpu.memory_space<vmem>>, vector<64x64xf32>
    %c16_57 = arith.constant 16 : index
    %c0_58 = arith.constant 0 : index
    %47 = vector.load %arg20[%c16_57, %c0_58] : memref<96x64xf32, #tpu.memory_space<vmem>>, vector<64x64xf32>
    %c1_59 = arith.constant 1 : index
    %c0_60 = arith.constant 0 : index
    %c0_61 = arith.constant 0 : index
    %48 = vector.load %arg4[%c1_59, %c0_60, %c0_61] : memref<3x64x64xf32, #tpu.memory_space<vmem>>, vector<1x64x64xf32>
    %49 = vector.shape_cast %48 : vector<1x64x64xf32> to vector<64x64xf32>
    %cst_62 = arith.constant dense<0.000000e+00> : vector<64x64xf32>
    %50 = tpu.matmul %47, %49, %cst_62 {dimension_numbers = #tpu.dot_dimension_numbers<[1], [0], [0], [1], [0, 0, 1, 1], [], []>} : vector<64x64xf32>, vector<64x64xf32>, vector<64x64xf32> -> vector<64x64xf32>
    %51 = arith.addf %46, %50 : vector<64x64xf32>
    %c32_63 = arith.constant 32 : index
    %c0_64 = arith.constant 0 : index
    %52 = vector.load %arg21[%c32_63, %c0_64] : memref<128x64xf32, #tpu.memory_space<vmem>>, vector<64x64xf32>
    tpu.vector_store %arg21[%c32_63, %c0_64], %51 {strides = array<i32>} : memref<128x64xf32, #tpu.memory_space<vmem>>, vector<64x64xf32>,
    %c32_65 = arith.constant 32 : index
    %c0_66 = arith.constant 0 : index
    %53 = vector.load %arg21[%c32_65, %c0_66] : memref<128x64xf32, #tpu.memory_space<vmem>>, vector<64x64xf32>
    %c32_67 = arith.constant 32 : index
    %c0_68 = arith.constant 0 : index
    %54 = vector.load %arg20[%c32_67, %c0_68] : memref<96x64xf32, #tpu.memory_space<vmem>>, vector<64x64xf32>
    %c2_69 = arith.constant 2 : index
    %c0_70 = arith.constant 0 : index
    %c0_71 = arith.constant 0 : index
    %55 = vector.load %arg4[%c2_69, %c0_70, %c0_71] : memref<3x64x64xf32, #tpu.memory_space<vmem>>, vector<1x64x64xf32>
    %56 = vector.shape_cast %55 : vector<1x64x64xf32> to vector<64x64xf32>
    %cst_72 = arith.constant dense<0.000000e+00> : vector<64x64xf32>
    %57 = tpu.matmul %54, %56, %cst_72 {dimension_numbers = #tpu.dot_dimension_numbers<[1], [0], [0], [1], [0, 0, 1, 1], [], []>} : vector<64x64xf32>, vector<64x64xf32>, vector<64x64xf32> -> vector<64x64xf32>
    %58 = arith.addf %53, %57 : vector<64x64xf32>
    %c32_73 = arith.constant 32 : index
    %c0_74 = arith.constant 0 : index
    %59 = vector.load %arg21[%c32_73, %c0_74] : memref<128x64xf32, #tpu.memory_space<vmem>>, vector<64x64xf32>
    tpu.vector_store %arg21[%c32_73, %c0_74], %58 {strides = array<i32>} : memref<128x64xf32, #tpu.memory_space<vmem>>, vector<64x64xf32>,
    %c32_75 = arith.constant 32 : index
    %c0_76 = arith.constant 0 : index
    %60 = vector.load %arg21[%c32_75, %c0_76] : memref<128x64xf32, #tpu.memory_space<vmem>>, vector<64x64xf32>
    %cst_77 = arith.constant 0.000000e+00 : f32
    %61 = vector.broadcast %cst_77 : f32 to vector<64x64xf32>
    %62 = arith.maximumf %60, %61 : vector<64x64xf32>
    %c32_78 = arith.constant 32 : index
    %c0_79 = arith.constant 0 : index
    %63 = vector.load %arg21[%c32_78, %c0_79] : memref<128x64xf32, #tpu.memory_space<vmem>>, vector<64x64xf32>
    tpu.vector_store %arg21[%c32_78, %c0_79], %62 {strides = array<i32>} : memref<128x64xf32, #tpu.memory_space<vmem>>, vector<64x64xf32>,
    %c0_80 = arith.constant 0 : index
    %c0_81 = arith.constant 0 : index
    %64 = vector.load %arg21[%c0_80, %c0_81] : memref<128x64xf32, #tpu.memory_space<vmem>>, vector<64x64xf32>
    %c0_82 = arith.constant 0 : index
    %c0_83 = arith.constant 0 : index
    %c0_84 = arith.constant 0 : index
    %65 = vector.load %arg6[%c0_82, %c0_83, %c0_84] : memref<3x64x64xf32, #tpu.memory_space<vmem>>, vector<1x64x64xf32>
    %66 = vector.shape_cast %65 : vector<1x64x64xf32> to vector<64x64xf32>
    %cst_85 = arith.constant dense<0.000000e+00> : vector<64x64xf32>
    %67 = tpu.matmul %64, %66, %cst_85 {dimension_numbers = #tpu.dot_dimension_numbers<[1], [0], [0], [1], [0, 0, 1, 1], [], []>} : vector<64x64xf32>, vector<64x64xf32>, vector<64x64xf32> -> vector<64x64xf32>
    %c0_86 = arith.constant 0 : index
    %c0_87 = arith.constant 0 : index
    %68 = vector.load %arg7[%c0_86, %c0_87] : memref<1x64xf32, #tpu.memory_space<vmem>>, vector<1x64xf32>
    %69 = vector.broadcast %68 : vector<1x64xf32> to vector<64x64xf32>
    %70 = arith.addf %67, %69 : vector<64x64xf32>
    %c16_88 = arith.constant 16 : index
    %c0_89 = arith.constant 0 : index
    %71 = vector.load %arg20[%c16_88, %c0_89] : memref<96x64xf32, #tpu.memory_space<vmem>>, vector<64x64xf32>
    tpu.vector_store %arg20[%c16_88, %c0_89], %70 {strides = array<i32>} : memref<96x64xf32, #tpu.memory_space<vmem>>, vector<64x64xf32>,
    %c16_90 = arith.constant 16 : index
    %c0_91 = arith.constant 0 : index
    %72 = vector.load %arg20[%c16_90, %c0_91] : memref<96x64xf32, #tpu.memory_space<vmem>>, vector<64x64xf32>
    %c32_92 = arith.constant 32 : index
    %c0_93 = arith.constant 0 : index
    %73 = vector.load %arg21[%c32_92, %c0_93] : memref<128x64xf32, #tpu.memory_space<vmem>>, vector<64x64xf32>
    %c1_94 = arith.constant 1 : index
    %c0_95 = arith.constant 0 : index
    %c0_96 = arith.constant 0 : index
    %74 = vector.load %arg6[%c1_94, %c0_95, %c0_96] : memref<3x64x64xf32, #tpu.memory_space<vmem>>, vector<1x64x64xf32>
    %75 = vector.shape_cast %74 : vector<1x64x64xf32> to vector<64x64xf32>
    %cst_97 = arith.constant dense<0.000000e+00> : vector<64x64xf32>
    %76 = tpu.matmul %73, %75, %cst_97 {dimension_numbers = #tpu.dot_dimension_numbers<[1], [0], [0], [1], [0, 0, 1, 1], [], []>} : vector<64x64xf32>, vector<64x64xf32>, vector<64x64xf32> -> vector<64x64xf32>
    %77 = arith.addf %72, %76 : vector<64x64xf32>
    %c16_98 = arith.constant 16 : index
    %c0_99 = arith.constant 0 : index
    %78 = vector.load %arg20[%c16_98, %c0_99] : memref<96x64xf32, #tpu.memory_space<vmem>>, vector<64x64xf32>
    tpu.vector_store %arg20[%c16_98, %c0_99], %77 {strides = array<i32>} : memref<96x64xf32, #tpu.memory_space<vmem>>, vector<64x64xf32>,
    %c16_100 = arith.constant 16 : index
    %c0_101 = arith.constant 0 : index
    %79 = vector.load %arg20[%c16_100, %c0_101] : memref<96x64xf32, #tpu.memory_space<vmem>>, vector<64x64xf32>
    %c64 = arith.constant 64 : index
    %c0_102 = arith.constant 0 : index
    %80 = vector.load %arg21[%c64, %c0_102] : memref<128x64xf32, #tpu.memory_space<vmem>>, vector<64x64xf32>
    %c2_103 = arith.constant 2 : index
    %c0_104 = arith.constant 0 : index
    %c0_105 = arith.constant 0 : index
    %81 = vector.load %arg6[%c2_103, %c0_104, %c0_105] : memref<3x64x64xf32, #tpu.memory_space<vmem>>, vector<1x64x64xf32>
    %82 = vector.shape_cast %81 : vector<1x64x64xf32> to vector<64x64xf32>
    %cst_106 = arith.constant dense<0.000000e+00> : vector<64x64xf32>
    %83 = tpu.matmul %80, %82, %cst_106 {dimension_numbers = #tpu.dot_dimension_numbers<[1], [0], [0], [1], [0, 0, 1, 1], [], []>} : vector<64x64xf32>, vector<64x64xf32>, vector<64x64xf32> -> vector<64x64xf32>
    %84 = arith.addf %79, %83 : vector<64x64xf32>
    %c16_107 = arith.constant 16 : index
    %c0_108 = arith.constant 0 : index
    %85 = vector.load %arg20[%c16_107, %c0_108] : memref<96x64xf32, #tpu.memory_space<vmem>>, vector<64x64xf32>
    tpu.vector_store %arg20[%c16_107, %c0_108], %84 {strides = array<i32>} : memref<96x64xf32, #tpu.memory_space<vmem>>, vector<64x64xf32>,
    %c16_109 = arith.constant 16 : index
    %c0_110 = arith.constant 0 : index
    %86 = vector.load %arg20[%c16_109, %c0_110] : memref<96x64xf32, #tpu.memory_space<vmem>>, vector<64x64xf32>
    %cst_111 = arith.constant 0.000000e+00 : f32
    %87 = vector.broadcast %cst_111 : f32 to vector<64x64xf32>
    %88 = arith.maximumf %86, %87 : vector<64x64xf32>
    %c16_112 = arith.constant 16 : index
    %c0_113 = arith.constant 0 : index
    %89 = vector.load %arg20[%c16_112, %c0_113] : memref<96x64xf32, #tpu.memory_space<vmem>>, vector<64x64xf32>
    tpu.vector_store %arg20[%c16_112, %c0_113], %88 {strides = array<i32>} : memref<96x64xf32, #tpu.memory_space<vmem>>, vector<64x64xf32>,
    %c16_114 = arith.constant 16 : index
    %c0_115 = arith.constant 0 : index
    %90 = vector.load %arg20[%c16_114, %c0_115] : memref<96x64xf32, #tpu.memory_space<vmem>>, vector<64x64xf32>
    %c0_116 = arith.constant 0 : index
    %c0_117 = arith.constant 0 : index
    %91 = vector.load %arg8[%c0_116, %c0_117] : memref<64x192xf32, #tpu.memory_space<vmem>>, vector<64x192xf32>
    %cst_118 = arith.constant dense<0.000000e+00> : vector<64x192xf32>
    %92 = tpu.matmul %90, %91, %cst_118 {dimension_numbers = #tpu.dot_dimension_numbers<[1], [0], [0], [1], [0, 0, 1, 1], [], []>} : vector<64x64xf32>, vector<64x192xf32>, vector<64x192xf32> -> vector<64x192xf32>
    %c0_119 = arith.constant 0 : index
    %c0_120 = arith.constant 0 : index
    %93 = vector.load %arg10[%c0_119, %c0_120] : memref<1x192xf32, #tpu.memory_space<vmem>>, vector<1x192xf32>
    %94 = vector.broadcast %93 : vector<1x192xf32> to vector<64x192xf32>
    %95 = arith.addf %92, %94 : vector<64x192xf32>
    %c0_121 = arith.constant 0 : index
    %c0_122 = arith.constant 0 : index
    %96 = vector.load %arg22[%c0_121, %c0_122] : memref<64x192xf32, #tpu.memory_space<vmem>>, vector<64x192xf32>
    tpu.vector_store %arg22[%c0_121, %c0_122], %95 {strides = array<i32>} : memref<64x192xf32, #tpu.memory_space<vmem>>, vector<64x192xf32>,
    %c0_123 = arith.constant 0 : index
    %c0_124 = arith.constant 0 : index
    %97 = vector.load %arg12[%c0_123, %c0_124] : memref<64x128xf32, #tpu.memory_space<vmem>>, vector<64x128xf32>
    %cst_125 = arith.constant 0.000000e+00 : f32
    %98 = vector.broadcast %cst_125 : f32 to vector<8x64xf32>
    %c0_i32 = arith.constant 0 : i32
    %99 = tpu.assume_multiple %c0_i32, 8 : i32
    %100 = arith.index_cast %99 : i32 to index
    %c0_126 = arith.constant 0 : index
    %101 = vector.load %arg22[%100, %c0_126] : memref<64x192xf32, #tpu.memory_space<vmem>>, vector<8x192xf32>
    %c0_127 = arith.constant 0 : index
    %c0_128 = arith.constant 0 : index
    %102 = vector.load %arg9[%c0_127, %c0_128] : memref<64x192xf32, #tpu.memory_space<vmem>>, vector<64x192xf32>
    %cst_129 = arith.constant dense<0.000000e+00> : vector<8x192xf32>
    %103 = tpu.matmul %98, %102, %cst_129 {dimension_numbers = #tpu.dot_dimension_numbers<[1], [0], [0], [1], [0, 0, 1, 1], [], []>} : vector<8x64xf32>, vector<64x192xf32>, vector<8x192xf32> -> vector<8x192xf32>
    %c0_130 = arith.constant 0 : index
    %c0_131 = arith.constant 0 : index
    %104 = vector.load %arg11[%c0_130, %c0_131] : memref<1x192xf32, #tpu.memory_space<vmem>>, vector<1x192xf32>
    %105 = vector.broadcast %104 : vector<1x192xf32> to vector<8x192xf32>
    %106 = arith.addf %103, %105 : vector<8x192xf32>
    %107 = vector.extract_strided_slice %101 {offsets = [0, 0], sizes = [8, 128], strides = [1, 1]} : vector<8x192xf32> to vector<8x128xf32>
    %108 = vector.extract_strided_slice %106 {offsets = [0, 0], sizes = [8, 128], strides = [1, 1]} : vector<8x192xf32> to vector<8x128xf32>
    %109 = arith.addf %107, %108 : vector<8x128xf32>
    %110 = arith.negf %109 : vector<8x128xf32>
    %111 = math.exp %110 : vector<8x128xf32>
    %cst_132 = arith.constant 1.000000e+00 : f32
    %112 = vector.broadcast %cst_132 : f32 to vector<8x128xf32>
    %113 = arith.addf %112, %111 : vector<8x128xf32>
    %114 = arith.divf %112, %113 : vector<8x128xf32>
    %115 = vector.extract_strided_slice %114 {offsets = [0, 0], sizes = [8, 64], strides = [1, 1]} : vector<8x128xf32> to vector<8x64xf32>
    %116 = vector.extract_strided_slice %114 {offsets = [0, 64], sizes = [8, 64], strides = [1, 1]} : vector<8x128xf32> to vector<8x64xf32>
    %117 = vector.extract_strided_slice %101 {offsets = [0, 128], sizes = [8, 64], strides = [1, 1]} : vector<8x192xf32> to vector<8x64xf32>
    %118 = vector.extract_strided_slice %106 {offsets = [0, 128], sizes = [8, 64], strides = [1, 1]} : vector<8x192xf32> to vector<8x64xf32>
    %119 = arith.mulf %115, %118 : vector<8x64xf32>
    %120 = arith.addf %117, %119 : vector<8x64xf32>
    %121 = math.tanh %120 : vector<8x64xf32>
    %cst_133 = arith.constant 1.000000e+00 : f32
    %122 = vector.broadcast %cst_133 : f32 to vector<8x64xf32>
    %123 = arith.subf %122, %116 : vector<8x64xf32>
    %124 = arith.mulf %123, %121 : vector<8x64xf32>
    %125 = arith.mulf %116, %98 : vector<8x64xf32>
    %126 = arith.addf %124, %125 : vector<8x64xf32>
    %cst_134 = arith.constant 0.000000e+00 : f32
    %127 = vector.broadcast %cst_134 : f32 to vector<8x32xf32>
    %c1_i32 = arith.constant 1 : i32
    %c8_i32 = arith.constant 8 : i32
    %128 = arith.muli %c1_i32, %c8_i32 : i32
    %129 = tpu.assume_multiple %128, 8 : i32
    %130 = arith.index_cast %129 : i32 to index
    %c0_135 = arith.constant 0 : index
    %131 = vector.load %arg22[%130, %c0_135] : memref<64x192xf32, #tpu.memory_space<vmem>>, vector<8x192xf32>
    %c0_136 = arith.constant 0 : index
    %c0_137 = arith.constant 0 : index
    %132 = vector.load %arg9[%c0_136, %c0_137] : memref<64x192xf32, #tpu.memory_space<vmem>>, vector<64x192xf32>
    %cst_138 = arith.constant dense<0.000000e+00> : vector<8x192xf32>
    %133 = tpu.matmul %126, %132, %cst_138 {dimension_numbers = #tpu.dot_dimension_numbers<[1], [0], [0], [1], [0, 0, 1, 1], [], []>} : vector<8x64xf32>, vector<64x192xf32>, vector<8x192xf32> -> vector<8x192xf32>
    %c0_139 = arith.constant 0 : index
    %c0_140 = arith.constant 0 : index
    %134 = vector.load %arg11[%c0_139, %c0_140] : memref<1x192xf32, #tpu.memory_space<vmem>>, vector<1x192xf32>
    %135 = vector.broadcast %134 : vector<1x192xf32> to vector<8x192xf32>
    %136 = arith.addf %133, %135 : vector<8x192xf32>
    %137 = vector.extract_strided_slice %131 {offsets = [0, 0], sizes = [8, 128], strides = [1, 1]} : vector<8x192xf32> to vector<8x128xf32>
    %138 = vector.extract_strided_slice %136 {offsets = [0, 0], sizes = [8, 128], strides = [1, 1]} : vector<8x192xf32> to vector<8x128xf32>
    %139 = arith.addf %137, %138 : vector<8x128xf32>
    %140 = arith.negf %139 : vector<8x128xf32>
    %141 = math.exp %140 : vector<8x128xf32>
    %cst_141 = arith.constant 1.000000e+00 : f32
    %142 = vector.broadcast %cst_141 : f32 to vector<8x128xf32>
    %143 = arith.addf %142, %141 : vector<8x128xf32>
    %144 = arith.divf %142, %143 : vector<8x128xf32>
    %145 = vector.extract_strided_slice %144 {offsets = [0, 0], sizes = [8, 64], strides = [1, 1]} : vector<8x128xf32> to vector<8x64xf32>
    %146 = vector.extract_strided_slice %144 {offsets = [0, 64], sizes = [8, 64], strides = [1, 1]} : vector<8x128xf32> to vector<8x64xf32>
    %147 = vector.extract_strided_slice %131 {offsets = [0, 128], sizes = [8, 64], strides = [1, 1]} : vector<8x192xf32> to vector<8x64xf32>
    %148 = vector.extract_strided_slice %136 {offsets = [0, 128], sizes = [8, 64], strides = [1, 1]} : vector<8x192xf32> to vector<8x64xf32>
    %149 = arith.mulf %145, %148 : vector<8x64xf32>
    %150 = arith.addf %147, %149 : vector<8x64xf32>
    %151 = math.tanh %150 : vector<8x64xf32>
    %cst_142 = arith.constant 1.000000e+00 : f32
    %152 = vector.broadcast %cst_142 : f32 to vector<8x64xf32>
    %153 = arith.subf %152, %146 : vector<8x64xf32>
    %154 = arith.mulf %153, %151 : vector<8x64xf32>
    %155 = arith.mulf %146, %126 : vector<8x64xf32>
    %156 = arith.addf %154, %155 : vector<8x64xf32>
    %cst_143 = arith.constant dense<0.000000e+00> : vector<8x128xf32>
    %157 = tpu.matmul %126, %97, %cst_143 {dimension_numbers = #tpu.dot_dimension_numbers<[1], [0], [0], [1], [0, 0, 1, 1], [], []>} : vector<8x64xf32>, vector<64x128xf32>, vector<8x128xf32> -> vector<8x128xf32>
    %c0_144 = arith.constant 0 : index
    %c0_145 = arith.constant 0 : index
    %158 = vector.load %arg14[%c0_144, %c0_145] : memref<1x128xf32, #tpu.memory_space<vmem>>, vector<1x128xf32>
    %159 = vector.broadcast %158 : vector<1x128xf32> to vector<8x128xf32>
    %160 = arith.addf %157, %159 : vector<8x128xf32>
    %c0_146 = arith.constant 0 : index
    %c0_147 = arith.constant 0 : index
    %161 = vector.load %arg13[%c0_146, %c0_147] : memref<32x128xf32, #tpu.memory_space<vmem>>, vector<32x128xf32>
    %cst_148 = arith.constant dense<0.000000e+00> : vector<8x128xf32>
    %162 = tpu.matmul %127, %161, %cst_148 {dimension_numbers = #tpu.dot_dimension_numbers<[1], [0], [0], [1], [0, 0, 1, 1], [], []>} : vector<8x32xf32>, vector<32x128xf32>, vector<8x128xf32> -> vector<8x128xf32>
    %c0_149 = arith.constant 0 : index
    %c0_150 = arith.constant 0 : index
    %163 = vector.load %arg15[%c0_149, %c0_150] : memref<1x128xf32, #tpu.memory_space<vmem>>, vector<1x128xf32>
    %164 = vector.broadcast %163 : vector<1x128xf32> to vector<8x128xf32>
    %165 = arith.addf %162, %164 : vector<8x128xf32>
    %166 = vector.extract_strided_slice %160 {offsets = [0, 0], sizes = [8, 64], strides = [1, 1]} : vector<8x128xf32> to vector<8x64xf32>
    %167 = vector.extract_strided_slice %165 {offsets = [0, 0], sizes = [8, 64], strides = [1, 1]} : vector<8x128xf32> to vector<8x64xf32>
    %168 = arith.addf %166, %167 : vector<8x64xf32>
    %169 = arith.negf %168 : vector<8x64xf32>
    %170 = math.exp %169 : vector<8x64xf32>
    %cst_151 = arith.constant 1.000000e+00 : f32
    %171 = vector.broadcast %cst_151 : f32 to vector<8x64xf32>
    %172 = arith.addf %171, %170 : vector<8x64xf32>
    %173 = arith.divf %171, %172 : vector<8x64xf32>
    %174 = vector.extract_strided_slice %173 {offsets = [0, 0], sizes = [8, 32], strides = [1, 1]} : vector<8x64xf32> to vector<8x32xf32>
    %175 = vector.extract_strided_slice %173 {offsets = [0, 32], sizes = [8, 32], strides = [1, 1]} : vector<8x64xf32> to vector<8x32xf32>
    %176 = vector.extract_strided_slice %160 {offsets = [0, 64], sizes = [8, 32], strides = [1, 1]} : vector<8x128xf32> to vector<8x32xf32>
    %177 = vector.extract_strided_slice %165 {offsets = [0, 64], sizes = [8, 32], strides = [1, 1]} : vector<8x128xf32> to vector<8x32xf32>
    %178 = arith.mulf %174, %177 : vector<8x32xf32>
    %179 = arith.addf %176, %178 : vector<8x32xf32>
    %180 = math.tanh %179 : vector<8x32xf32>
    %cst_152 = arith.constant 1.000000e+00 : f32
    %181 = vector.broadcast %cst_152 : f32 to vector<8x32xf32>
    %182 = arith.subf %181, %175 : vector<8x32xf32>
    %183 = arith.mulf %182, %180 : vector<8x32xf32>
    %184 = arith.mulf %175, %127 : vector<8x32xf32>
    %185 = arith.addf %183, %184 : vector<8x32xf32>
    %c2_i32 = arith.constant 2 : i32
    %c8_i32_153 = arith.constant 8 : i32
    %186 = arith.muli %c2_i32, %c8_i32_153 : i32
    %187 = tpu.assume_multiple %186, 8 : i32
    %188 = arith.index_cast %187 : i32 to index
    %c0_154 = arith.constant 0 : index
    %189 = vector.load %arg22[%188, %c0_154] : memref<64x192xf32, #tpu.memory_space<vmem>>, vector<8x192xf32>
    %c0_155 = arith.constant 0 : index
    %c0_156 = arith.constant 0 : index
    %190 = vector.load %arg9[%c0_155, %c0_156] : memref<64x192xf32, #tpu.memory_space<vmem>>, vector<64x192xf32>
    %cst_157 = arith.constant dense<0.000000e+00> : vector<8x192xf32>
    %191 = tpu.matmul %156, %190, %cst_157 {dimension_numbers = #tpu.dot_dimension_numbers<[1], [0], [0], [1], [0, 0, 1, 1], [], []>} : vector<8x64xf32>, vector<64x192xf32>, vector<8x192xf32> -> vector<8x192xf32>
    %c0_158 = arith.constant 0 : index
    %c0_159 = arith.constant 0 : index
    %192 = vector.load %arg11[%c0_158, %c0_159] : memref<1x192xf32, #tpu.memory_space<vmem>>, vector<1x192xf32>
    %193 = vector.broadcast %192 : vector<1x192xf32> to vector<8x192xf32>
    %194 = arith.addf %191, %193 : vector<8x192xf32>
    %195 = vector.extract_strided_slice %189 {offsets = [0, 0], sizes = [8, 128], strides = [1, 1]} : vector<8x192xf32> to vector<8x128xf32>
    %196 = vector.extract_strided_slice %194 {offsets = [0, 0], sizes = [8, 128], strides = [1, 1]} : vector<8x192xf32> to vector<8x128xf32>
    %197 = arith.addf %195, %196 : vector<8x128xf32>
    %198 = arith.negf %197 : vector<8x128xf32>
    %199 = math.exp %198 : vector<8x128xf32>
    %cst_160 = arith.constant 1.000000e+00 : f32
    %200 = vector.broadcast %cst_160 : f32 to vector<8x128xf32>
    %201 = arith.addf %200, %199 : vector<8x128xf32>
    %202 = arith.divf %200, %201 : vector<8x128xf32>
    %203 = vector.extract_strided_slice %202 {offsets = [0, 0], sizes = [8, 64], strides = [1, 1]} : vector<8x128xf32> to vector<8x64xf32>
    %204 = vector.extract_strided_slice %202 {offsets = [0, 64], sizes = [8, 64], strides = [1, 1]} : vector<8x128xf32> to vector<8x64xf32>
    %205 = vector.extract_strided_slice %189 {offsets = [0, 128], sizes = [8, 64], strides = [1, 1]} : vector<8x192xf32> to vector<8x64xf32>
    %206 = vector.extract_strided_slice %194 {offsets = [0, 128], sizes = [8, 64], strides = [1, 1]} : vector<8x192xf32> to vector<8x64xf32>
    %207 = arith.mulf %203, %206 : vector<8x64xf32>
    %208 = arith.addf %205, %207 : vector<8x64xf32>
    %209 = math.tanh %208 : vector<8x64xf32>
    %cst_161 = arith.constant 1.000000e+00 : f32
    %210 = vector.broadcast %cst_161 : f32 to vector<8x64xf32>
    %211 = arith.subf %210, %204 : vector<8x64xf32>
    %212 = arith.mulf %211, %209 : vector<8x64xf32>
    %213 = arith.mulf %204, %156 : vector<8x64xf32>
    %214 = arith.addf %212, %213 : vector<8x64xf32>
    %cst_162 = arith.constant dense<0.000000e+00> : vector<8x128xf32>
    %215 = tpu.matmul %156, %97, %cst_162 {dimension_numbers = #tpu.dot_dimension_numbers<[1], [0], [0], [1], [0, 0, 1, 1], [], []>} : vector<8x64xf32>, vector<64x128xf32>, vector<8x128xf32> -> vector<8x128xf32>
    %c0_163 = arith.constant 0 : index
    %c0_164 = arith.constant 0 : index
    %216 = vector.load %arg14[%c0_163, %c0_164] : memref<1x128xf32, #tpu.memory_space<vmem>>, vector<1x128xf32>
    %217 = vector.broadcast %216 : vector<1x128xf32> to vector<8x128xf32>
    %218 = arith.addf %215, %217 : vector<8x128xf32>
    %c0_165 = arith.constant 0 : index
    %c0_166 = arith.constant 0 : index
    %219 = vector.load %arg13[%c0_165, %c0_166] : memref<32x128xf32, #tpu.memory_space<vmem>>, vector<32x128xf32>
    %cst_167 = arith.constant dense<0.000000e+00> : vector<8x128xf32>
    %220 = tpu.matmul %185, %219, %cst_167 {dimension_numbers = #tpu.dot_dimension_numbers<[1], [0], [0], [1], [0, 0, 1, 1], [], []>} : vector<8x32xf32>, vector<32x128xf32>, vector<8x128xf32> -> vector<8x128xf32>
    %c0_168 = arith.constant 0 : index
    %c0_169 = arith.constant 0 : index
    %221 = vector.load %arg15[%c0_168, %c0_169] : memref<1x128xf32, #tpu.memory_space<vmem>>, vector<1x128xf32>
    %222 = vector.broadcast %221 : vector<1x128xf32> to vector<8x128xf32>
    %223 = arith.addf %220, %222 : vector<8x128xf32>
    %224 = vector.extract_strided_slice %218 {offsets = [0, 0], sizes = [8, 64], strides = [1, 1]} : vector<8x128xf32> to vector<8x64xf32>
    %225 = vector.extract_strided_slice %223 {offsets = [0, 0], sizes = [8, 64], strides = [1, 1]} : vector<8x128xf32> to vector<8x64xf32>
    %226 = arith.addf %224, %225 : vector<8x64xf32>
    %227 = arith.negf %226 : vector<8x64xf32>
    %228 = math.exp %227 : vector<8x64xf32>
    %cst_170 = arith.constant 1.000000e+00 : f32
    %229 = vector.broadcast %cst_170 : f32 to vector<8x64xf32>
    %230 = arith.addf %229, %228 : vector<8x64xf32>
    %231 = arith.divf %229, %230 : vector<8x64xf32>
    %232 = vector.extract_strided_slice %231 {offsets = [0, 0], sizes = [8, 32], strides = [1, 1]} : vector<8x64xf32> to vector<8x32xf32>
    %233 = vector.extract_strided_slice %231 {offsets = [0, 32], sizes = [8, 32], strides = [1, 1]} : vector<8x64xf32> to vector<8x32xf32>
    %234 = vector.extract_strided_slice %218 {offsets = [0, 64], sizes = [8, 32], strides = [1, 1]} : vector<8x128xf32> to vector<8x32xf32>
    %235 = vector.extract_strided_slice %223 {offsets = [0, 64], sizes = [8, 32], strides = [1, 1]} : vector<8x128xf32> to vector<8x32xf32>
    %236 = arith.mulf %232, %235 : vector<8x32xf32>
    %237 = arith.addf %234, %236 : vector<8x32xf32>
    %238 = math.tanh %237 : vector<8x32xf32>
    %cst_171 = arith.constant 1.000000e+00 : f32
    %239 = vector.broadcast %cst_171 : f32 to vector<8x32xf32>
    %240 = arith.subf %239, %233 : vector<8x32xf32>
    %241 = arith.mulf %240, %238 : vector<8x32xf32>
    %242 = arith.mulf %233, %185 : vector<8x32xf32>
    %243 = arith.addf %241, %242 : vector<8x32xf32>
    %c3_i32 = arith.constant 3 : i32
    %c8_i32_172 = arith.constant 8 : i32
    %244 = arith.muli %c3_i32, %c8_i32_172 : i32
    %245 = tpu.assume_multiple %244, 8 : i32
    %246 = arith.index_cast %245 : i32 to index
    %c0_173 = arith.constant 0 : index
    %247 = vector.load %arg22[%246, %c0_173] : memref<64x192xf32, #tpu.memory_space<vmem>>, vector<8x192xf32>
    %c0_174 = arith.constant 0 : index
    %c0_175 = arith.constant 0 : index
    %248 = vector.load %arg9[%c0_174, %c0_175] : memref<64x192xf32, #tpu.memory_space<vmem>>, vector<64x192xf32>
    %cst_176 = arith.constant dense<0.000000e+00> : vector<8x192xf32>
    %249 = tpu.matmul %214, %248, %cst_176 {dimension_numbers = #tpu.dot_dimension_numbers<[1], [0], [0], [1], [0, 0, 1, 1], [], []>} : vector<8x64xf32>, vector<64x192xf32>, vector<8x192xf32> -> vector<8x192xf32>
    %c0_177 = arith.constant 0 : index
    %c0_178 = arith.constant 0 : index
    %250 = vector.load %arg11[%c0_177, %c0_178] : memref<1x192xf32, #tpu.memory_space<vmem>>, vector<1x192xf32>
    %251 = vector.broadcast %250 : vector<1x192xf32> to vector<8x192xf32>
    %252 = arith.addf %249, %251 : vector<8x192xf32>
    %253 = vector.extract_strided_slice %247 {offsets = [0, 0], sizes = [8, 128], strides = [1, 1]} : vector<8x192xf32> to vector<8x128xf32>
    %254 = vector.extract_strided_slice %252 {offsets = [0, 0], sizes = [8, 128], strides = [1, 1]} : vector<8x192xf32> to vector<8x128xf32>
    %255 = arith.addf %253, %254 : vector<8x128xf32>
    %256 = arith.negf %255 : vector<8x128xf32>
    %257 = math.exp %256 : vector<8x128xf32>
    %cst_179 = arith.constant 1.000000e+00 : f32
    %258 = vector.broadcast %cst_179 : f32 to vector<8x128xf32>
    %259 = arith.addf %258, %257 : vector<8x128xf32>
    %260 = arith.divf %258, %259 : vector<8x128xf32>
    %261 = vector.extract_strided_slice %260 {offsets = [0, 0], sizes = [8, 64], strides = [1, 1]} : vector<8x128xf32> to vector<8x64xf32>
    %262 = vector.extract_strided_slice %260 {offsets = [0, 64], sizes = [8, 64], strides = [1, 1]} : vector<8x128xf32> to vector<8x64xf32>
    %263 = vector.extract_strided_slice %247 {offsets = [0, 128], sizes = [8, 64], strides = [1, 1]} : vector<8x192xf32> to vector<8x64xf32>
    %264 = vector.extract_strided_slice %252 {offsets = [0, 128], sizes = [8, 64], strides = [1, 1]} : vector<8x192xf32> to vector<8x64xf32>
    %265 = arith.mulf %261, %264 : vector<8x64xf32>
    %266 = arith.addf %263, %265 : vector<8x64xf32>
    %267 = math.tanh %266 : vector<8x64xf32>
    %cst_180 = arith.constant 1.000000e+00 : f32
    %268 = vector.broadcast %cst_180 : f32 to vector<8x64xf32>
    %269 = arith.subf %268, %262 : vector<8x64xf32>
    %270 = arith.mulf %269, %267 : vector<8x64xf32>
    %271 = arith.mulf %262, %214 : vector<8x64xf32>
    %272 = arith.addf %270, %271 : vector<8x64xf32>
    %cst_181 = arith.constant dense<0.000000e+00> : vector<8x128xf32>
    %273 = tpu.matmul %214, %97, %cst_181 {dimension_numbers = #tpu.dot_dimension_numbers<[1], [0], [0], [1], [0, 0, 1, 1], [], []>} : vector<8x64xf32>, vector<64x128xf32>, vector<8x128xf32> -> vector<8x128xf32>
    %c0_182 = arith.constant 0 : index
    %c0_183 = arith.constant 0 : index
    %274 = vector.load %arg14[%c0_182, %c0_183] : memref<1x128xf32, #tpu.memory_space<vmem>>, vector<1x128xf32>
    %275 = vector.broadcast %274 : vector<1x128xf32> to vector<8x128xf32>
    %276 = arith.addf %273, %275 : vector<8x128xf32>
    %c0_184 = arith.constant 0 : index
    %c0_185 = arith.constant 0 : index
    %277 = vector.load %arg13[%c0_184, %c0_185] : memref<32x128xf32, #tpu.memory_space<vmem>>, vector<32x128xf32>
    %cst_186 = arith.constant dense<0.000000e+00> : vector<8x128xf32>
    %278 = tpu.matmul %243, %277, %cst_186 {dimension_numbers = #tpu.dot_dimension_numbers<[1], [0], [0], [1], [0, 0, 1, 1], [], []>} : vector<8x32xf32>, vector<32x128xf32>, vector<8x128xf32> -> vector<8x128xf32>
    %c0_187 = arith.constant 0 : index
    %c0_188 = arith.constant 0 : index
    %279 = vector.load %arg15[%c0_187, %c0_188] : memref<1x128xf32, #tpu.memory_space<vmem>>, vector<1x128xf32>
    %280 = vector.broadcast %279 : vector<1x128xf32> to vector<8x128xf32>
    %281 = arith.addf %278, %280 : vector<8x128xf32>
    %282 = vector.extract_strided_slice %276 {offsets = [0, 0], sizes = [8, 64], strides = [1, 1]} : vector<8x128xf32> to vector<8x64xf32>
    %283 = vector.extract_strided_slice %281 {offsets = [0, 0], sizes = [8, 64], strides = [1, 1]} : vector<8x128xf32> to vector<8x64xf32>
    %284 = arith.addf %282, %283 : vector<8x64xf32>
    %285 = arith.negf %284 : vector<8x64xf32>
    %286 = math.exp %285 : vector<8x64xf32>
    %cst_189 = arith.constant 1.000000e+00 : f32
    %287 = vector.broadcast %cst_189 : f32 to vector<8x64xf32>
    %288 = arith.addf %287, %286 : vector<8x64xf32>
    %289 = arith.divf %287, %288 : vector<8x64xf32>
    %290 = vector.extract_strided_slice %289 {offsets = [0, 0], sizes = [8, 32], strides = [1, 1]} : vector<8x64xf32> to vector<8x32xf32>
    %291 = vector.extract_strided_slice %289 {offsets = [0, 32], sizes = [8, 32], strides = [1, 1]} : vector<8x64xf32> to vector<8x32xf32>
    %292 = vector.extract_strided_slice %276 {offsets = [0, 64], sizes = [8, 32], strides = [1, 1]} : vector<8x128xf32> to vector<8x32xf32>
    %293 = vector.extract_strided_slice %281 {offsets = [0, 64], sizes = [8, 32], strides = [1, 1]} : vector<8x128xf32> to vector<8x32xf32>
    %294 = arith.mulf %290, %293 : vector<8x32xf32>
    %295 = arith.addf %292, %294 : vector<8x32xf32>
    %296 = math.tanh %295 : vector<8x32xf32>
    %cst_190 = arith.constant 1.000000e+00 : f32
    %297 = vector.broadcast %cst_190 : f32 to vector<8x32xf32>
    %298 = arith.subf %297, %291 : vector<8x32xf32>
    %299 = arith.mulf %298, %296 : vector<8x32xf32>
    %300 = arith.mulf %291, %243 : vector<8x32xf32>
    %301 = arith.addf %299, %300 : vector<8x32xf32>
    %c4_i32 = arith.constant 4 : i32
    %c8_i32_191 = arith.constant 8 : i32
    %302 = arith.muli %c4_i32, %c8_i32_191 : i32
    %303 = tpu.assume_multiple %302, 8 : i32
    %304 = arith.index_cast %303 : i32 to index
    %c0_192 = arith.constant 0 : index
    %305 = vector.load %arg22[%304, %c0_192] : memref<64x192xf32, #tpu.memory_space<vmem>>, vector<8x192xf32>
    %c0_193 = arith.constant 0 : index
    %c0_194 = arith.constant 0 : index
    %306 = vector.load %arg9[%c0_193, %c0_194] : memref<64x192xf32, #tpu.memory_space<vmem>>, vector<64x192xf32>
    %cst_195 = arith.constant dense<0.000000e+00> : vector<8x192xf32>
    %307 = tpu.matmul %272, %306, %cst_195 {dimension_numbers = #tpu.dot_dimension_numbers<[1], [0], [0], [1], [0, 0, 1, 1], [], []>} : vector<8x64xf32>, vector<64x192xf32>, vector<8x192xf32> -> vector<8x192xf32>
    %c0_196 = arith.constant 0 : index
    %c0_197 = arith.constant 0 : index
    %308 = vector.load %arg11[%c0_196, %c0_197] : memref<1x192xf32, #tpu.memory_space<vmem>>, vector<1x192xf32>
    %309 = vector.broadcast %308 : vector<1x192xf32> to vector<8x192xf32>
    %310 = arith.addf %307, %309 : vector<8x192xf32>
    %311 = vector.extract_strided_slice %305 {offsets = [0, 0], sizes = [8, 128], strides = [1, 1]} : vector<8x192xf32> to vector<8x128xf32>
    %312 = vector.extract_strided_slice %310 {offsets = [0, 0], sizes = [8, 128], strides = [1, 1]} : vector<8x192xf32> to vector<8x128xf32>
    %313 = arith.addf %311, %312 : vector<8x128xf32>
    %314 = arith.negf %313 : vector<8x128xf32>
    %315 = math.exp %314 : vector<8x128xf32>
    %cst_198 = arith.constant 1.000000e+00 : f32
    %316 = vector.broadcast %cst_198 : f32 to vector<8x128xf32>
    %317 = arith.addf %316, %315 : vector<8x128xf32>
    %318 = arith.divf %316, %317 : vector<8x128xf32>
    %319 = vector.extract_strided_slice %318 {offsets = [0, 0], sizes = [8, 64], strides = [1, 1]} : vector<8x128xf32> to vector<8x64xf32>
    %320 = vector.extract_strided_slice %318 {offsets = [0, 64], sizes = [8, 64], strides = [1, 1]} : vector<8x128xf32> to vector<8x64xf32>
    %321 = vector.extract_strided_slice %305 {offsets = [0, 128], sizes = [8, 64], strides = [1, 1]} : vector<8x192xf32> to vector<8x64xf32>
    %322 = vector.extract_strided_slice %310 {offsets = [0, 128], sizes = [8, 64], strides = [1, 1]} : vector<8x192xf32> to vector<8x64xf32>
    %323 = arith.mulf %319, %322 : vector<8x64xf32>
    %324 = arith.addf %321, %323 : vector<8x64xf32>
    %325 = math.tanh %324 : vector<8x64xf32>
    %cst_199 = arith.constant 1.000000e+00 : f32
    %326 = vector.broadcast %cst_199 : f32 to vector<8x64xf32>
    %327 = arith.subf %326, %320 : vector<8x64xf32>
    %328 = arith.mulf %327, %325 : vector<8x64xf32>
    %329 = arith.mulf %320, %272 : vector<8x64xf32>
    %330 = arith.addf %328, %329 : vector<8x64xf32>
    %cst_200 = arith.constant dense<0.000000e+00> : vector<8x128xf32>
    %331 = tpu.matmul %272, %97, %cst_200 {dimension_numbers = #tpu.dot_dimension_numbers<[1], [0], [0], [1], [0, 0, 1, 1], [], []>} : vector<8x64xf32>, vector<64x128xf32>, vector<8x128xf32> -> vector<8x128xf32>
    %c0_201 = arith.constant 0 : index
    %c0_202 = arith.constant 0 : index
    %332 = vector.load %arg14[%c0_201, %c0_202] : memref<1x128xf32, #tpu.memory_space<vmem>>, vector<1x128xf32>
    %333 = vector.broadcast %332 : vector<1x128xf32> to vector<8x128xf32>
    %334 = arith.addf %331, %333 : vector<8x128xf32>
    %c0_203 = arith.constant 0 : index
    %c0_204 = arith.constant 0 : index
    %335 = vector.load %arg13[%c0_203, %c0_204] : memref<32x128xf32, #tpu.memory_space<vmem>>, vector<32x128xf32>
    %cst_205 = arith.constant dense<0.000000e+00> : vector<8x128xf32>
    %336 = tpu.matmul %301, %335, %cst_205 {dimension_numbers = #tpu.dot_dimension_numbers<[1], [0], [0], [1], [0, 0, 1, 1], [], []>} : vector<8x32xf32>, vector<32x128xf32>, vector<8x128xf32> -> vector<8x128xf32>
    %c0_206 = arith.constant 0 : index
    %c0_207 = arith.constant 0 : index
    %337 = vector.load %arg15[%c0_206, %c0_207] : memref<1x128xf32, #tpu.memory_space<vmem>>, vector<1x128xf32>
    %338 = vector.broadcast %337 : vector<1x128xf32> to vector<8x128xf32>
    %339 = arith.addf %336, %338 : vector<8x128xf32>
    %340 = vector.extract_strided_slice %334 {offsets = [0, 0], sizes = [8, 64], strides = [1, 1]} : vector<8x128xf32> to vector<8x64xf32>
    %341 = vector.extract_strided_slice %339 {offsets = [0, 0], sizes = [8, 64], strides = [1, 1]} : vector<8x128xf32> to vector<8x64xf32>
    %342 = arith.addf %340, %341 : vector<8x64xf32>
    %343 = arith.negf %342 : vector<8x64xf32>
    %344 = math.exp %343 : vector<8x64xf32>
    %cst_208 = arith.constant 1.000000e+00 : f32
    %345 = vector.broadcast %cst_208 : f32 to vector<8x64xf32>
    %346 = arith.addf %345, %344 : vector<8x64xf32>
    %347 = arith.divf %345, %346 : vector<8x64xf32>
    %348 = vector.extract_strided_slice %347 {offsets = [0, 0], sizes = [8, 32], strides = [1, 1]} : vector<8x64xf32> to vector<8x32xf32>
    %349 = vector.extract_strided_slice %347 {offsets = [0, 32], sizes = [8, 32], strides = [1, 1]} : vector<8x64xf32> to vector<8x32xf32>
    %350 = vector.extract_strided_slice %334 {offsets = [0, 64], sizes = [8, 32], strides = [1, 1]} : vector<8x128xf32> to vector<8x32xf32>
    %351 = vector.extract_strided_slice %339 {offsets = [0, 64], sizes = [8, 32], strides = [1, 1]} : vector<8x128xf32> to vector<8x32xf32>
    %352 = arith.mulf %348, %351 : vector<8x32xf32>
    %353 = arith.addf %350, %352 : vector<8x32xf32>
    %354 = math.tanh %353 : vector<8x32xf32>
    %cst_209 = arith.constant 1.000000e+00 : f32
    %355 = vector.broadcast %cst_209 : f32 to vector<8x32xf32>
    %356 = arith.subf %355, %349 : vector<8x32xf32>
    %357 = arith.mulf %356, %354 : vector<8x32xf32>
    %358 = arith.mulf %349, %301 : vector<8x32xf32>
    %359 = arith.addf %357, %358 : vector<8x32xf32>
    %c5_i32 = arith.constant 5 : i32
    %c8_i32_210 = arith.constant 8 : i32
    %360 = arith.muli %c5_i32, %c8_i32_210 : i32
    %361 = tpu.assume_multiple %360, 8 : i32
    %362 = arith.index_cast %361 : i32 to index
    %c0_211 = arith.constant 0 : index
    %363 = vector.load %arg22[%362, %c0_211] : memref<64x192xf32, #tpu.memory_space<vmem>>, vector<8x192xf32>
    %c0_212 = arith.constant 0 : index
    %c0_213 = arith.constant 0 : index
    %364 = vector.load %arg9[%c0_212, %c0_213] : memref<64x192xf32, #tpu.memory_space<vmem>>, vector<64x192xf32>
    %cst_214 = arith.constant dense<0.000000e+00> : vector<8x192xf32>
    %365 = tpu.matmul %330, %364, %cst_214 {dimension_numbers = #tpu.dot_dimension_numbers<[1], [0], [0], [1], [0, 0, 1, 1], [], []>} : vector<8x64xf32>, vector<64x192xf32>, vector<8x192xf32> -> vector<8x192xf32>
    %c0_215 = arith.constant 0 : index
    %c0_216 = arith.constant 0 : index
    %366 = vector.load %arg11[%c0_215, %c0_216] : memref<1x192xf32, #tpu.memory_space<vmem>>, vector<1x192xf32>
    %367 = vector.broadcast %366 : vector<1x192xf32> to vector<8x192xf32>
    %368 = arith.addf %365, %367 : vector<8x192xf32>
    %369 = vector.extract_strided_slice %363 {offsets = [0, 0], sizes = [8, 128], strides = [1, 1]} : vector<8x192xf32> to vector<8x128xf32>
    %370 = vector.extract_strided_slice %368 {offsets = [0, 0], sizes = [8, 128], strides = [1, 1]} : vector<8x192xf32> to vector<8x128xf32>
    %371 = arith.addf %369, %370 : vector<8x128xf32>
    %372 = arith.negf %371 : vector<8x128xf32>
    %373 = math.exp %372 : vector<8x128xf32>
    %cst_217 = arith.constant 1.000000e+00 : f32
    %374 = vector.broadcast %cst_217 : f32 to vector<8x128xf32>
    %375 = arith.addf %374, %373 : vector<8x128xf32>
    %376 = arith.divf %374, %375 : vector<8x128xf32>
    %377 = vector.extract_strided_slice %376 {offsets = [0, 0], sizes = [8, 64], strides = [1, 1]} : vector<8x128xf32> to vector<8x64xf32>
    %378 = vector.extract_strided_slice %376 {offsets = [0, 64], sizes = [8, 64], strides = [1, 1]} : vector<8x128xf32> to vector<8x64xf32>
    %379 = vector.extract_strided_slice %363 {offsets = [0, 128], sizes = [8, 64], strides = [1, 1]} : vector<8x192xf32> to vector<8x64xf32>
    %380 = vector.extract_strided_slice %368 {offsets = [0, 128], sizes = [8, 64], strides = [1, 1]} : vector<8x192xf32> to vector<8x64xf32>
    %381 = arith.mulf %377, %380 : vector<8x64xf32>
    %382 = arith.addf %379, %381 : vector<8x64xf32>
    %383 = math.tanh %382 : vector<8x64xf32>
    %cst_218 = arith.constant 1.000000e+00 : f32
    %384 = vector.broadcast %cst_218 : f32 to vector<8x64xf32>
    %385 = arith.subf %384, %378 : vector<8x64xf32>
    %386 = arith.mulf %385, %383 : vector<8x64xf32>
    %387 = arith.mulf %378, %330 : vector<8x64xf32>
    %388 = arith.addf %386, %387 : vector<8x64xf32>
    %cst_219 = arith.constant dense<0.000000e+00> : vector<8x128xf32>
    %389 = tpu.matmul %330, %97, %cst_219 {dimension_numbers = #tpu.dot_dimension_numbers<[1], [0], [0], [1], [0, 0, 1, 1], [], []>} : vector<8x64xf32>, vector<64x128xf32>, vector<8x128xf32> -> vector<8x128xf32>
    %c0_220 = arith.constant 0 : index
    %c0_221 = arith.constant 0 : index
    %390 = vector.load %arg14[%c0_220, %c0_221] : memref<1x128xf32, #tpu.memory_space<vmem>>, vector<1x128xf32>
    %391 = vector.broadcast %390 : vector<1x128xf32> to vector<8x128xf32>
    %392 = arith.addf %389, %391 : vector<8x128xf32>
    %c0_222 = arith.constant 0 : index
    %c0_223 = arith.constant 0 : index
    %393 = vector.load %arg13[%c0_222, %c0_223] : memref<32x128xf32, #tpu.memory_space<vmem>>, vector<32x128xf32>
    %cst_224 = arith.constant dense<0.000000e+00> : vector<8x128xf32>
    %394 = tpu.matmul %359, %393, %cst_224 {dimension_numbers = #tpu.dot_dimension_numbers<[1], [0], [0], [1], [0, 0, 1, 1], [], []>} : vector<8x32xf32>, vector<32x128xf32>, vector<8x128xf32> -> vector<8x128xf32>
    %c0_225 = arith.constant 0 : index
    %c0_226 = arith.constant 0 : index
    %395 = vector.load %arg15[%c0_225, %c0_226] : memref<1x128xf32, #tpu.memory_space<vmem>>, vector<1x128xf32>
    %396 = vector.broadcast %395 : vector<1x128xf32> to vector<8x128xf32>
    %397 = arith.addf %394, %396 : vector<8x128xf32>
    %398 = vector.extract_strided_slice %392 {offsets = [0, 0], sizes = [8, 64], strides = [1, 1]} : vector<8x128xf32> to vector<8x64xf32>
    %399 = vector.extract_strided_slice %397 {offsets = [0, 0], sizes = [8, 64], strides = [1, 1]} : vector<8x128xf32> to vector<8x64xf32>
    %400 = arith.addf %398, %399 : vector<8x64xf32>
    %401 = arith.negf %400 : vector<8x64xf32>
    %402 = math.exp %401 : vector<8x64xf32>
    %cst_227 = arith.constant 1.000000e+00 : f32
    %403 = vector.broadcast %cst_227 : f32 to vector<8x64xf32>
    %404 = arith.addf %403, %402 : vector<8x64xf32>
    %405 = arith.divf %403, %404 : vector<8x64xf32>
    %406 = vector.extract_strided_slice %405 {offsets = [0, 0], sizes = [8, 32], strides = [1, 1]} : vector<8x64xf32> to vector<8x32xf32>
    %407 = vector.extract_strided_slice %405 {offsets = [0, 32], sizes = [8, 32], strides = [1, 1]} : vector<8x64xf32> to vector<8x32xf32>
    %408 = vector.extract_strided_slice %392 {offsets = [0, 64], sizes = [8, 32], strides = [1, 1]} : vector<8x128xf32> to vector<8x32xf32>
    %409 = vector.extract_strided_slice %397 {offsets = [0, 64], sizes = [8, 32], strides = [1, 1]} : vector<8x128xf32> to vector<8x32xf32>
    %410 = arith.mulf %406, %409 : vector<8x32xf32>
    %411 = arith.addf %408, %410 : vector<8x32xf32>
    %412 = math.tanh %411 : vector<8x32xf32>
    %cst_228 = arith.constant 1.000000e+00 : f32
    %413 = vector.broadcast %cst_228 : f32 to vector<8x32xf32>
    %414 = arith.subf %413, %407 : vector<8x32xf32>
    %415 = arith.mulf %414, %412 : vector<8x32xf32>
    %416 = arith.mulf %407, %359 : vector<8x32xf32>
    %417 = arith.addf %415, %416 : vector<8x32xf32>
    %c6_i32 = arith.constant 6 : i32
    %c8_i32_229 = arith.constant 8 : i32
    %418 = arith.muli %c6_i32, %c8_i32_229 : i32
    %419 = tpu.assume_multiple %418, 8 : i32
    %420 = arith.index_cast %419 : i32 to index
    %c0_230 = arith.constant 0 : index
    %421 = vector.load %arg22[%420, %c0_230] : memref<64x192xf32, #tpu.memory_space<vmem>>, vector<8x192xf32>
    %c0_231 = arith.constant 0 : index
    %c0_232 = arith.constant 0 : index
    %422 = vector.load %arg9[%c0_231, %c0_232] : memref<64x192xf32, #tpu.memory_space<vmem>>, vector<64x192xf32>
    %cst_233 = arith.constant dense<0.000000e+00> : vector<8x192xf32>
    %423 = tpu.matmul %388, %422, %cst_233 {dimension_numbers = #tpu.dot_dimension_numbers<[1], [0], [0], [1], [0, 0, 1, 1], [], []>} : vector<8x64xf32>, vector<64x192xf32>, vector<8x192xf32> -> vector<8x192xf32>
    %c0_234 = arith.constant 0 : index
    %c0_235 = arith.constant 0 : index
    %424 = vector.load %arg11[%c0_234, %c0_235] : memref<1x192xf32, #tpu.memory_space<vmem>>, vector<1x192xf32>
    %425 = vector.broadcast %424 : vector<1x192xf32> to vector<8x192xf32>
    %426 = arith.addf %423, %425 : vector<8x192xf32>
    %427 = vector.extract_strided_slice %421 {offsets = [0, 0], sizes = [8, 128], strides = [1, 1]} : vector<8x192xf32> to vector<8x128xf32>
    %428 = vector.extract_strided_slice %426 {offsets = [0, 0], sizes = [8, 128], strides = [1, 1]} : vector<8x192xf32> to vector<8x128xf32>
    %429 = arith.addf %427, %428 : vector<8x128xf32>
    %430 = arith.negf %429 : vector<8x128xf32>
    %431 = math.exp %430 : vector<8x128xf32>
    %cst_236 = arith.constant 1.000000e+00 : f32
    %432 = vector.broadcast %cst_236 : f32 to vector<8x128xf32>
    %433 = arith.addf %432, %431 : vector<8x128xf32>
    %434 = arith.divf %432, %433 : vector<8x128xf32>
    %435 = vector.extract_strided_slice %434 {offsets = [0, 0], sizes = [8, 64], strides = [1, 1]} : vector<8x128xf32> to vector<8x64xf32>
    %436 = vector.extract_strided_slice %434 {offsets = [0, 64], sizes = [8, 64], strides = [1, 1]} : vector<8x128xf32> to vector<8x64xf32>
    %437 = vector.extract_strided_slice %421 {offsets = [0, 128], sizes = [8, 64], strides = [1, 1]} : vector<8x192xf32> to vector<8x64xf32>
    %438 = vector.extract_strided_slice %426 {offsets = [0, 128], sizes = [8, 64], strides = [1, 1]} : vector<8x192xf32> to vector<8x64xf32>
    %439 = arith.mulf %435, %438 : vector<8x64xf32>
    %440 = arith.addf %437, %439 : vector<8x64xf32>
    %441 = math.tanh %440 : vector<8x64xf32>
    %cst_237 = arith.constant 1.000000e+00 : f32
    %442 = vector.broadcast %cst_237 : f32 to vector<8x64xf32>
    %443 = arith.subf %442, %436 : vector<8x64xf32>
    %444 = arith.mulf %443, %441 : vector<8x64xf32>
    %445 = arith.mulf %436, %388 : vector<8x64xf32>
    %446 = arith.addf %444, %445 : vector<8x64xf32>
    %cst_238 = arith.constant dense<0.000000e+00> : vector<8x128xf32>
    %447 = tpu.matmul %388, %97, %cst_238 {dimension_numbers = #tpu.dot_dimension_numbers<[1], [0], [0], [1], [0, 0, 1, 1], [], []>} : vector<8x64xf32>, vector<64x128xf32>, vector<8x128xf32> -> vector<8x128xf32>
    %c0_239 = arith.constant 0 : index
    %c0_240 = arith.constant 0 : index
    %448 = vector.load %arg14[%c0_239, %c0_240] : memref<1x128xf32, #tpu.memory_space<vmem>>, vector<1x128xf32>
    %449 = vector.broadcast %448 : vector<1x128xf32> to vector<8x128xf32>
    %450 = arith.addf %447, %449 : vector<8x128xf32>
    %c0_241 = arith.constant 0 : index
    %c0_242 = arith.constant 0 : index
    %451 = vector.load %arg13[%c0_241, %c0_242] : memref<32x128xf32, #tpu.memory_space<vmem>>, vector<32x128xf32>
    %cst_243 = arith.constant dense<0.000000e+00> : vector<8x128xf32>
    %452 = tpu.matmul %417, %451, %cst_243 {dimension_numbers = #tpu.dot_dimension_numbers<[1], [0], [0], [1], [0, 0, 1, 1], [], []>} : vector<8x32xf32>, vector<32x128xf32>, vector<8x128xf32> -> vector<8x128xf32>
    %c0_244 = arith.constant 0 : index
    %c0_245 = arith.constant 0 : index
    %453 = vector.load %arg15[%c0_244, %c0_245] : memref<1x128xf32, #tpu.memory_space<vmem>>, vector<1x128xf32>
    %454 = vector.broadcast %453 : vector<1x128xf32> to vector<8x128xf32>
    %455 = arith.addf %452, %454 : vector<8x128xf32>
    %456 = vector.extract_strided_slice %450 {offsets = [0, 0], sizes = [8, 64], strides = [1, 1]} : vector<8x128xf32> to vector<8x64xf32>
    %457 = vector.extract_strided_slice %455 {offsets = [0, 0], sizes = [8, 64], strides = [1, 1]} : vector<8x128xf32> to vector<8x64xf32>
    %458 = arith.addf %456, %457 : vector<8x64xf32>
    %459 = arith.negf %458 : vector<8x64xf32>
    %460 = math.exp %459 : vector<8x64xf32>
    %cst_246 = arith.constant 1.000000e+00 : f32
    %461 = vector.broadcast %cst_246 : f32 to vector<8x64xf32>
    %462 = arith.addf %461, %460 : vector<8x64xf32>
    %463 = arith.divf %461, %462 : vector<8x64xf32>
    %464 = vector.extract_strided_slice %463 {offsets = [0, 0], sizes = [8, 32], strides = [1, 1]} : vector<8x64xf32> to vector<8x32xf32>
    %465 = vector.extract_strided_slice %463 {offsets = [0, 32], sizes = [8, 32], strides = [1, 1]} : vector<8x64xf32> to vector<8x32xf32>
    %466 = vector.extract_strided_slice %450 {offsets = [0, 64], sizes = [8, 32], strides = [1, 1]} : vector<8x128xf32> to vector<8x32xf32>
    %467 = vector.extract_strided_slice %455 {offsets = [0, 64], sizes = [8, 32], strides = [1, 1]} : vector<8x128xf32> to vector<8x32xf32>
    %468 = arith.mulf %464, %467 : vector<8x32xf32>
    %469 = arith.addf %466, %468 : vector<8x32xf32>
    %470 = math.tanh %469 : vector<8x32xf32>
    %cst_247 = arith.constant 1.000000e+00 : f32
    %471 = vector.broadcast %cst_247 : f32 to vector<8x32xf32>
    %472 = arith.subf %471, %465 : vector<8x32xf32>
    %473 = arith.mulf %472, %470 : vector<8x32xf32>
    %474 = arith.mulf %465, %417 : vector<8x32xf32>
    %475 = arith.addf %473, %474 : vector<8x32xf32>
    %c7_i32 = arith.constant 7 : i32
    %c8_i32_248 = arith.constant 8 : i32
    %476 = arith.muli %c7_i32, %c8_i32_248 : i32
    %477 = tpu.assume_multiple %476, 8 : i32
    %478 = arith.index_cast %477 : i32 to index
    %c0_249 = arith.constant 0 : index
    %479 = vector.load %arg22[%478, %c0_249] : memref<64x192xf32, #tpu.memory_space<vmem>>, vector<8x192xf32>
    %c0_250 = arith.constant 0 : index
    %c0_251 = arith.constant 0 : index
    %480 = vector.load %arg9[%c0_250, %c0_251] : memref<64x192xf32, #tpu.memory_space<vmem>>, vector<64x192xf32>
    %cst_252 = arith.constant dense<0.000000e+00> : vector<8x192xf32>
    %481 = tpu.matmul %446, %480, %cst_252 {dimension_numbers = #tpu.dot_dimension_numbers<[1], [0], [0], [1], [0, 0, 1, 1], [], []>} : vector<8x64xf32>, vector<64x192xf32>, vector<8x192xf32> -> vector<8x192xf32>
    %c0_253 = arith.constant 0 : index
    %c0_254 = arith.constant 0 : index
    %482 = vector.load %arg11[%c0_253, %c0_254] : memref<1x192xf32, #tpu.memory_space<vmem>>, vector<1x192xf32>
    %483 = vector.broadcast %482 : vector<1x192xf32> to vector<8x192xf32>
    %484 = arith.addf %481, %483 : vector<8x192xf32>
    %485 = vector.extract_strided_slice %479 {offsets = [0, 0], sizes = [8, 128], strides = [1, 1]} : vector<8x192xf32> to vector<8x128xf32>
    %486 = vector.extract_strided_slice %484 {offsets = [0, 0], sizes = [8, 128], strides = [1, 1]} : vector<8x192xf32> to vector<8x128xf32>
    %487 = arith.addf %485, %486 : vector<8x128xf32>
    %488 = arith.negf %487 : vector<8x128xf32>
    %489 = math.exp %488 : vector<8x128xf32>
    %cst_255 = arith.constant 1.000000e+00 : f32
    %490 = vector.broadcast %cst_255 : f32 to vector<8x128xf32>
    %491 = arith.addf %490, %489 : vector<8x128xf32>
    %492 = arith.divf %490, %491 : vector<8x128xf32>
    %493 = vector.extract_strided_slice %492 {offsets = [0, 0], sizes = [8, 64], strides = [1, 1]} : vector<8x128xf32> to vector<8x64xf32>
    %494 = vector.extract_strided_slice %492 {offsets = [0, 64], sizes = [8, 64], strides = [1, 1]} : vector<8x128xf32> to vector<8x64xf32>
    %495 = vector.extract_strided_slice %479 {offsets = [0, 128], sizes = [8, 64], strides = [1, 1]} : vector<8x192xf32> to vector<8x64xf32>
    %496 = vector.extract_strided_slice %484 {offsets = [0, 128], sizes = [8, 64], strides = [1, 1]} : vector<8x192xf32> to vector<8x64xf32>
    %497 = arith.mulf %493, %496 : vector<8x64xf32>
    %498 = arith.addf %495, %497 : vector<8x64xf32>
    %499 = math.tanh %498 : vector<8x64xf32>
    %cst_256 = arith.constant 1.000000e+00 : f32
    %500 = vector.broadcast %cst_256 : f32 to vector<8x64xf32>
    %501 = arith.subf %500, %494 : vector<8x64xf32>
    %502 = arith.mulf %501, %499 : vector<8x64xf32>
    %503 = arith.mulf %494, %446 : vector<8x64xf32>
    %504 = arith.addf %502, %503 : vector<8x64xf32>
    %cst_257 = arith.constant dense<0.000000e+00> : vector<8x128xf32>
    %505 = tpu.matmul %446, %97, %cst_257 {dimension_numbers = #tpu.dot_dimension_numbers<[1], [0], [0], [1], [0, 0, 1, 1], [], []>} : vector<8x64xf32>, vector<64x128xf32>, vector<8x128xf32> -> vector<8x128xf32>
    %c0_258 = arith.constant 0 : index
    %c0_259 = arith.constant 0 : index
    %506 = vector.load %arg14[%c0_258, %c0_259] : memref<1x128xf32, #tpu.memory_space<vmem>>, vector<1x128xf32>
    %507 = vector.broadcast %506 : vector<1x128xf32> to vector<8x128xf32>
    %508 = arith.addf %505, %507 : vector<8x128xf32>
    %c0_260 = arith.constant 0 : index
    %c0_261 = arith.constant 0 : index
    %509 = vector.load %arg13[%c0_260, %c0_261] : memref<32x128xf32, #tpu.memory_space<vmem>>, vector<32x128xf32>
    %cst_262 = arith.constant dense<0.000000e+00> : vector<8x128xf32>
    %510 = tpu.matmul %475, %509, %cst_262 {dimension_numbers = #tpu.dot_dimension_numbers<[1], [0], [0], [1], [0, 0, 1, 1], [], []>} : vector<8x32xf32>, vector<32x128xf32>, vector<8x128xf32> -> vector<8x128xf32>
    %c0_263 = arith.constant 0 : index
    %c0_264 = arith.constant 0 : index
    %511 = vector.load %arg15[%c0_263, %c0_264] : memref<1x128xf32, #tpu.memory_space<vmem>>, vector<1x128xf32>
    %512 = vector.broadcast %511 : vector<1x128xf32> to vector<8x128xf32>
    %513 = arith.addf %510, %512 : vector<8x128xf32>
    %514 = vector.extract_strided_slice %508 {offsets = [0, 0], sizes = [8, 64], strides = [1, 1]} : vector<8x128xf32> to vector<8x64xf32>
    %515 = vector.extract_strided_slice %513 {offsets = [0, 0], sizes = [8, 64], strides = [1, 1]} : vector<8x128xf32> to vector<8x64xf32>
    %516 = arith.addf %514, %515 : vector<8x64xf32>
    %517 = arith.negf %516 : vector<8x64xf32>
    %518 = math.exp %517 : vector<8x64xf32>
    %cst_265 = arith.constant 1.000000e+00 : f32
    %519 = vector.broadcast %cst_265 : f32 to vector<8x64xf32>
    %520 = arith.addf %519, %518 : vector<8x64xf32>
    %521 = arith.divf %519, %520 : vector<8x64xf32>
    %522 = vector.extract_strided_slice %521 {offsets = [0, 0], sizes = [8, 32], strides = [1, 1]} : vector<8x64xf32> to vector<8x32xf32>
    %523 = vector.extract_strided_slice %521 {offsets = [0, 32], sizes = [8, 32], strides = [1, 1]} : vector<8x64xf32> to vector<8x32xf32>
    %524 = vector.extract_strided_slice %508 {offsets = [0, 64], sizes = [8, 32], strides = [1, 1]} : vector<8x128xf32> to vector<8x32xf32>
    %525 = vector.extract_strided_slice %513 {offsets = [0, 64], sizes = [8, 32], strides = [1, 1]} : vector<8x128xf32> to vector<8x32xf32>
    %526 = arith.mulf %522, %525 : vector<8x32xf32>
    %527 = arith.addf %524, %526 : vector<8x32xf32>
    %528 = math.tanh %527 : vector<8x32xf32>
    %cst_266 = arith.constant 1.000000e+00 : f32
    %529 = vector.broadcast %cst_266 : f32 to vector<8x32xf32>
    %530 = arith.subf %529, %523 : vector<8x32xf32>
    %531 = arith.mulf %530, %528 : vector<8x32xf32>
    %532 = arith.mulf %523, %475 : vector<8x32xf32>
    %533 = arith.addf %531, %532 : vector<8x32xf32>
    %c7_i32_267 = arith.constant 7 : i32
    %cst_268 = arith.constant dense<0.000000e+00> : vector<8x128xf32>
    %534 = tpu.matmul %504, %97, %cst_268 {dimension_numbers = #tpu.dot_dimension_numbers<[1], [0], [0], [1], [0, 0, 1, 1], [], []>} : vector<8x64xf32>, vector<64x128xf32>, vector<8x128xf32> -> vector<8x128xf32>
    %c0_269 = arith.constant 0 : index
    %c0_270 = arith.constant 0 : index
    %535 = vector.load %arg14[%c0_269, %c0_270] : memref<1x128xf32, #tpu.memory_space<vmem>>, vector<1x128xf32>
    %536 = vector.broadcast %535 : vector<1x128xf32> to vector<8x128xf32>
    %537 = arith.addf %534, %536 : vector<8x128xf32>
    %c0_271 = arith.constant 0 : index
    %c0_272 = arith.constant 0 : index
    %538 = vector.load %arg13[%c0_271, %c0_272] : memref<32x128xf32, #tpu.memory_space<vmem>>, vector<32x128xf32>
    %cst_273 = arith.constant dense<0.000000e+00> : vector<8x128xf32>
    %539 = tpu.matmul %533, %538, %cst_273 {dimension_numbers = #tpu.dot_dimension_numbers<[1], [0], [0], [1], [0, 0, 1, 1], [], []>} : vector<8x32xf32>, vector<32x128xf32>, vector<8x128xf32> -> vector<8x128xf32>
    %c0_274 = arith.constant 0 : index
    %c0_275 = arith.constant 0 : index
    %540 = vector.load %arg15[%c0_274, %c0_275] : memref<1x128xf32, #tpu.memory_space<vmem>>, vector<1x128xf32>
    %541 = vector.broadcast %540 : vector<1x128xf32> to vector<8x128xf32>
    %542 = arith.addf %539, %541 : vector<8x128xf32>
    %543 = vector.extract_strided_slice %537 {offsets = [0, 0], sizes = [8, 64], strides = [1, 1]} : vector<8x128xf32> to vector<8x64xf32>
    %544 = vector.extract_strided_slice %542 {offsets = [0, 0], sizes = [8, 64], strides = [1, 1]} : vector<8x128xf32> to vector<8x64xf32>
    %545 = arith.addf %543, %544 : vector<8x64xf32>
    %546 = arith.negf %545 : vector<8x64xf32>
    %547 = math.exp %546 : vector<8x64xf32>
    %cst_276 = arith.constant 1.000000e+00 : f32
    %548 = vector.broadcast %cst_276 : f32 to vector<8x64xf32>
    %549 = arith.addf %548, %547 : vector<8x64xf32>
    %550 = arith.divf %548, %549 : vector<8x64xf32>
    %551 = vector.extract_strided_slice %550 {offsets = [0, 0], sizes = [8, 32], strides = [1, 1]} : vector<8x64xf32> to vector<8x32xf32>
    %552 = vector.extract_strided_slice %550 {offsets = [0, 32], sizes = [8, 32], strides = [1, 1]} : vector<8x64xf32> to vector<8x32xf32>
    %553 = vector.extract_strided_slice %537 {offsets = [0, 64], sizes = [8, 32], strides = [1, 1]} : vector<8x128xf32> to vector<8x32xf32>
    %554 = vector.extract_strided_slice %542 {offsets = [0, 64], sizes = [8, 32], strides = [1, 1]} : vector<8x128xf32> to vector<8x32xf32>
    %555 = arith.mulf %551, %554 : vector<8x32xf32>
    %556 = arith.addf %553, %555 : vector<8x32xf32>
    %557 = math.tanh %556 : vector<8x32xf32>
    %cst_277 = arith.constant 1.000000e+00 : f32
    %558 = vector.broadcast %cst_277 : f32 to vector<8x32xf32>
    %559 = arith.subf %558, %552 : vector<8x32xf32>
    %560 = arith.mulf %559, %557 : vector<8x32xf32>
    %561 = arith.mulf %552, %533 : vector<8x32xf32>
    %562 = arith.addf %560, %561 : vector<8x32xf32>
    %c0_278 = arith.constant 0 : index
    %c0_279 = arith.constant 0 : index
    %563 = vector.load %arg16[%c0_278, %c0_279] : memref<32x8xf32, #tpu.memory_space<vmem>>, vector<32x8xf32>
    %cst_280 = arith.constant dense<0.000000e+00> : vector<8x8xf32>
    %564 = tpu.matmul %562, %563, %cst_280 {dimension_numbers = #tpu.dot_dimension_numbers<[1], [0], [0], [1], [0, 0, 1, 1], [], []>} : vector<8x32xf32>, vector<32x8xf32>, vector<8x8xf32> -> vector<8x8xf32>
    %c0_281 = arith.constant 0 : index
    %c0_282 = arith.constant 0 : index
    %565 = vector.load %arg17[%c0_281, %c0_282] : memref<1x8xf32, #tpu.memory_space<vmem>>, vector<1x8xf32>
    %566 = vector.broadcast %565 : vector<1x8xf32> to vector<8x8xf32>
    %567 = arith.addf %564, %566 : vector<8x8xf32>
    %c0_283 = arith.constant 0 : index
    %c0_284 = arith.constant 0 : index
    %568 = vector.load %arg18[%c0_283, %c0_284] : memref<8x8xf32, #tpu.memory_space<vmem>>, vector<8x8xf32>
    tpu.vector_store %arg18[%c0_283, %c0_284], %567 {strides = array<i32>} : memref<8x8xf32, #tpu.memory_space<vmem>>, vector<8x8xf32>,
    return
  }
  func.func @transform_0(%arg0: i32) -> (i32, i32, i32) {
    %c0_i32 = arith.constant 0 : i32
    %c0_i32_0 = arith.constant 0 : i32
    %c0_i32_1 = arith.constant 0 : i32
    return %c0_i32, %arg0, %c0_i32_0 : i32, i32, i32
  }
  func.func @transform_1(%arg0: i32) -> (i32, i32, i32) {
    %c0_i32 = arith.constant 0 : i32
    %c0_i32_0 = arith.constant 0 : i32
    %c0_i32_1 = arith.constant 0 : i32
    %c0_i32_2 = arith.constant 0 : i32
    return %c0_i32, %c0_i32_0, %c0_i32_1 : i32, i32, i32
  }
  func.func @transform_2(%arg0: i32) -> (i32, i32) {
    %c0_i32 = arith.constant 0 : i32
    %c0_i32_0 = arith.constant 0 : i32
    %c0_i32_1 = arith.constant 0 : i32
    return %c0_i32, %c0_i32_0 : i32, i32
  }
  func.func @transform_3(%arg0: i32) -> (i32, i32, i32) {
    %c0_i32 = arith.constant 0 : i32
    %c0_i32_0 = arith.constant 0 : i32
    %c0_i32_1 = arith.constant 0 : i32
    %c0_i32_2 = arith.constant 0 : i32
    return %c0_i32, %c0_i32_0, %c0_i32_1 : i32, i32, i32
  }
  func.func @transform_4(%arg0: i32) -> (i32, i32) {
    %c0_i32 = arith.constant 0 : i32
    %c0_i32_0 = arith.constant 0 : i32
    %c0_i32_1 = arith.constant 0 : i32
    return %c0_i32, %c0_i32_0 : i32, i32
  }
  func.func @transform_5(%arg0: i32) -> (i32, i32, i32) {
    %c0_i32 = arith.constant 0 : i32
    %c0_i32_0 = arith.constant 0 : i32
    %c0_i32_1 = arith.constant 0 : i32
    %c0_i32_2 = arith.constant 0 : i32
    return %c0_i32, %c0_i32_0, %c0_i32_1 : i32, i32, i32
  }
  func.func @transform_6(%arg0: i32) -> (i32, i32) {
    %c0_i32 = arith.constant 0 : i32
    %c0_i32_0 = arith.constant 0 : i32
    %c0_i32_1 = arith.constant 0 : i32
    return %c0_i32, %c0_i32_0 : i32, i32
  }
  func.func @transform_7(%arg0: i32) -> (i32, i32) {
    %c0_i32 = arith.constant 0 : i32
    %c0_i32_0 = arith.constant 0 : i32
    %c0_i32_1 = arith.constant 0 : i32
    return %c0_i32, %c0_i32_0 : i32, i32
  }
  func.func @transform_8(%arg0: i32) -> (i32, i32) {
    %c0_i32 = arith.constant 0 : i32
    %c0_i32_0 = arith.constant 0 : i32
    %c0_i32_1 = arith.constant 0 : i32
    return %c0_i32, %c0_i32_0 : i32, i32
  }
  func.func @transform_9(%arg0: i32) -> (i32, i32) {
    %c0_i32 = arith.constant 0 : i32
    %c0_i32_0 = arith.constant 0 : i32
    %c0_i32_1 = arith.constant 0 : i32
    return %c0_i32, %c0_i32_0 : i32, i32
  }
  func.func @transform_10(%arg0: i32) -> (i32, i32) {
    %c0_i32 = arith.constant 0 : i32
    %c0_i32_0 = arith.constant 0 : i32
    %c0_i32_1 = arith.constant 0 : i32
    return %c0_i32, %c0_i32_0 : i32, i32
  }
  func.func @transform_11(%arg0: i32) -> (i32, i32) {
    %c0_i32 = arith.constant 0 : i32
    %c0_i32_0 = arith.constant 0 : i32
    %c0_i32_1 = arith.constant 0 : i32
    return %c0_i32, %c0_i32_0 : i32, i32
  }
  func.func @transform_12(%arg0: i32) -> (i32, i32) {
    %c0_i32 = arith.constant 0 : i32
    %c0_i32_0 = arith.constant 0 : i32
    %c0_i32_1 = arith.constant 0 : i32
    return %c0_i32, %c0_i32_0 : i32, i32
  }
  func.func @transform_13(%arg0: i32) -> (i32, i32) {
    %c0_i32 = arith.constant 0 : i32
    %c0_i32_0 = arith.constant 0 : i32
    %c0_i32_1 = arith.constant 0 : i32
    return %c0_i32, %c0_i32_0 : i32, i32
  }
  func.func @transform_14(%arg0: i32) -> (i32, i32) {
    %c0_i32 = arith.constant 0 : i32
    %c0_i32_0 = arith.constant 0 : i32
    %c0_i32_1 = arith.constant 0 : i32
    return %c0_i32, %c0_i32_0 : i32, i32
  }
  func.func @transform_15(%arg0: i32) -> (i32, i32) {
    %c0_i32 = arith.constant 0 : i32
    %c0_i32_0 = arith.constant 0 : i32
    %c0_i32_1 = arith.constant 0 : i32
    return %c0_i32, %c0_i32_0 : i32, i32
  }
  func.func @transform_16(%arg0: i32) -> (i32, i32) {
    %c0_i32 = arith.constant 0 : i32
    %c0_i32_0 = arith.constant 0 : i32
    %c0_i32_1 = arith.constant 0 : i32
    return %c0_i32, %c0_i32_0 : i32, i32
  }
  func.func @transform_17(%arg0: i32) -> (i32, i32) {
    %c0_i32 = arith.constant 0 : i32
    %c0_i32_0 = arith.constant 0 : i32
    return %arg0, %c0_i32 : i32, i32
  }
}

</mosaic_0001>

<llo_original>
// kernel: stgp_forward.1
$region0: #{stgp_forward.1}
  #allocation0 [shape = 'u32[]', space=smem, size = 0x4, offset = 0x4, fixed_abs, tag = 'smem constant byte address 0x4 - core index']
  #allocation1 [shape = 'u32[144,128]{1,0:T(1,128)}', space=vmem, size = 0x12000, scoped, tag = 'internal scratch']
  #allocation2 [shape = 'f32[80,4]{1,0:T(8,128)}', space=vmem, size = 0xa000, scoped, tag = 'scratch operand']
  #allocation3 [shape = 'f32[96,64]{1,0:T(8,128)}', space=vmem, size = 0xc000, scoped, tag = 'scratch operand']
  #allocation4 [shape = 'f32[128,64]{1,0:T(8,128)}', space=vmem, size = 0x10000, scoped, tag = 'scratch operand']
  #allocation5 [shape = 'f32[64,192]{1,0:T(8,128)}', space=vmem, size = 0x10000, scoped, tag = 'scratch operand']
  %s0 = inlined_call_operand.vmem [shape: f32[8,8,4], index: 0, kind: input, shape index: {}]
  %s1 = inlined_call_operand.hbm [shape: f32[3,4,64], index: 1, kind: input, shape index: {}]
  %s2 = inlined_call_operand.hbm [shape: f32[1,64], index: 2, kind: input, shape index: {}]
  %s3 = inlined_call_operand.vmem [shape: f32[3,64,64], index: 3, kind: input, shape index: {}]
  %s4 = inlined_call_operand.hbm [shape: f32[1,64], index: 4, kind: input, shape index: {}]
  %s5 = inlined_call_operand.hbm [shape: f32[3,64,64], index: 5, kind: input, shape index: {}]
  %s6 = inlined_call_operand.hbm [shape: f32[1,64], index: 6, kind: input, shape index: {}]
  %s7 = inlined_call_operand.vmem [shape: f32[64,192], index: 7, kind: input, shape index: {}]
  %s8 = inlined_call_operand.hbm [shape: f32[64,192], index: 8, kind: input, shape index: {}]
  %s9 = inlined_call_operand.hbm [shape: f32[1,192], index: 9, kind: input, shape index: {}]
  %s10 = inlined_call_operand.hbm [shape: f32[1,192], index: 10, kind: input, shape index: {}]
  %s11 = inlined_call_operand.vmem [shape: f32[64,128], index: 11, kind: input, shape index: {}]
  %s12 = inlined_call_operand.vmem [shape: f32[32,128], index: 12, kind: input, shape index: {}]
  %s13 = inlined_call_operand.vmem [shape: f32[1,128], index: 13, kind: input, shape index: {}]
  %s14 = inlined_call_operand.vmem [shape: f32[1,128], index: 14, kind: input, shape index: {}]
  %s15 = inlined_call_operand.vmem [shape: f32[32,8], index: 15, kind: input, shape index: {}]
  %s16 = inlined_call_operand.hbm [shape: f32[1,8], index: 16, kind: input, shape index: {}]
  %s17 = inlined_call_operand.vmem [shape: f32[8,8], index: 17, kind: output, shape index: {}]
  %s18 = sld [smem:[#allocation0]]
  $region114: #{stgp_forward.1} parent=0
    _
  %s20 = ssub.s32 1, %s18
  %s21 = scalar_select 0, %s20, %s18
  $region1: #{stgp_forward.1} parent=0
    #allocation6 [shape = 'u8[6144]{0}', space=vmem, size = 0x1800, scoped, tag = 'input window, operand 1, single buffered']
    #allocation7 [shape = 's32[1]{0}', space=sflag, size = 0x4, scoped, tag = 'scoped memory for stgp_forward.1']
    #allocation8 [shape = 'u8[512]{0}', space=vmem, size = 0x400, scoped, tag = 'input window, operand 2, single buffered']
    #allocation9 [shape = 's32[1]{0}', space=sflag, size = 0x4, scoped, tag = 'scoped memory for stgp_forward.1']
    #allocation10 [shape = 'u8[512]{0}', space=vmem, size = 0x400, scoped, tag = 'input window, operand 4, single buffered']
    #allocation11 [shape = 'u8[98304]{0}', space=vmem, size = 0x18000, scoped, tag = 'input window, operand 5, single buffered']
    #allocation12 [shape = 's32[1]{0}', space=sflag, size = 0x4, scoped, tag = 'scoped memory for stgp_forward.1']
    #allocation13 [shape = 'u8[512]{0}', space=vmem, size = 0x400, scoped, tag = 'input window, operand 6, single buffered']
    #allocation14 [shape = 'u8[65536]{0}', space=vmem, size = 0x10000, scoped, tag = 'input window, operand 8, single buffered']
    #allocation15 [shape = 's32[1]{0}', space=sflag, size = 0x4, scoped, tag = 'scoped memory for stgp_forward.1']
    #allocation16 [shape = 'u8[1024]{0}', space=vmem, size = 0x400, scoped, tag = 'input window, operand 9, single buffered']
    #allocation17 [shape = 'u8[1024]{0}', space=vmem, size = 0x400, scoped, tag = 'input window, operand 10, single buffered']
    #allocation18 [shape = 's32[1]{0}', space=sflag, size = 0x4, scoped, tag = 'scoped memory for stgp_forward.1']
    #allocation19 [shape = 'u8[512]{0}', space=vmem, size = 0x400, scoped, tag = 'input window, operand 16, single buffered']
    %22 = vsyncpa [#allocation7], 0
    %23 = vsyncpa [#allocation9], 0
    %24 = vsyncpa [#allocation12], 0
    %25 = vsyncpa [#allocation15], 0
    %26 = vsyncpa [#allocation18], 0
    // Predicated region
    $region2: #{stgp_forward.1} parent=1 // pred_check
      _
    $region3: #{stgp_forward.1} parent=1 // pred_check_branch
      %28 = sbr.rel (0) target = $region5
    $region4: #{stgp_forward.1} parent=1 // pred_region
      _
    $region5: #{stgp_forward.1} parent=1 // pred_fallthru
      _
    // Predicated region
    $region6: #{stgp_forward.1} parent=1 // pred_check
      _
    $region7: #{stgp_forward.1} parent=1 // pred_check_branch
      %30 = sbr.rel (0) target = $region9
    $region8: #{stgp_forward.1} parent=1 // pred_region
      %s32 = ssub.s32 192, 192
      %33 = vsyncadd [#allocation7], %s32
      %s34 = sshll.u32 [#allocation6], 4
      %s35 = int_to_ptr.vmem [resolvable:$true] %s34
      %40 = dma.hbm_to_vmem [thread:$0]  %s1, 192, %s35, [#allocation7], 64, 64, 4
    $region9: #{stgp_forward.1} parent=1 // pred_fallthru
      _
    // Predicated region
    $region10: #{stgp_forward.1} parent=1 // pred_check
      _
    $region11: #{stgp_forward.1} parent=1 // pred_check_branch
      %42 = sbr.rel (0) target = $region13
    $region12: #{stgp_forward.1} parent=1 // pred_region
      %s44 = ssub.s32 16, 16
      %45 = vsyncadd [#allocation9], %s44
      %s47 = sshll.u32 [#allocation8], 4
      %s48 = int_to_ptr.vmem [resolvable:$true] %s47
      %50 = dma.hbm_to_vmem [thread:$0]  %s2, 16, %s48, [#allocation9]
    $region13: #{stgp_forward.1} parent=1 // pred_fallthru
      _
    // Predicated region
    $region14: #{stgp_forward.1} parent=1 // pred_check
      _
    $region15: #{stgp_forward.1} parent=1 // pred_check_branch
      %52 = sbr.rel (0) target = $region17
    $region16: #{stgp_forward.1} parent=1 // pred_region
      _
    $region17: #{stgp_forward.1} parent=1 // pred_fallthru
      _
    // Predicated region
    $region18: #{stgp_forward.1} parent=1 // pred_check
      _
    $region19: #{stgp_forward.1} parent=1 // pred_check_branch
      %54 = sbr.rel (0) target = $region21
    $region20: #{stgp_forward.1} parent=1 // pred_region
      %s56 = ssub.s32 16, 16
      %57 = vsyncadd [#allocation9], %s56
      %s59 = sshll.u32 [#allocation10], 4
      %s60 = int_to_ptr.vmem [resolvable:$true] %s59
      %62 = dma.hbm_to_vmem [thread:$0]  %s4, 16, %s60, [#allocation9]
    $region21: #{stgp_forward.1} parent=1 // pred_fallthru
      _
    // Predicated region
    $region22: #{stgp_forward.1} parent=1 // pred_check
      _
    $region23: #{stgp_forward.1} parent=1 // pred_check_branch
      %64 = sbr.rel (0) target = $region25
    $region24: #{stgp_forward.1} parent=1 // pred_region
      %s66 = ssub.s32 3072, 3072
      %67 = vsyncadd [#allocation12], %s66
      %s68 = sshll.u32 [#allocation11], 4
      %s69 = int_to_ptr.vmem [resolvable:$true] %s68
      %74 = dma.hbm_to_vmem [thread:$0]  %s5, 3072, %s69, [#allocation12], 128, 128, 8
    $region25: #{stgp_forward.1} parent=1 // pred_fallthru
      _
    // Predicated region
    $region26: #{stgp_forward.1} parent=1 // pred_check
      _
    $region27: #{stgp_forward.1} parent=1 // pred_check_branch
      %76 = sbr.rel (0) target = $region29
    $region28: #{stgp_forward.1} parent=1 // pred_region
      %s78 = ssub.s32 16, 16
      %79 = vsyncadd [#allocation12], %s78
      %s81 = sshll.u32 [#allocation13], 4
      %s82 = int_to_ptr.vmem [resolvable:$true] %s81
      %84 = dma.hbm_to_vmem [thread:$0]  %s6, 16, %s82, [#allocation12]
    $region29: #{stgp_forward.1} parent=1 // pred_fallthru
      _
    // Predicated region
    $region30: #{stgp_forward.1} parent=1 // pred_check
      _
    $region31: #{stgp_forward.1} parent=1 // pred_check_branch
      %86 = sbr.rel (0) target = $region33
    $region32: #{stgp_forward.1} parent=1 // pred_region
      _
    $region33: #{stgp_forward.1} parent=1 // pred_fallthru
      _
    // Predicated region
    $region34: #{stgp_forward.1} parent=1 // pred_check
      _
    $region35: #{stgp_forward.1} parent=1 // pred_check_branch
      %88 = sbr.rel (0) target = $region37
    $region36: #{stgp_forward.1} parent=1 // pred_region
      %s90 = ssub.s32 2048, 2048
      %91 = vsyncadd [#allocation15], %s90
      %s92 = sshll.u32 [#allocation14], 4
      %s93 = int_to_ptr.vmem [resolvable:$true] %s92
      %98 = dma.hbm_to_vmem [thread:$0]  %s8, 2048, %s93, [#allocation15], 256, 256, 16
    $region37: #{stgp_forward.1} parent=1 // pred_fallthru
      _
    // Predicated region
    $region38: #{stgp_forward.1} parent=1 // pred_check
      _
    $region39: #{stgp_forward.1} parent=1 // pred_check_branch
      %100 = sbr.rel (0) target = $region41
    $region40: #{stgp_forward.1} parent=1 // pred_region
      %s102 = ssub.s32 32, 32
      %103 = vsyncadd [#allocation15], %s102
      %s105 = sshll.u32 [#allocation16], 4
      %s106 = int_to_ptr.vmem [resolvable:$true] %s105
      %108 = dma.hbm_to_vmem [thread:$0]  %s9, 32, %s106, [#allocation15]
    $region41: #{stgp_forward.1} parent=1 // pred_fallthru
      _
    // Predicated region
    $region42: #{stgp_forward.1} parent=1 // pred_check
      _
    $region43: #{stgp_forward.1} parent=1 // pred_check_branch
      %110 = sbr.rel (0) target = $region45
    $region44: #{stgp_forward.1} parent=1 // pred_region
      %s112 = ssub.s32 32, 32
      %113 = vsyncadd [#allocation18], %s112
      %s115 = sshll.u32 [#allocation17], 4
      %s116 = int_to_ptr.vmem [resolvable:$true] %s115
      %118 = dma.hbm_to_vmem [thread:$0]  %s10, 32, %s116, [#allocation18]
    $region45: #{stgp_forward.1} parent=1 // pred_fallthru
      _
    // Predicated region
    $region46: #{stgp_forward.1} parent=1 // pred_check
      _
    $region47: #{stgp_forward.1} parent=1 // pred_check_branch
      %120 = sbr.rel (0) target = $region49
    $region48: #{stgp_forward.1} parent=1 // pred_region
      _
    $region49: #{stgp_forward.1} parent=1 // pred_fallthru
      _
    // Predicated region
    $region50: #{stgp_forward.1} parent=1 // pred_check
      _
    $region51: #{stgp_forward.1} parent=1 // pred_check_branch
      %122 = sbr.rel (0) target = $region53
    $region52: #{stgp_forward.1} parent=1 // pred_region
      _
    $region53: #{stgp_forward.1} parent=1 // pred_fallthru
      _
    // Predicated region
    $region54: #{stgp_forward.1} parent=1 // pred_check
      _
    $region55: #{stgp_forward.1} parent=1 // pred_check_branch
      %124 = sbr.rel (0) target = $region57
    $region56: #{stgp_forward.1} parent=1 // pred_region
      _
    $region57: #{stgp_forward.1} parent=1 // pred_fallthru
      _
    // Predicated region
    $region58: #{stgp_forward.1} parent=1 // pred_check
      _
    $region59: #{stgp_forward.1} parent=1 // pred_check_branch
      %126 = sbr.rel (0) target = $region61
    $region60: #{stgp_forward.1} parent=1 // pred_region
      _
    $region61: #{stgp_forward.1} parent=1 // pred_fallthru
      _
    // Predicated region
    $region62: #{stgp_forward.1} parent=1 // pred_check
      _
    $region63: #{stgp_forward.1} parent=1 // pred_check_branch
      %128 = sbr.rel (0) target = $region65
    $region64: #{stgp_forward.1} parent=1 // pred_region
      _
    $region65: #{stgp_forward.1} parent=1 // pred_fallthru
      _
    // Predicated region
    $region66: #{stgp_forward.1} parent=1 // pred_check
      _
    $region67: #{stgp_forward.1} parent=1 // pred_check_branch
      %130 = sbr.rel (0) target = $region69
    $region68: #{stgp_forward.1} parent=1 // pred_region
      %s132 = ssub.s32 16, 16
      %133 = vsyncadd [#allocation18], %s132
      %s135 = sshll.u32 [#allocation19], 4
      %s136 = int_to_ptr.vmem [resolvable:$true] %s135
      %138 = dma.hbm_to_vmem [thread:$0]  %s16, 16, %s136, [#allocation18]
    $region69: #{stgp_forward.1} parent=1 // pred_fallthru
      _
    // Predicated region
    $region70: #{stgp_forward.1} parent=1 // pred_check
      _
    $region71: #{stgp_forward.1} parent=1 // pred_check_branch
      %140 = sbr.rel (0) target = $region73
    $region72: #{stgp_forward.1} parent=1 // pred_region
      %141 = dma.done [#allocation7], 192
    $region73: #{stgp_forward.1} parent=1 // pred_fallthru
      _
    // Predicated region
    $region74: #{stgp_forward.1} parent=1 // pred_check
      _
    $region75: #{stgp_forward.1} parent=1 // pred_check_branch
      %143 = sbr.rel (0) target = $region77
    $region76: #{stgp_forward.1} parent=1 // pred_region
      %144 = dma.done [#allocation9], 16
    $region77: #{stgp_forward.1} parent=1 // pred_fallthru
      _
    // Predicated region
    $region78: #{stgp_forward.1} parent=1 // pred_check
      _
    $region79: #{stgp_forward.1} parent=1 // pred_check_branch
      %146 = sbr.rel (0) target = $region81
    $region80: #{stgp_forward.1} parent=1 // pred_region
      %147 = dma.done [#allocation9], 16
    $region81: #{stgp_forward.1} parent=1 // pred_fallthru
      _
    // Predicated region
    $region82: #{stgp_forward.1} parent=1 // pred_check
      _
    $region83: #{stgp_forward.1} parent=1 // pred_check_branch
      %149 = sbr.rel (0) target = $region85
    $region84: #{stgp_forward.1} parent=1 // pred_region
      %150 = dma.done [#allocation12], 3072
    $region85: #{stgp_forward.1} parent=1 // pred_fallthru
      _
    // Predicated region
    $region86: #{stgp_forward.1} parent=1 // pred_check
      _
    $region87: #{stgp_forward.1} parent=1 // pred_check_branch
      %152 = sbr.rel (0) target = $region89
    $region88: #{stgp_forward.1} parent=1 // pred_region
      %153 = dma.done [#allocation12], 16
    $region89: #{stgp_forward.1} parent=1 // pred_fallthru
      _
    // Predicated region
    $region90: #{stgp_forward.1} parent=1 // pred_check
      _
    $region91: #{stgp_forward.1} parent=1 // pred_check_branch
      %155 = sbr.rel (0) target = $region93
    $region92: #{stgp_forward.1} parent=1 // pred_region
      %156 = dma.done [#allocation15], 2048
    $region93: #{stgp_forward.1} parent=1 // pred_fallthru
      _
    // Predicated region
    $region94: #{stgp_forward.1} parent=1 // pred_check
      _
    $region95: #{stgp_forward.1} parent=1 // pred_check_branch
      %158 = sbr.rel (0) target = $region97
    $region96: #{stgp_forward.1} parent=1 // pred_region
      %159 = dma.done [#allocation15], 32
    $region97: #{stgp_forward.1} parent=1 // pred_fallthru
      _
    // Predicated region
    $region98: #{stgp_forward.1} parent=1 // pred_check
      _
    $region99: #{stgp_forward.1} parent=1 // pred_check_branch
      %161 = sbr.rel (0) target = $region101
    $region100: #{stgp_forward.1} parent=1 // pred_region
      %162 = dma.done [#allocation18], 32
    $region101: #{stgp_forward.1} parent=1 // pred_fallthru
      _
    // Predicated region
    $region102: #{stgp_forward.1} parent=1 // pred_check
      _
    $region103: #{stgp_forward.1} parent=1 // pred_check_branch
      %164 = sbr.rel (0) target = $region105
    $region104: #{stgp_forward.1} parent=1 // pred_region
      %165 = dma.done [#allocation18], 16
    $region105: #{stgp_forward.1} parent=1 // pred_fallthru
      _
    %vm166 = vcmask 31744
    %167 = vst.msk [vmem:[#allocation2] sm:$0xff] %vm166, 0.0
    %168 = vst.msk [vmem:[#allocation2 + $0x48] sm:$0xff] %vm166, 0.0
    %vm169 = vcmask 523264
    %170 = vst.msk [vmem:[#allocation3] sm:$0xff] %vm169, 0.0
    %171 = vst.msk [vmem:[#allocation3 + $0x8] sm:$0xff] %vm169, 0.0
    %172 = vst.msk [vmem:[#allocation3 + $0x50] sm:$0xff] %vm169, 0.0
    %173 = vst.msk [vmem:[#allocation3 + $0x58] sm:$0xff] %vm169, 0.0
    %174 = vst.msk [vmem:[#allocation4] sm:$0xff] %vm169, 0.0
    %175 = vst.msk [vmem:[#allocation4 + $0x8] sm:$0xff] %vm169, 0.0
    %176 = vst.msk [vmem:[#allocation4 + $0x10] sm:$0xff] %vm169, 0.0
    %177 = vst.msk [vmem:[#allocation4 + $0x18] sm:$0xff] %vm169, 0.0
    %178 = vst.msk [vmem:[#allocation4 + $0x60] sm:$0xff] %vm169, 0.0
    %179 = vst.msk [vmem:[#allocation4 + $0x68] sm:$0xff] %vm169, 0.0
    %180 = vst.msk [vmem:[#allocation4 + $0x70] sm:$0xff] %vm169, 0.0
    %181 = vst.msk [vmem:[#allocation4 + $0x78] sm:$0xff] %vm169, 0.0
    %v182 = vld [vmem:[%s0] sm:$0xff]
    %v183 = vld [vmem:[%s0 + $0x8] sm:$0xff]
    %v184 = vld [vmem:[%s0 + $0x10] sm:$0xff]
    %v185 = vld [vmem:[%s0 + $0x18] sm:$0xff]
    %v186 = vld [vmem:[%s0 + $0x20] sm:$0xff]
    %v187 = vld [vmem:[%s0 + $0x28] sm:$0xff]
    %v188 = vld [vmem:[%s0 + $0x30] sm:$0xff]
    %v189 = vld [vmem:[%s0 + $0x38] sm:$0xff]
    %190 = vst.msk [vmem:[#allocation2 + $0x8] sm:$0xff] %vm166, %v182
    %191 = vst.msk [vmem:[#allocation2 + $0x10] sm:$0xff] %vm166, %v183
    %192 = vst.msk [vmem:[#allocation2 + $0x18] sm:$0xff] %vm166, %v184
    %193 = vst.msk [vmem:[#allocation2 + $0x20] sm:$0xff] %vm166, %v185
    %194 = vst.msk [vmem:[#allocation2 + $0x28] sm:$0xff] %vm166, %v186
    %195 = vst.msk [vmem:[#allocation2 + $0x30] sm:$0xff] %vm166, %v187
    %196 = vst.msk [vmem:[#allocation2 + $0x38] sm:$0xff] %vm166, %v188
    %197 = vst.msk [vmem:[#allocation2 + $0x40] sm:$0xff] %vm166, %v189
    %v198 = vld [vmem:[#allocation2] sm:$0xff]
    %v199 = vld [vmem:[#allocation2 + $0x8] sm:$0xff]
    %v200 = vld [vmem:[#allocation2 + $0x10] sm:$0xff]
    %v201 = vld [vmem:[#allocation2 + $0x18] sm:$0xff]
    %v202 = vld [vmem:[#allocation2 + $0x20] sm:$0xff]
    %v203 = vld [vmem:[#allocation2 + $0x28] sm:$0xff]
    %v204 = vld [vmem:[#allocation2 + $0x30] sm:$0xff]
    %v205 = vld [vmem:[#allocation2 + $0x38] sm:$0xff]
    %v206 = vld [vmem:[#allocation6] sm:$0xf]
    %v207 = vld [vmem:[#allocation8] sm:$0x1]
    %v209 = vlaneseq
    %v210 = vshrl.u32 %v209, 7
    %v211 = vsub.s32 0, %v210
    %v212 = vrot.slane %v207, %v211
    %v215 = vsel %vm166, %v198, 0
    %v218 = vsel %vm166, %v199, 0
    %v221 = vsel %vm166, %v200, 0
    %v224 = vsel %vm166, %v201, 0
    %v227 = vsel %vm166, %v202, 0
    %v230 = vsel %vm166, %v203, 0
    %v233 = vsel %vm166, %v204, 0
    %v236 = vsel %vm166, %v205, 0
    %vm238 = vcmask 1043456
    %v240 = vsel %vm238, %v206, 0
    %242 = vmatprep.subr.mxu0 0.0
    %243 = vmatpush1.msra.mxu0 %v240
    %244 = vmatprep.subr.mxu0 0.0
    %245 = vmatpush1.msra.mxu0 0.0
    %246 = vmatprep.subr.mxu0 0.0
    %247 = vmatpush1.msra.mxu0 0.0
    %248 = vmatprep.subr.mxu0 0.0
    %249 = vmatpush1.msra.mxu0 0.0
    %250 = vmatprep.subr.mxu0 0.0
    %251 = vmatpush1.msra.mxu0 0.0
    %252 = vmatprep.subr.mxu0 0.0
    %253 = vmatpush1.msra.mxu0 0.0
    %254 = vmatprep.subr.mxu0 0.0
    %255 = vmatpush1.msra.mxu0 0.0
    %256 = vmatprep.subr.mxu0 0.0
    %257 = vmatpush1.msra.mxu0 0.0
    %258 = vmatprep.subr.mxu0 0.0
    %259 = vmatpush1.msra.mxu0 0.0
    %260 = vmatprep.subr.mxu0 0.0
    %261 = vmatpush1.msra.mxu0 0.0
    %262 = vmatprep.subr.mxu0 0.0
    %263 = vmatpush1.msra.mxu0 0.0
    %264 = vmatprep.subr.mxu0 0.0
    %265 = vmatpush1.msra.mxu0 0.0
    %266 = vmatprep.subr.mxu0 0.0
    %267 = vmatpush1.msra.mxu0 0.0
    %268 = vmatprep.subr.mxu0 0.0
    %269 = vmatpush1.msra.mxu0 0.0
    %270 = vmatprep.subr.mxu0 0.0
    %271 = vmatpush1.msra.mxu0 0.0
    %272 = vmatprep.subr.mxu0 0.0
    %273 = vmatpush1.msra.mxu0 0.0
    %274 = vmatprep.subr.mxu0 0.0
    %275 = vmatpush1.msra.mxu0 0.0
    %276 = vmatprep.subr.mxu0 0.0
    %277 = vmatpush1.msra.mxu0 0.0
    %278 = vmatprep.subr.mxu0 0.0
    %279 = vmatpush1.msra.mxu0 0.0
    %280 = vmatprep.subr.mxu0 0.0
    %281 = vmatpush1.msra.mxu0 0.0
    %282 = vmatprep.subr.mxu0 0.0
    %283 = vmatpush1.msra.mxu0 0.0
    %284 = vmatprep.subr.mxu0 0.0
    %285 = vmatpush1.msra.mxu0 0.0
    %286 = vmatprep.subr.mxu0 0.0
    %287 = vmatpush1.msra.mxu0 0.0
    %288 = vmatprep.subr.mxu0 0.0
    %289 = vmatpush1.msra.mxu0 0.0
    %290 = vmatprep.subr.mxu0 0.0
    %291 = vmatpush1.msra.mxu0 0.0
    %292 = vmatprep.subr.mxu0 0.0
    %293 = vmatpush1.msra.mxu0 0.0
    %294 = vmatprep.subr.mxu0 0.0
    %295 = vmatpush1.msra.mxu0 0.0
    %296 = vmatprep.subr.mxu0 0.0
    %297 = vmatpush1.msra.mxu0 0.0
    %298 = vmatprep.subr.mxu0 0.0
    %299 = vmatpush1.msra.mxu0 0.0
    %300 = vmatprep.subr.mxu0 0.0
    %301 = vmatpush1.msra.mxu0 0.0
    %302 = vmatprep.subr.mxu0 0.0
    %303 = vmatpush1.msra.mxu0 0.0
    %304 = vmatprep.subr.mxu0 0.0
    %305 = vmatpush1.msra.mxu0 0.0
    %306 = vmatprep.mubr.f32.mxu0 0.0
    %307 = vmatmul.mubr.f32.gmra.mrb[0].mxu0 %v215
    %v308 = vpop.f32.mrb[0].mxu0
    %v309 = vadd.f32 %v212, %v308
    %v310 = vpop.f32.mrb[0].mxu0
    %311 = vmatprep.mubr.f32.mxu0 0.0
    %312 = vmatmul.mubr.f32.gmra.mrb[0].mxu0 %v218
    %v313 = vpop.f32.mrb[0].mxu0
    %v314 = vadd.f32 %v212, %v313
    %v315 = vpop.f32.mrb[0].mxu0
    %316 = vmatprep.mubr.f32.mxu0 0.0
    %317 = vmatmul.mubr.f32.gmra.mrb[0].mxu0 %v221
    %v318 = vpop.f32.mrb[0].mxu0
    %v319 = vadd.f32 %v212, %v318
    %v320 = vpop.f32.mrb[0].mxu0
    %321 = vmatprep.mubr.f32.mxu0 0.0
    %322 = vmatmul.mubr.f32.gmra.mrb[0].mxu0 %v224
    %v323 = vpop.f32.mrb[0].mxu0
    %v324 = vadd.f32 %v212, %v323
    %v325 = vpop.f32.mrb[0].mxu0
    %326 = vmatprep.mubr.f32.mxu0 0.0
    %327 = vmatmul.mubr.f32.gmra.mrb[0].mxu0 %v227
    %v328 = vpop.f32.mrb[0].mxu0
    %v329 = vadd.f32 %v212, %v328
    %v330 = vpop.f32.mrb[0].mxu0
    %331 = vmatprep.mubr.f32.mxu0 0.0
    %332 = vmatmul.mubr.f32.gmra.mrb[0].mxu0 %v230
    %v333 = vpop.f32.mrb[0].mxu0
    %v334 = vadd.f32 %v212, %v333
    %v335 = vpop.f32.mrb[0].mxu0
    %336 = vmatprep.mubr.f32.mxu0 0.0
    %337 = vmatmul.mubr.f32.gmra.mrb[0].mxu0 %v233
    %v338 = vpop.f32.mrb[0].mxu0
    %v339 = vadd.f32 %v212, %v338
    %v340 = vpop.f32.mrb[0].mxu0
    %341 = vmatprep.mubr.f32.mxu0 0.0
    %342 = vmatmul.mubr.f32.gmra.mrb[0].mxu0 %v236
    %v343 = vpop.f32.mrb[0].mxu0
    %v344 = vadd.f32 %v212, %v343
    %v345 = vpop.f32.mrb[0].mxu0
    %346 = vdwg.mxu0
    %347 = vst.msk [vmem:[#allocation3 + $0x10] sm:$0xff] %vm169, %v309
    %348 = vst.msk [vmem:[#allocation3 + $0x18] sm:$0xff] %vm169, %v314
    %349 = vst.msk [vmem:[#allocation3 + $0x20] sm:$0xff] %vm169, %v319
    %350 = vst.msk [vmem:[#allocation3 + $0x28] sm:$0xff] %vm169, %v324
    %351 = vst.msk [vmem:[#allocation3 + $0x30] sm:$0xff] %vm169, %v329
    %352 = vst.msk [vmem:[#allocation3 + $0x38] sm:$0xff] %vm169, %v334
    %353 = vst.msk [vmem:[#allocation3 + $0x40] sm:$0xff] %vm169, %v339
    %354 = vst.msk [vmem:[#allocation3 + $0x48] sm:$0xff] %vm169, %v344
    %v355 = vld [vmem:[#allocation3 + $0x10] sm:$0xff]
    %v356 = vld [vmem:[#allocation3 + $0x18] sm:$0xff]
    %v357 = vld [vmem:[#allocation3 + $0x20] sm:$0xff]
    %v358 = vld [vmem:[#allocation3 + $0x28] sm:$0xff]
    %v359 = vld [vmem:[#allocation3 + $0x30] sm:$0xff]
    %v360 = vld [vmem:[#allocation3 + $0x38] sm:$0xff]
    %v361 = vld [vmem:[#allocation3 + $0x40] sm:$0xff]
    %v362 = vld [vmem:[#allocation3 + $0x48] sm:$0xff]
    %v363 = vld [vmem:[#allocation2 + $0x8] sm:$0xff]
    %v364 = vld [vmem:[#allocation2 + $0x10] sm:$0xff]
    %v365 = vld [vmem:[#allocation2 + $0x18] sm:$0xff]
    %v366 = vld [vmem:[#allocation2 + $0x20] sm:$0xff]
    %v367 = vld [vmem:[#allocation2 + $0x28] sm:$0xff]
    %v368 = vld [vmem:[#allocation2 + $0x30] sm:$0xff]
    %v369 = vld [vmem:[#allocation2 + $0x38] sm:$0xff]
    %v370 = vld [vmem:[#allocation2 + $0x40] sm:$0xff]
    %s371 = scalar_lea.vmem [#allocation6], 4
    %v372 = vld [vmem:[%s371] sm:$0xf]
    %v374 = vsel %vm166, %v363, 0
    %v377 = vsel %vm166, %v364, 0
    %v380 = vsel %vm166, %v365, 0
    %v383 = vsel %vm166, %v366, 0
    %v386 = vsel %vm166, %v367, 0
    %v389 = vsel %vm166, %v368, 0
    %v392 = vsel %vm166, %v369, 0
    %v395 = vsel %vm166, %v370, 0
    %v398 = vsel %vm238, %v372, 0
    %400 = vmatprep.subr.mxu0 0.0
    %401 = vmatpush1.msra.mxu0 %v398
    %402 = vmatprep.subr.mxu0 0.0
    %403 = vmatpush1.msra.mxu0 0.0
    %404 = vmatprep.subr.mxu0 0.0
    %405 = vmatpush1.msra.mxu0 0.0
    %406 = vmatprep.subr.mxu0 0.0
    %407 = vmatpush1.msra.mxu0 0.0
    %408 = vmatprep.subr.mxu0 0.0
    %409 = vmatpush1.msra.mxu0 0.0
    %410 = vmatprep.subr.mxu0 0.0
    %411 = vmatpush1.msra.mxu0 0.0
    %412 = vmatprep.subr.mxu0 0.0
    %413 = vmatpush1.msra.mxu0 0.0
    %414 = vmatprep.subr.mxu0 0.0
    %415 = vmatpush1.msra.mxu0 0.0
    %416 = vmatprep.subr.mxu0 0.0
    %417 = vmatpush1.msra.mxu0 0.0
    %418 = vmatprep.subr.mxu0 0.0
    %419 = vmatpush1.msra.mxu0 0.0
    %420 = vmatprep.subr.mxu0 0.0
    %421 = vmatpush1.msra.mxu0 0.0
    %422 = vmatprep.subr.mxu0 0.0
    %423 = vmatpush1.msra.mxu0 0.0
    %424 = vmatprep.subr.mxu0 0.0
    %425 = vmatpush1.msra.mxu0 0.0
    %426 = vmatprep.subr.mxu0 0.0
    %427 = vmatpush1.msra.mxu0 0.0
    %428 = vmatprep.subr.mxu0 0.0
    %429 = vmatpush1.msra.mxu0 0.0
    %430 = vmatprep.subr.mxu0 0.0
    %431 = vmatpush1.msra.mxu0 0.0
    %432 = vmatprep.subr.mxu0 0.0
    %433 = vmatpush1.msra.mxu0 0.0
    %434 = vmatprep.subr.mxu0 0.0
    %435 = vmatpush1.msra.mxu0 0.0
    %436 = vmatprep.subr.mxu0 0.0
    %437 = vmatpush1.msra.mxu0 0.0
    %438 = vmatprep.subr.mxu0 0.0
    %439 = vmatpush1.msra.mxu0 0.0
    %440 = vmatprep.subr.mxu0 0.0
    %441 = vmatpush1.msra.mxu0 0.0
    %442 = vmatprep.subr.mxu0 0.0
    %443 = vmatpush1.msra.mxu0 0.0
    %444 = vmatprep.subr.mxu0 0.0
    %445 = vmatpush1.msra.mxu0 0.0
    %446 = vmatprep.subr.mxu0 0.0
    %447 = vmatpush1.msra.mxu0 0.0
    %448 = vmatprep.subr.mxu0 0.0
    %449 = vmatpush1.msra.mxu0 0.0
    %450 = vmatprep.subr.mxu0 0.0
    %451 = vmatpush1.msra.mxu0 0.0
    %452 = vmatprep.subr.mxu0 0.0
    %453 = vmatpush1.msra.mxu0 0.0
    %454 = vmatprep.subr.mxu0 0.0
    %455 = vmatpush1.msra.mxu0 0.0
    %456 = vmatprep.subr.mxu0 0.0
    %457 = vmatpush1.msra.mxu0 0.0
    %458 = vmatprep.subr.mxu0 0.0
    %459 = vmatpush1.msra.mxu0 0.0
    %460 = vmatprep.subr.mxu0 0.0
    %461 = vmatpush1.msra.mxu0 0.0
    %462 = vmatprep.subr.mxu0 0.0
    %463 = vmatpush1.msra.mxu0 0.0
    %464 = vmatprep.mubr.f32.mxu0 0.0
    %465 = vmatmul.mubr.f32.gmra.mrb[0].mxu0 %v374
    %v466 = vpop.f32.mrb[0].mxu0
    %v467 = vadd.f32 0.0, %v466
    %v468 = vpop.f32.mrb[0].mxu0
    %469 = vmatprep.mubr.f32.mxu0 0.0
    %470 = vmatmul.mubr.f32.gmra.mrb[0].mxu0 %v377
    %v471 = vpop.f32.mrb[0].mxu0
    %v472 = vadd.f32 0.0, %v471
    %v473 = vpop.f32.mrb[0].mxu0
    %474 = vmatprep.mubr.f32.mxu0 0.0
    %475 = vmatmul.mubr.f32.gmra.mrb[0].mxu0 %v380
    %v476 = vpop.f32.mrb[0].mxu0
    %v477 = vadd.f32 0.0, %v476
    %v478 = vpop.f32.mrb[0].mxu0
    %479 = vmatprep.mubr.f32.mxu0 0.0
    %480 = vmatmul.mubr.f32.gmra.mrb[0].mxu0 %v383
    %v481 = vpop.f32.mrb[0].mxu0
    %v482 = vadd.f32 0.0, %v481
    %v483 = vpop.f32.mrb[0].mxu0
    %484 = vmatprep.mubr.f32.mxu0 0.0
    %485 = vmatmul.mubr.f32.gmra.mrb[0].mxu0 %v386
    %v486 = vpop.f32.mrb[0].mxu0
    %v487 = vadd.f32 0.0, %v486
    %v488 = vpop.f32.mrb[0].mxu0
    %489 = vmatprep.mubr.f32.mxu0 0.0
    %490 = vmatmul.mubr.f32.gmra.mrb[0].mxu0 %v389
    %v491 = vpop.f32.mrb[0].mxu0
    %v492 = vadd.f32 0.0, %v491
    %v493 = vpop.f32.mrb[0].mxu0
    %494 = vmatprep.mubr.f32.mxu0 0.0
    %495 = vmatmul.mubr.f32.gmra.mrb[0].mxu0 %v392
    %v496 = vpop.f32.mrb[0].mxu0
    %v497 = vadd.f32 0.0, %v496
    %v498 = vpop.f32.mrb[0].mxu0
    %499 = vmatprep.mubr.f32.mxu0 0.0
    %500 = vmatmul.mubr.f32.gmra.mrb[0].mxu0 %v395
    %v501 = vpop.f32.mrb[0].mxu0
    %v502 = vadd.f32 0.0, %v501
    %v503 = vpop.f32.mrb[0].mxu0
    %504 = vdwg.mxu0
    %v505 = vadd.f32 %v355, %v467
    %v506 = vadd.f32 %v356, %v472
    %v507 = vadd.f32 %v357, %v477
    %v508 = vadd.f32 %v358, %v482
    %v509 = vadd.f32 %v359, %v487
    %v510 = vadd.f32 %v360, %v492
    %v511 = vadd.f32 %v361, %v497
    %v512 = vadd.f32 %v362, %v502
    %513 = vst.msk [vmem:[#allocation3 + $0x10] sm:$0xff] %vm169, %v505
    %514 = vst.msk [vmem:[#allocation3 + $0x18] sm:$0xff] %vm169, %v506
    %515 = vst.msk [vmem:[#allocation3 + $0x20] sm:$0xff] %vm169, %v507
    %516 = vst.msk [vmem:[#allocation3 + $0x28] sm:$0xff] %vm169, %v508
    %517 = vst.msk [vmem:[#allocation3 + $0x30] sm:$0xff] %vm169, %v509
    %518 = vst.msk [vmem:[#allocation3 + $0x38] sm:$0xff] %vm169, %v510
    %519 = vst.msk [vmem:[#allocation3 + $0x40] sm:$0xff] %vm169, %v511
    %520 = vst.msk [vmem:[#allocation3 + $0x48] sm:$0xff] %vm169, %v512
    %v521 = vld [vmem:[#allocation3 + $0x10] sm:$0xff]
    %v522 = vld [vmem:[#allocation3 + $0x18] sm:$0xff]
    %v523 = vld [vmem:[#allocation3 + $0x20] sm:$0xff]
    %v524 = vld [vmem:[#allocation3 + $0x28] sm:$0xff]
    %v525 = vld [vmem:[#allocation3 + $0x30] sm:$0xff]
    %v526 = vld [vmem:[#allocation3 + $0x38] sm:$0xff]
    %v527 = vld [vmem:[#allocation3 + $0x40] sm:$0xff]
    %v528 = vld [vmem:[#allocation3 + $0x48] sm:$0xff]
    %v529 = vld [vmem:[#allocation2 + $0x10] sm:$0xff]
    %v530 = vld [vmem:[#allocation2 + $0x18] sm:$0xff]
    %v531 = vld [vmem:[#allocation2 + $0x20] sm:$0xff]
    %v532 = vld [vmem:[#allocation2 + $0x28] sm:$0xff]
    %v533 = vld [vmem:[#allocation2 + $0x30] sm:$0xff]
    %v534 = vld [vmem:[#allocation2 + $0x38] sm:$0xff]
    %v535 = vld [vmem:[#allocation2 + $0x40] sm:$0xff]
    %v536 = vld [vmem:[#allocation2 + $0x48] sm:$0xff]
    %s537 = scalar_lea.vmem [#allocation6], 8
    %v538 = vld [vmem:[%s537] sm:$0xf]
    %v540 = vsel %vm166, %v529, 0
    %v543 = vsel %vm166, %v530, 0
    %v546 = vsel %vm166, %v531, 0
    %v549 = vsel %vm166, %v532, 0
    %v552 = vsel %vm166, %v533, 0
    %v555 = vsel %vm166, %v534, 0
    %v558 = vsel %vm166, %v535, 0
    %v561 = vsel %vm166, %v536, 0
    %v564 = vsel %vm238, %v538, 0
    %566 = vmatprep.subr.mxu0 0.0
    %567 = vmatpush1.msra.mxu0 %v564
    %568 = vmatprep.subr.mxu0 0.0
    %569 = vmatpush1.msra.mxu0 0.0
    %570 = vmatprep.subr.mxu0 0.0
    %571 = vmatpush1.msra.mxu0 0.0
    %572 = vmatprep.subr.mxu0 0.0
    %573 = vmatpush1.msra.mxu0 0.0
    %574 = vmatprep.subr.mxu0 0.0
    %575 = vmatpush1.msra.mxu0 0.0
    %576 = vmatprep.subr.mxu0 0.0
    %577 = vmatpush1.msra.mxu0 0.0
    %578 = vmatprep.subr.mxu0 0.0
    %579 = vmatpush1.msra.mxu0 0.0
    %580 = vmatprep.subr.mxu0 0.0
    %581 = vmatpush1.msra.mxu0 0.0
    %582 = vmatprep.subr.mxu0 0.0
    %583 = vmatpush1.msra.mxu0 0.0
    %584 = vmatprep.subr.mxu0 0.0
    %585 = vmatpush1.msra.mxu0 0.0
    %586 = vmatprep.subr.mxu0 0.0
    %587 = vmatpush1.msra.mxu0 0.0
    %588 = vmatprep.subr.mxu0 0.0
    %589 = vmatpush1.msra.mxu0 0.0
    %590 = vmatprep.subr.mxu0 0.0
    %591 = vmatpush1.msra.mxu0 0.0
    %592 = vmatprep.subr.mxu0 0.0
    %593 = vmatpush1.msra.mxu0 0.0
    %594 = vmatprep.subr.mxu0 0.0
    %595 = vmatpush1.msra.mxu0 0.0
    %596 = vmatprep.subr.mxu0 0.0
    %597 = vmatpush1.msra.mxu0 0.0
    %598 = vmatprep.subr.mxu0 0.0
    %599 = vmatpush1.msra.mxu0 0.0
    %600 = vmatprep.subr.mxu0 0.0
    %601 = vmatpush1.msra.mxu0 0.0
    %602 = vmatprep.subr.mxu0 0.0
    %603 = vmatpush1.msra.mxu0 0.0
    %604 = vmatprep.subr.mxu0 0.0
    %605 = vmatpush1.msra.mxu0 0.0
    %606 = vmatprep.subr.mxu0 0.0
    %607 = vmatpush1.msra.mxu0 0.0
    %608 = vmatprep.subr.mxu0 0.0
    %609 = vmatpush1.msra.mxu0 0.0
    %610 = vmatprep.subr.mxu0 0.0
    %611 = vmatpush1.msra.mxu0 0.0
    %612 = vmatprep.subr.mxu0 0.0
    %613 = vmatpush1.msra.mxu0 0.0
    %614 = vmatprep.subr.mxu0 0.0
    %615 = vmatpush1.msra.mxu0 0.0
    %616 = vmatprep.subr.mxu0 0.0
    %617 = vmatpush1.msra.mxu0 0.0
    %618 = vmatprep.subr.mxu0 0.0
    %619 = vmatpush1.msra.mxu0 0.0
    %620 = vmatprep.subr.mxu0 0.0
    %621 = vmatpush1.msra.mxu0 0.0
    %622 = vmatprep.subr.mxu0 0.0
    %623 = vmatpush1.msra.mxu0 0.0
    %624 = vmatprep.subr.mxu0 0.0
    %625 = vmatpush1.msra.mxu0 0.0
    %626 = vmatprep.subr.mxu0 0.0
    %627 = vmatpush1.msra.mxu0 0.0
    %628 = vmatprep.subr.mxu0 0.0
    %629 = vmatpush1.msra.mxu0 0.0
    %630 = vmatprep.mubr.f32.mxu0 0.0
    %631 = vmatmul.mubr.f32.gmra.mrb[0].mxu0 %v540
    %v632 = vpop.f32.mrb[0].mxu0
    %v633 = vadd.f32 0.0, %v632
    %v634 = vpop.f32.mrb[0].mxu0
    %635 = vmatprep.mubr.f32.mxu0 0.0
    %636 = vmatmul.mubr.f32.gmra.mrb[0].mxu0 %v543
    %v637 = vpop.f32.mrb[0].mxu0
    %v638 = vadd.f32 0.0, %v637
    %v639 = vpop.f32.mrb[0].mxu0
    %640 = vmatprep.mubr.f32.mxu0 0.0
    %641 = vmatmul.mubr.f32.gmra.mrb[0].mxu0 %v546
    %v642 = vpop.f32.mrb[0].mxu0
    %v643 = vadd.f32 0.0, %v642
    %v644 = vpop.f32.mrb[0].mxu0
    %645 = vmatprep.mubr.f32.mxu0 0.0
    %646 = vmatmul.mubr.f32.gmra.mrb[0].mxu0 %v549
    %v647 = vpop.f32.mrb[0].mxu0
    %v648 = vadd.f32 0.0, %v647
    %v649 = vpop.f32.mrb[0].mxu0
    %650 = vmatprep.mubr.f32.mxu0 0.0
    %651 = vmatmul.mubr.f32.gmra.mrb[0].mxu0 %v552
    %v652 = vpop.f32.mrb[0].mxu0
    %v653 = vadd.f32 0.0, %v652
    %v654 = vpop.f32.mrb[0].mxu0
    %655 = vmatprep.mubr.f32.mxu0 0.0
    %656 = vmatmul.mubr.f32.gmra.mrb[0].mxu0 %v555
    %v657 = vpop.f32.mrb[0].mxu0
    %v658 = vadd.f32 0.0, %v657
    %v659 = vpop.f32.mrb[0].mxu0
    %660 = vmatprep.mubr.f32.mxu0 0.0
    %661 = vmatmul.mubr.f32.gmra.mrb[0].mxu0 %v558
    %v662 = vpop.f32.mrb[0].mxu0
    %v663 = vadd.f32 0.0, %v662
    %v664 = vpop.f32.mrb[0].mxu0
    %665 = vmatprep.mubr.f32.mxu0 0.0
    %666 = vmatmul.mubr.f32.gmra.mrb[0].mxu0 %v561
    %v667 = vpop.f32.mrb[0].mxu0
    %v668 = vadd.f32 0.0, %v667
    %v669 = vpop.f32.mrb[0].mxu0
    %670 = vdwg.mxu0
    %v671 = vadd.f32 %v521, %v633
    %v672 = vadd.f32 %v522, %v638
    %v673 = vadd.f32 %v523, %v643
    %v674 = vadd.f32 %v524, %v648
    %v675 = vadd.f32 %v525, %v653
    %v676 = vadd.f32 %v526, %v658
    %v677 = vadd.f32 %v527, %v663
    %v678 = vadd.f32 %v528, %v668
    %679 = vst.msk [vmem:[#allocation3 + $0x10] sm:$0xff] %vm169, %v671
    %680 = vst.msk [vmem:[#allocation3 + $0x18] sm:$0xff] %vm169, %v672
    %681 = vst.msk [vmem:[#allocation3 + $0x20] sm:$0xff] %vm169, %v673
    %682 = vst.msk [vmem:[#allocation3 + $0x28] sm:$0xff] %vm169, %v674
    %683 = vst.msk [vmem:[#allocation3 + $0x30] sm:$0xff] %vm169, %v675
    %684 = vst.msk [vmem:[#allocation3 + $0x38] sm:$0xff] %vm169, %v676
    %685 = vst.msk [vmem:[#allocation3 + $0x40] sm:$0xff] %vm169, %v677
    %686 = vst.msk [vmem:[#allocation3 + $0x48] sm:$0xff] %vm169, %v678
    %v687 = vld [vmem:[#allocation3 + $0x10] sm:$0xff]
    %v688 = vld [vmem:[#allocation3 + $0x18] sm:$0xff]
    %v689 = vld [vmem:[#allocation3 + $0x20] sm:$0xff]
    %v690 = vld [vmem:[#allocation3 + $0x28] sm:$0xff]
    %v691 = vld [vmem:[#allocation3 + $0x30] sm:$0xff]
    %v692 = vld [vmem:[#allocation3 + $0x38] sm:$0xff]
    %v693 = vld [vmem:[#allocation3 + $0x40] sm:$0xff]
    %v694 = vld [vmem:[#allocation3 + $0x48] sm:$0xff]
    %v695 = vmax.f32 %v687, 0.0
    %v696 = vmax.f32 %v688, 0.0
    %v697 = vmax.f32 %v689, 0.0
    %v698 = vmax.f32 %v690, 0.0
    %v699 = vmax.f32 %v691, 0.0
    %v700 = vmax.f32 %v692, 0.0
    %v701 = vmax.f32 %v693, 0.0
    %v702 = vmax.f32 %v694, 0.0
    %703 = vst.msk [vmem:[#allocation3 + $0x10] sm:$0xff] %vm169, %v695
    %704 = vst.msk [vmem:[#allocation3 + $0x18] sm:$0xff] %vm169, %v696
    %705 = vst.msk [vmem:[#allocation3 + $0x20] sm:$0xff] %vm169, %v697
    %706 = vst.msk [vmem:[#allocation3 + $0x28] sm:$0xff] %vm169, %v698
    %707 = vst.msk [vmem:[#allocation3 + $0x30] sm:$0xff] %vm169, %v699
    %708 = vst.msk [vmem:[#allocation3 + $0x38] sm:$0xff] %vm169, %v700
    %709 = vst.msk [vmem:[#allocation3 + $0x40] sm:$0xff] %vm169, %v701
    %710 = vst.msk [vmem:[#allocation3 + $0x48] sm:$0xff] %vm169, %v702
    %v711 = vld [vmem:[#allocation3] sm:$0xff]
    %v712 = vld [vmem:[#allocation3 + $0x8] sm:$0xff]
    %v713 = vld [vmem:[#allocation3 + $0x10] sm:$0xff]
    %v714 = vld [vmem:[#allocation3 + $0x18] sm:$0xff]
    %v715 = vld [vmem:[#allocation3 + $0x20] sm:$0xff]
    %v716 = vld [vmem:[#allocation3 + $0x28] sm:$0xff]
    %v717 = vld [vmem:[#allocation3 + $0x30] sm:$0xff]
    %v718 = vld [vmem:[#allocation3 + $0x38] sm:$0xff]
    %v719 = vld [vmem:[%s3] sm:$0xff]
    %v720 = vld [vmem:[%s3 + $0x8] sm:$0xff]
    %v721 = vld [vmem:[%s3 + $0x10] sm:$0xff]
    %v722 = vld [vmem:[%s3 + $0x18] sm:$0xff]
    %v723 = vld [vmem:[%s3 + $0x20] sm:$0xff]
    %v724 = vld [vmem:[%s3 + $0x28] sm:$0xff]
    %v725 = vld [vmem:[%s3 + $0x30] sm:$0xff]
    %v726 = vld [vmem:[%s3 + $0x38] sm:$0xff]
    %v727 = vld [vmem:[#allocation10] sm:$0x1]
    %v729 = vlaneseq
    %v730 = vshrl.u32 %v729, 7
    %v731 = vsub.s32 0, %v730
    %v732 = vrot.slane %v727, %v731
    %v735 = vsel %vm169, %v711, 0
    %v738 = vsel %vm169, %v712, 0
    %v741 = vsel %vm169, %v713, 0
    %v744 = vsel %vm169, %v714, 0
    %v747 = vsel %vm169, %v715, 0
    %v750 = vsel %vm169, %v716, 0
    %v753 = vsel %vm169, %v717, 0
    %v756 = vsel %vm169, %v718, 0
    %758 = vmatprep.subr.mxu0 0.0
    %759 = vmatpush1.msra.mxu0 %v719
    %760 = vmatprep.subr.mxu0 0.0
    %761 = vmatpush1.msra.mxu0 %v720
    %762 = vmatprep.subr.mxu0 0.0
    %763 = vmatpush1.msra.mxu0 %v721
    %764 = vmatprep.subr.mxu0 0.0
    %765 = vmatpush1.msra.mxu0 %v722
    %766 = vmatprep.subr.mxu0 0.0
    %767 = vmatpush1.msra.mxu0 %v723
    %768 = vmatprep.subr.mxu0 0.0
    %769 = vmatpush1.msra.mxu0 %v724
    %770 = vmatprep.subr.mxu0 0.0
    %771 = vmatpush1.msra.mxu0 %v725
    %772 = vmatprep.subr.mxu0 0.0
    %773 = vmatpush1.msra.mxu0 %v726
    %774 = vmatprep.subr.mxu0 0.0
    %775 = vmatpush1.msra.mxu0 0.0
    %776 = vmatprep.subr.mxu0 0.0
    %777 = vmatpush1.msra.mxu0 0.0
    %778 = vmatprep.subr.mxu0 0.0
    %779 = vmatpush1.msra.mxu0 0.0
    %780 = vmatprep.subr.mxu0 0.0
    %781 = vmatpush1.msra.mxu0 0.0
    %782 = vmatprep.subr.mxu0 0.0
    %783 = vmatpush1.msra.mxu0 0.0
    %784 = vmatprep.subr.mxu0 0.0
    %785 = vmatpush1.msra.mxu0 0.0
    %786 = vmatprep.subr.mxu0 0.0
    %787 = vmatpush1.msra.mxu0 0.0
    %788 = vmatprep.subr.mxu0 0.0
    %789 = vmatpush1.msra.mxu0 0.0
    %790 = vmatprep.subr.mxu0 0.0
    %791 = vmatpush1.msra.mxu0 0.0
    %792 = vmatprep.subr.mxu0 0.0
    %793 = vmatpush1.msra.mxu0 0.0
    %794 = vmatprep.subr.mxu0 0.0
    %795 = vmatpush1.msra.mxu0 0.0
    %796 = vmatprep.subr.mxu0 0.0
    %797 = vmatpush1.msra.mxu0 0.0
    %798 = vmatprep.subr.mxu0 0.0
    %799 = vmatpush1.msra.mxu0 0.0
    %800 = vmatprep.subr.mxu0 0.0
    %801 = vmatpush1.msra.mxu0 0.0
    %802 = vmatprep.subr.mxu0 0.0
    %803 = vmatpush1.msra.mxu0 0.0
    %804 = vmatprep.subr.mxu0 0.0
    %805 = vmatpush1.msra.mxu0 0.0
    %806 = vmatprep.subr.mxu0 0.0
    %807 = vmatpush1.msra.mxu0 0.0
    %808 = vmatprep.subr.mxu0 0.0
    %809 = vmatpush1.msra.mxu0 0.0
    %810 = vmatprep.subr.mxu0 0.0
    %811 = vmatpush1.msra.mxu0 0.0
    %812 = vmatprep.subr.mxu0 0.0
    %813 = vmatpush1.msra.mxu0 0.0
    %814 = vmatprep.subr.mxu0 0.0
    %815 = vmatpush1.msra.mxu0 0.0
    %816 = vmatprep.subr.mxu0 0.0
    %817 = vmatpush1.msra.mxu0 0.0
    %818 = vmatprep.subr.mxu0 0.0
    %819 = vmatpush1.msra.mxu0 0.0
    %820 = vmatprep.subr.mxu0 0.0
    %821 = vmatpush1.msra.mxu0 0.0
    %822 = vmatprep.mubr.f32.mxu0 0.0
    %823 = vmatmul.mubr.f32.gmra.mrb[0].mxu0 %v735
    %v824 = vpop.f32.mrb[0].mxu0
    %v825 = vadd.f32 %v732, %v824
    %v826 = vpop.f32.mrb[0].mxu0
    %827 = vmatprep.mubr.f32.mxu0 0.0
    %828 = vmatmul.mubr.f32.gmra.mrb[0].mxu0 %v738
    %v829 = vpop.f32.mrb[0].mxu0
    %v830 = vadd.f32 %v732, %v829
    %v831 = vpop.f32.mrb[0].mxu0
    %832 = vmatprep.mubr.f32.mxu0 0.0
    %833 = vmatmul.mubr.f32.gmra.mrb[0].mxu0 %v741
    %v834 = vpop.f32.mrb[0].mxu0
    %v835 = vadd.f32 %v732, %v834
    %v836 = vpop.f32.mrb[0].mxu0
    %837 = vmatprep.mubr.f32.mxu0 0.0
    %838 = vmatmul.mubr.f32.gmra.mrb[0].mxu0 %v744
    %v839 = vpop.f32.mrb[0].mxu0
    %v840 = vadd.f32 %v732, %v839
    %v841 = vpop.f32.mrb[0].mxu0
    %842 = vmatprep.mubr.f32.mxu0 0.0
    %843 = vmatmul.mubr.f32.gmra.mrb[0].mxu0 %v747
    %v844 = vpop.f32.mrb[0].mxu0
    %v845 = vadd.f32 %v732, %v844
    %v846 = vpop.f32.mrb[0].mxu0
    %847 = vmatprep.mubr.f32.mxu0 0.0
    %848 = vmatmul.mubr.f32.gmra.mrb[0].mxu0 %v750
    %v849 = vpop.f32.mrb[0].mxu0
    %v850 = vadd.f32 %v732, %v849
    %v851 = vpop.f32.mrb[0].mxu0
    %852 = vmatprep.mubr.f32.mxu0 0.0
    %853 = vmatmul.mubr.f32.gmra.mrb[0].mxu0 %v753
    %v854 = vpop.f32.mrb[0].mxu0
    %v855 = vadd.f32 %v732, %v854
    %v856 = vpop.f32.mrb[0].mxu0
    %857 = vmatprep.mubr.f32.mxu0 0.0
    %858 = vmatmul.mubr.f32.gmra.mrb[0].mxu0 %v756
    %v859 = vpop.f32.mrb[0].mxu0
    %v860 = vadd.f32 %v732, %v859
    %v861 = vpop.f32.mrb[0].mxu0
    %862 = vdwg.mxu0
    %863 = vst.msk [vmem:[#allocation4 + $0x20] sm:$0xff] %vm169, %v825
    %864 = vst.msk [vmem:[#allocation4 + $0x28] sm:$0xff] %vm169, %v830
    %865 = vst.msk [vmem:[#allocation4 + $0x30] sm:$0xff] %vm169, %v835
    %866 = vst.msk [vmem:[#allocation4 + $0x38] sm:$0xff] %vm169, %v840
    %867 = vst.msk [vmem:[#allocation4 + $0x40] sm:$0xff] %vm169, %v845
    %868 = vst.msk [vmem:[#allocation4 + $0x48] sm:$0xff] %vm169, %v850
    %869 = vst.msk [vmem:[#allocation4 + $0x50] sm:$0xff] %vm169, %v855
    %870 = vst.msk [vmem:[#allocation4 + $0x58] sm:$0xff] %vm169, %v860
    %v871 = vld [vmem:[#allocation4 + $0x20] sm:$0xff]
    %v872 = vld [vmem:[#allocation4 + $0x28] sm:$0xff]
    %v873 = vld [vmem:[#allocation4 + $0x30] sm:$0xff]
    %v874 = vld [vmem:[#allocation4 + $0x38] sm:$0xff]
    %v875 = vld [vmem:[#allocation4 + $0x40] sm:$0xff]
    %v876 = vld [vmem:[#allocation4 + $0x48] sm:$0xff]
    %v877 = vld [vmem:[#allocation4 + $0x50] sm:$0xff]
    %v878 = vld [vmem:[#allocation4 + $0x58] sm:$0xff]
    %v879 = vld [vmem:[#allocation3 + $0x10] sm:$0xff]
    %v880 = vld [vmem:[#allocation3 + $0x18] sm:$0xff]
    %v881 = vld [vmem:[#allocation3 + $0x20] sm:$0xff]
    %v882 = vld [vmem:[#allocation3 + $0x28] sm:$0xff]
    %v883 = vld [vmem:[#allocation3 + $0x30] sm:$0xff]
    %v884 = vld [vmem:[#allocation3 + $0x38] sm:$0xff]
    %v885 = vld [vmem:[#allocation3 + $0x40] sm:$0xff]
    %v886 = vld [vmem:[#allocation3 + $0x48] sm:$0xff]
    %s887 = scalar_lea.vmem %s3, 64
    %v888 = vld [vmem:[%s887] sm:$0xff]
    %v889 = vld [vmem:[%s887 + $0x8] sm:$0xff]
    %v890 = vld [vmem:[%s887 + $0x10] sm:$0xff]
    %v891 = vld [vmem:[%s887 + $0x18] sm:$0xff]
    %v892 = vld [vmem:[%s887 + $0x20] sm:$0xff]
    %v893 = vld [vmem:[%s887 + $0x28] sm:$0xff]
    %v894 = vld [vmem:[%s887 + $0x30] sm:$0xff]
    %v895 = vld [vmem:[%s887 + $0x38] sm:$0xff]
    %v897 = vsel %vm169, %v879, 0
    %v900 = vsel %vm169, %v880, 0
    %v903 = vsel %vm169, %v881, 0
    %v906 = vsel %vm169, %v882, 0
    %v909 = vsel %vm169, %v883, 0
    %v912 = vsel %vm169, %v884, 0
    %v915 = vsel %vm169, %v885, 0
    %v918 = vsel %vm169, %v886, 0
    %920 = vmatprep.subr.mxu0 0.0
    %921 = vmatpush1.msra.mxu0 %v888
    %922 = vmatprep.subr.mxu0 0.0
    %923 = vmatpush1.msra.mxu0 %v889
    %924 = vmatprep.subr.mxu0 0.0
    %925 = vmatpush1.msra.mxu0 %v890
    %926 = vmatprep.subr.mxu0 0.0
    %927 = vmatpush1.msra.mxu0 %v891
    %928 = vmatprep.subr.mxu0 0.0
    %929 = vmatpush1.msra.mxu0 %v892
    %930 = vmatprep.subr.mxu0 0.0
    %931 = vmatpush1.msra.mxu0 %v893
    %932 = vmatprep.subr.mxu0 0.0
    %933 = vmatpush1.msra.mxu0 %v894
    %934 = vmatprep.subr.mxu0 0.0
    %935 = vmatpush1.msra.mxu0 %v895
    %936 = vmatprep.subr.mxu0 0.0
    %937 = vmatpush1.msra.mxu0 0.0
    %938 = vmatprep.subr.mxu0 0.0
    %939 = vmatpush1.msra.mxu0 0.0
    %940 = vmatprep.subr.mxu0 0.0
    %941 = vmatpush1.msra.mxu0 0.0
    %942 = vmatprep.subr.mxu0 0.0
    %943 = vmatpush1.msra.mxu0 0.0
    %944 = vmatprep.subr.mxu0 0.0
    %945 = vmatpush1.msra.mxu0 0.0
    %946 = vmatprep.subr.mxu0 0.0
    %947 = vmatpush1.msra.mxu0 0.0
    %948 = vmatprep.subr.mxu0 0.0
    %949 = vmatpush1.msra.mxu0 0.0
    %950 = vmatprep.subr.mxu0 0.0
    %951 = vmatpush1.msra.mxu0 0.0
    %952 = vmatprep.subr.mxu0 0.0
    %953 = vmatpush1.msra.mxu0 0.0
    %954 = vmatprep.subr.mxu0 0.0
    %955 = vmatpush1.msra.mxu0 0.0
    %956 = vmatprep.subr.mxu0 0.0
    %957 = vmatpush1.msra.mxu0 0.0
    %958 = vmatprep.subr.mxu0 0.0
    %959 = vmatpush1.msra.mxu0 0.0
    %960 = vmatprep.subr.mxu0 0.0
    %961 = vmatpush1.msra.mxu0 0.0
    %962 = vmatprep.subr.mxu0 0.0
    %963 = vmatpush1.msra.mxu0 0.0
    %964 = vmatprep.subr.mxu0 0.0
    %965 = vmatpush1.msra.mxu0 0.0
    %966 = vmatprep.subr.mxu0 0.0
    %967 = vmatpush1.msra.mxu0 0.0
    %968 = vmatprep.subr.mxu0 0.0
    %969 = vmatpush1.msra.mxu0 0.0
    %970 = vmatprep.subr.mxu0 0.0
    %971 = vmatpush1.msra.mxu0 0.0
    %972 = vmatprep.subr.mxu0 0.0
    %973 = vmatpush1.msra.mxu0 0.0
    %974 = vmatprep.subr.mxu0 0.0
    %975 = vmatpush1.msra.mxu0 0.0
    %976 = vmatprep.subr.mxu0 0.0
    %977 = vmatpush1.msra.mxu0 0.0
    %978 = vmatprep.subr.mxu0 0.0
    %979 = vmatpush1.msra.mxu0 0.0
    %980 = vmatprep.subr.mxu0 0.0
    %981 = vmatpush1.msra.mxu0 0.0
    %982 = vmatprep.subr.mxu0 0.0
    %983 = vmatpush1.msra.mxu0 0.0
    %984 = vmatprep.mubr.f32.mxu0 0.0
    %985 = vmatmul.mubr.f32.gmra.mrb[0].mxu0 %v897
    %v986 = vpop.f32.mrb[0].mxu0
    %v987 = vadd.f32 0.0, %v986
    %v988 = vpop.f32.mrb[0].mxu0
    %989 = vmatprep.mubr.f32.mxu0 0.0
    %990 = vmatmul.mubr.f32.gmra.mrb[0].mxu0 %v900
    %v991 = vpop.f32.mrb[0].mxu0
    %v992 = vadd.f32 0.0, %v991
    %v993 = vpop.f32.mrb[0].mxu0
    %994 = vmatprep.mubr.f32.mxu0 0.0
    %995 = vmatmul.mubr.f32.gmra.mrb[0].mxu0 %v903
    %v996 = vpop.f32.mrb[0].mxu0
    %v997 = vadd.f32 0.0, %v996
    %v998 = vpop.f32.mrb[0].mxu0
    %999 = vmatprep.mubr.f32.mxu0 0.0
    %1000 = vmatmul.mubr.f32.gmra.mrb[0].mxu0 %v906
    %v1001 = vpop.f32.mrb[0].mxu0
    %v1002 = vadd.f32 0.0, %v1001
    %v1003 = vpop.f32.mrb[0].mxu0
    %1004 = vmatprep.mubr.f32.mxu0 0.0
    %1005 = vmatmul.mubr.f32.gmra.mrb[0].mxu0 %v909
    %v1006 = vpop.f32.mrb[0].mxu0
    %v1007 = vadd.f32 0.0, %v1006
    %v1008 = vpop.f32.mrb[0].mxu0
    %1009 = vmatprep.mubr.f32.mxu0 0.0
    %1010 = vmatmul.mubr.f32.gmra.mrb[0].mxu0 %v912
    %v1011 = vpop.f32.mrb[0].mxu0
    %v1012 = vadd.f32 0.0, %v1011
    %v1013 = vpop.f32.mrb[0].mxu0
    %1014 = vmatprep.mubr.f32.mxu0 0.0
    %1015 = vmatmul.mubr.f32.gmra.mrb[0].mxu0 %v915
    %v1016 = vpop.f32.mrb[0].mxu0
    %v1017 = vadd.f32 0.0, %v1016
    %v1018 = vpop.f32.mrb[0].mxu0
    %1019 = vmatprep.mubr.f32.mxu0 0.0
    %1020 = vmatmul.mubr.f32.gmra.mrb[0].mxu0 %v918
    %v1021 = vpop.f32.mrb[0].mxu0
    %v1022 = vadd.f32 0.0, %v1021
    %v1023 = vpop.f32.mrb[0].mxu0
    %1024 = vdwg.mxu0
    %v1025 = vadd.f32 %v871, %v987
    %v1026 = vadd.f32 %v872, %v992
    %v1027 = vadd.f32 %v873, %v997
    %v1028 = vadd.f32 %v874, %v1002
    %v1029 = vadd.f32 %v875, %v1007
    %v1030 = vadd.f32 %v876, %v1012
    %v1031 = vadd.f32 %v877, %v1017
    %v1032 = vadd.f32 %v878, %v1022
    %1033 = vst.msk [vmem:[#allocation4 + $0x20] sm:$0xff] %vm169, %v1025
    %1034 = vst.msk [vmem:[#allocation4 + $0x28] sm:$0xff] %vm169, %v1026
    %1035 = vst.msk [vmem:[#allocation4 + $0x30] sm:$0xff] %vm169, %v1027
    %1036 = vst.msk [vmem:[#allocation4 + $0x38] sm:$0xff] %vm169, %v1028
    %1037 = vst.msk [vmem:[#allocation4 + $0x40] sm:$0xff] %vm169, %v1029
    %1038 = vst.msk [vmem:[#allocation4 + $0x48] sm:$0xff] %vm169, %v1030
    %1039 = vst.msk [vmem:[#allocation4 + $0x50] sm:$0xff] %vm169, %v1031
    %1040 = vst.msk [vmem:[#allocation4 + $0x58] sm:$0xff] %vm169, %v1032
    %v1041 = vld [vmem:[#allocation4 + $0x20] sm:$0xff]
    %v1042 = vld [vmem:[#allocation4 + $0x28] sm:$0xff]
    %v1043 = vld [vmem:[#allocation4 + $0x30] sm:$0xff]
    %v1044 = vld [vmem:[#allocation4 + $0x38] sm:$0xff]
    %v1045 = vld [vmem:[#allocation4 + $0x40] sm:$0xff]
    %v1046 = vld [vmem:[#allocation4 + $0x48] sm:$0xff]
    %v1047 = vld [vmem:[#allocation4 + $0x50] sm:$0xff]
    %v1048 = vld [vmem:[#allocation4 + $0x58] sm:$0xff]
    %v1049 = vld [vmem:[#allocation3 + $0x20] sm:$0xff]
    %v1050 = vld [vmem:[#allocation3 + $0x28] sm:$0xff]
    %v1051 = vld [vmem:[#allocation3 + $0x30] sm:$0xff]
    %v1052 = vld [vmem:[#allocation3 + $0x38] sm:$0xff]
    %v1053 = vld [vmem:[#allocation3 + $0x40] sm:$0xff]
    %v1054 = vld [vmem:[#allocation3 + $0x48] sm:$0xff]
    %v1055 = vld [vmem:[#allocation3 + $0x50] sm:$0xff]
    %v1056 = vld [vmem:[#allocation3 + $0x58] sm:$0xff]
    %s1057 = scalar_lea.vmem %s3, 128
    %v1058 = vld [vmem:[%s1057] sm:$0xff]
    %v1059 = vld [vmem:[%s1057 + $0x8] sm:$0xff]
    %v1060 = vld [vmem:[%s1057 + $0x10] sm:$0xff]
    %v1061 = vld [vmem:[%s1057 + $0x18] sm:$0xff]
    %v1062 = vld [vmem:[%s1057 + $0x20] sm:$0xff]
    %v1063 = vld [vmem:[%s1057 + $0x28] sm:$0xff]
    %v1064 = vld [vmem:[%s1057 + $0x30] sm:$0xff]
    %v1065 = vld [vmem:[%s1057 + $0x38] sm:$0xff]
    %v1067 = vsel %vm169, %v1049, 0
    %v1070 = vsel %vm169, %v1050, 0
    %v1073 = vsel %vm169, %v1051, 0
    %v1076 = vsel %vm169, %v1052, 0
    %v1079 = vsel %vm169, %v1053, 0
    %v1082 = vsel %vm169, %v1054, 0
    %v1085 = vsel %vm169, %v1055, 0
    %v1088 = vsel %vm169, %v1056, 0
    %1090 = vmatprep.subr.mxu0 0.0
    %1091 = vmatpush1.msra.mxu0 %v1058
    %1092 = vmatprep.subr.mxu0 0.0
    %1093 = vmatpush1.msra.mxu0 %v1059
    %1094 = vmatprep.subr.mxu0 0.0
    %1095 = vmatpush1.msra.mxu0 %v1060
    %1096 = vmatprep.subr.mxu0 0.0
    %1097 = vmatpush1.msra.mxu0 %v1061
    %1098 = vmatprep.subr.mxu0 0.0
    %1099 = vmatpush1.msra.mxu0 %v1062
    %1100 = vmatprep.subr.mxu0 0.0
    %1101 = vmatpush1.msra.mxu0 %v1063
    %1102 = vmatprep.subr.mxu0 0.0
    %1103 = vmatpush1.msra.mxu0 %v1064
    %1104 = vmatprep.subr.mxu0 0.0
    %1105 = vmatpush1.msra.mxu0 %v1065
    %1106 = vmatprep.subr.mxu0 0.0
    %1107 = vmatpush1.msra.mxu0 0.0
    %1108 = vmatprep.subr.mxu0 0.0
    %1109 = vmatpush1.msra.mxu0 0.0
    %1110 = vmatprep.subr.mxu0 0.0
    %1111 = vmatpush1.msra.mxu0 0.0
    %1112 = vmatprep.subr.mxu0 0.0
    %1113 = vmatpush1.msra.mxu0 0.0
    %1114 = vmatprep.subr.mxu0 0.0
    %1115 = vmatpush1.msra.mxu0 0.0
    %1116 = vmatprep.subr.mxu0 0.0
    %1117 = vmatpush1.msra.mxu0 0.0
    %1118 = vmatprep.subr.mxu0 0.0
    %1119 = vmatpush1.msra.mxu0 0.0
    %1120 = vmatprep.subr.mxu0 0.0
    %1121 = vmatpush1.msra.mxu0 0.0
    %1122 = vmatprep.subr.mxu0 0.0
    %1123 = vmatpush1.msra.mxu0 0.0
    %1124 = vmatprep.subr.mxu0 0.0
    %1125 = vmatpush1.msra.mxu0 0.0
    %1126 = vmatprep.subr.mxu0 0.0
    %1127 = vmatpush1.msra.mxu0 0.0
    %1128 = vmatprep.subr.mxu0 0.0
    %1129 = vmatpush1.msra.mxu0 0.0
    %1130 = vmatprep.subr.mxu0 0.0
    %1131 = vmatpush1.msra.mxu0 0.0
    %1132 = vmatprep.subr.mxu0 0.0
    %1133 = vmatpush1.msra.mxu0 0.0
    %1134 = vmatprep.subr.mxu0 0.0
    %1135 = vmatpush1.msra.mxu0 0.0
    %1136 = vmatprep.subr.mxu0 0.0
    %1137 = vmatpush1.msra.mxu0 0.0
    %1138 = vmatprep.subr.mxu0 0.0
    %1139 = vmatpush1.msra.mxu0 0.0
    %1140 = vmatprep.subr.mxu0 0.0
    %1141 = vmatpush1.msra.mxu0 0.0
    %1142 = vmatprep.subr.mxu0 0.0
    %1143 = vmatpush1.msra.mxu0 0.0
    %1144 = vmatprep.subr.mxu0 0.0
    %1145 = vmatpush1.msra.mxu0 0.0
    %1146 = vmatprep.subr.mxu0 0.0
    %1147 = vmatpush1.msra.mxu0 0.0
    %1148 = vmatprep.subr.mxu0 0.0
    %1149 = vmatpush1.msra.mxu0 0.0
    %1150 = vmatprep.subr.mxu0 0.0
    %1151 = vmatpush1.msra.mxu0 0.0
    %1152 = vmatprep.subr.mxu0 0.0
    %1153 = vmatpush1.msra.mxu0 0.0
    %1154 = vmatprep.mubr.f32.mxu0 0.0
    %1155 = vmatmul.mubr.f32.gmra.mrb[0].mxu0 %v1067
    %v1156 = vpop.f32.mrb[0].mxu0
    %v1157 = vadd.f32 0.0, %v1156
    %v1158 = vpop.f32.mrb[0].mxu0
    %1159 = vmatprep.mubr.f32.mxu0 0.0
    %1160 = vmatmul.mubr.f32.gmra.mrb[0].mxu0 %v1070
    %v1161 = vpop.f32.mrb[0].mxu0
    %v1162 = vadd.f32 0.0, %v1161
    %v1163 = vpop.f32.mrb[0].mxu0
    %1164 = vmatprep.mubr.f32.mxu0 0.0
    %1165 = vmatmul.mubr.f32.gmra.mrb[0].mxu0 %v1073
    %v1166 = vpop.f32.mrb[0].mxu0
    %v1167 = vadd.f32 0.0, %v1166
    %v1168 = vpop.f32.mrb[0].mxu0
    %1169 = vmatprep.mubr.f32.mxu0 0.0
    %1170 = vmatmul.mubr.f32.gmra.mrb[0].mxu0 %v1076
    %v1171 = vpop.f32.mrb[0].mxu0
    %v1172 = vadd.f32 0.0, %v1171
    %v1173 = vpop.f32.mrb[0].mxu0
    %1174 = vmatprep.mubr.f32.mxu0 0.0
    %1175 = vmatmul.mubr.f32.gmra.mrb[0].mxu0 %v1079
    %v1176 = vpop.f32.mrb[0].mxu0
    %v1177 = vadd.f32 0.0, %v1176
    %v1178 = vpop.f32.mrb[0].mxu0
    %1179 = vmatprep.mubr.f32.mxu0 0.0
    %1180 = vmatmul.mubr.f32.gmra.mrb[0].mxu0 %v1082
    %v1181 = vpop.f32.mrb[0].mxu0
    %v1182 = vadd.f32 0.0, %v1181
    %v1183 = vpop.f32.mrb[0].mxu0
    %1184 = vmatprep.mubr.f32.mxu0 0.0
    %1185 = vmatmul.mubr.f32.gmra.mrb[0].mxu0 %v1085
    %v1186 = vpop.f32.mrb[0].mxu0
    %v1187 = vadd.f32 0.0, %v1186
    %v1188 = vpop.f32.mrb[0].mxu0
    %1189 = vmatprep.mubr.f32.mxu0 0.0
    %1190 = vmatmul.mubr.f32.gmra.mrb[0].mxu0 %v1088
    %v1191 = vpop.f32.mrb[0].mxu0
    %v1192 = vadd.f32 0.0, %v1191
    %v1193 = vpop.f32.mrb[0].mxu0
    %1194 = vdwg.mxu0
    %v1195 = vadd.f32 %v1041, %v1157
    %v1196 = vadd.f32 %v1042, %v1162
    %v1197 = vadd.f32 %v1043, %v1167
    %v1198 = vadd.f32 %v1044, %v1172
    %v1199 = vadd.f32 %v1045, %v1177
    %v1200 = vadd.f32 %v1046, %v1182
    %v1201 = vadd.f32 %v1047, %v1187
    %v1202 = vadd.f32 %v1048, %v1192
    %1203 = vst.msk [vmem:[#allocation4 + $0x20] sm:$0xff] %vm169, %v1195
    %1204 = vst.msk [vmem:[#allocation4 + $0x28] sm:$0xff] %vm169, %v1196
    %1205 = vst.msk [vmem:[#allocation4 + $0x30] sm:$0xff] %vm169, %v1197
    %1206 = vst.msk [vmem:[#allocation4 + $0x38] sm:$0xff] %vm169, %v1198
    %1207 = vst.msk [vmem:[#allocation4 + $0x40] sm:$0xff] %vm169, %v1199
    %1208 = vst.msk [vmem:[#allocation4 + $0x48] sm:$0xff] %vm169, %v1200
    %1209 = vst.msk [vmem:[#allocation4 + $0x50] sm:$0xff] %vm169, %v1201
    %1210 = vst.msk [vmem:[#allocation4 + $0x58] sm:$0xff] %vm169, %v1202
    %v1211 = vld [vmem:[#allocation4 + $0x20] sm:$0xff]
    %v1212 = vld [vmem:[#allocation4 + $0x28] sm:$0xff]
    %v1213 = vld [vmem:[#allocation4 + $0x30] sm:$0xff]
    %v1214 = vld [vmem:[#allocation4 + $0x38] sm:$0xff]
    %v1215 = vld [vmem:[#allocation4 + $0x40] sm:$0xff]
    %v1216 = vld [vmem:[#allocation4 + $0x48] sm:$0xff]
    %v1217 = vld [vmem:[#allocation4 + $0x50] sm:$0xff]
    %v1218 = vld [vmem:[#allocation4 + $0x58] sm:$0xff]
    %v1219 = vmax.f32 %v1211, 0.0
    %v1220 = vmax.f32 %v1212, 0.0
    %v1221 = vmax.f32 %v1213, 0.0
    %v1222 = vmax.f32 %v1214, 0.0
    %v1223 = vmax.f32 %v1215, 0.0
    %v1224 = vmax.f32 %v1216, 0.0
    %v1225 = vmax.f32 %v1217, 0.0
    %v1226 = vmax.f32 %v1218, 0.0
    %1227 = vst.msk [vmem:[#allocation4 + $0x20] sm:$0xff] %vm169, %v1219
    %1228 = vst.msk [vmem:[#allocation4 + $0x28] sm:$0xff] %vm169, %v1220
    %1229 = vst.msk [vmem:[#allocation4 + $0x30] sm:$0xff] %vm169, %v1221
    %1230 = vst.msk [vmem:[#allocation4 + $0x38] sm:$0xff] %vm169, %v1222
    %1231 = vst.msk [vmem:[#allocation4 + $0x40] sm:$0xff] %vm169, %v1223
    %1232 = vst.msk [vmem:[#allocation4 + $0x48] sm:$0xff] %vm169, %v1224
    %1233 = vst.msk [vmem:[#allocation4 + $0x50] sm:$0xff] %vm169, %v1225
    %1234 = vst.msk [vmem:[#allocation4 + $0x58] sm:$0xff] %vm169, %v1226
    %v1235 = vld [vmem:[#allocation4] sm:$0xff]
    %v1236 = vld [vmem:[#allocation4 + $0x8] sm:$0xff]
    %v1237 = vld [vmem:[#allocation4 + $0x10] sm:$0xff]
    %v1238 = vld [vmem:[#allocation4 + $0x18] sm:$0xff]
    %v1239 = vld [vmem:[#allocation4 + $0x20] sm:$0xff]
    %v1240 = vld [vmem:[#allocation4 + $0x28] sm:$0xff]
    %v1241 = vld [vmem:[#allocation4 + $0x30] sm:$0xff]
    %v1242 = vld [vmem:[#allocation4 + $0x38] sm:$0xff]
    %v1243 = vld [vmem:[#allocation11] sm:$0xff]
    %v1244 = vld [vmem:[#allocation11 + $0x8] sm:$0xff]
    %v1245 = vld [vmem:[#allocation11 + $0x10] sm:$0xff]
    %v1246 = vld [vmem:[#allocation11 + $0x18] sm:$0xff]
    %v1247 = vld [vmem:[#allocation11 + $0x20] sm:$0xff]
    %v1248 = vld [vmem:[#allocation11 + $0x28] sm:$0xff]
    %v1249 = vld [vmem:[#allocation11 + $0x30] sm:$0xff]
    %v1250 = vld [vmem:[#allocation11 + $0x38] sm:$0xff]
    %v1251 = vld [vmem:[#allocation13] sm:$0x1]
    %v1253 = vlaneseq
    %v1254 = vshrl.u32 %v1253, 7
    %v1255 = vsub.s32 0, %v1254
    %v1256 = vrot.slane %v1251, %v1255
    %v1259 = vsel %vm169, %v1235, 0
    %v1262 = vsel %vm169, %v1236, 0
    %v1265 = vsel %vm169, %v1237, 0
    %v1268 = vsel %vm169, %v1238, 0
    %v1271 = vsel %vm169, %v1239, 0
    %v1274 = vsel %vm169, %v1240, 0
    %v1277 = vsel %vm169, %v1241, 0
    %v1280 = vsel %vm169, %v1242, 0
    %1282 = vmatprep.subr.mxu0 0.0
    %1283 = vmatpush1.msra.mxu0 %v1243
    %1284 = vmatprep.subr.mxu0 0.0
    %1285 = vmatpush1.msra.mxu0 %v1244
    %1286 = vmatprep.subr.mxu0 0.0
    %1287 = vmatpush1.msra.mxu0 %v1245
    %1288 = vmatprep.subr.mxu0 0.0
    %1289 = vmatpush1.msra.mxu0 %v1246
    %1290 = vmatprep.subr.mxu0 0.0
    %1291 = vmatpush1.msra.mxu0 %v1247
    %1292 = vmatprep.subr.mxu0 0.0
    %1293 = vmatpush1.msra.mxu0 %v1248
    %1294 = vmatprep.subr.mxu0 0.0
    %1295 = vmatpush1.msra.mxu0 %v1249
    %1296 = vmatprep.subr.mxu0 0.0
    %1297 = vmatpush1.msra.mxu0 %v1250
    %1298 = vmatprep.subr.mxu0 0.0
    %1299 = vmatpush1.msra.mxu0 0.0
    %1300 = vmatprep.subr.mxu0 0.0
    %1301 = vmatpush1.msra.mxu0 0.0
    %1302 = vmatprep.subr.mxu0 0.0
    %1303 = vmatpush1.msra.mxu0 0.0
    %1304 = vmatprep.subr.mxu0 0.0
    %1305 = vmatpush1.msra.mxu0 0.0
    %1306 = vmatprep.subr.mxu0 0.0
    %1307 = vmatpush1.msra.mxu0 0.0
    %1308 = vmatprep.subr.mxu0 0.0
    %1309 = vmatpush1.msra.mxu0 0.0
    %1310 = vmatprep.subr.mxu0 0.0
    %1311 = vmatpush1.msra.mxu0 0.0
    %1312 = vmatprep.subr.mxu0 0.0
    %1313 = vmatpush1.msra.mxu0 0.0
    %1314 = vmatprep.subr.mxu0 0.0
    %1315 = vmatpush1.msra.mxu0 0.0
    %1316 = vmatprep.subr.mxu0 0.0
    %1317 = vmatpush1.msra.mxu0 0.0
    %1318 = vmatprep.subr.mxu0 0.0
    %1319 = vmatpush1.msra.mxu0 0.0
    %1320 = vmatprep.subr.mxu0 0.0
    %1321 = vmatpush1.msra.mxu0 0.0
    %1322 = vmatprep.subr.mxu0 0.0
    %1323 = vmatpush1.msra.mxu0 0.0
    %1324 = vmatprep.subr.mxu0 0.0
    %1325 = vmatpush1.msra.mxu0 0.0
    %1326 = vmatprep.subr.mxu0 0.0
    %1327 = vmatpush1.msra.mxu0 0.0
    %1328 = vmatprep.subr.mxu0 0.0
    %1329 = vmatpush1.msra.mxu0 0.0
    %1330 = vmatprep.subr.mxu0 0.0
    %1331 = vmatpush1.msra.mxu0 0.0
    %1332 = vmatprep.subr.mxu0 0.0
    %1333 = vmatpush1.msra.mxu0 0.0
    %1334 = vmatprep.subr.mxu0 0.0
    %1335 = vmatpush1.msra.mxu0 0.0
    %1336 = vmatprep.subr.mxu0 0.0
    %1337 = vmatpush1.msra.mxu0 0.0
    %1338 = vmatprep.subr.mxu0 0.0
    %1339 = vmatpush1.msra.mxu0 0.0
    %1340 = vmatprep.subr.mxu0 0.0
    %1341 = vmatpush1.msra.mxu0 0.0
    %1342 = vmatprep.subr.mxu0 0.0
    %1343 = vmatpush1.msra.mxu0 0.0
    %1344 = vmatprep.subr.mxu0 0.0
    %1345 = vmatpush1.msra.mxu0 0.0
    %1346 = vmatprep.mubr.f32.mxu0 0.0
    %1347 = vmatmul.mubr.f32.gmra.mrb[0].mxu0 %v1259
    %v1348 = vpop.f32.mrb[0].mxu0
    %v1349 = vadd.f32 %v1256, %v1348
    %v1350 = vpop.f32.mrb[0].mxu0
    %1351 = vmatprep.mubr.f32.mxu0 0.0
    %1352 = vmatmul.mubr.f32.gmra.mrb[0].mxu0 %v1262
    %v1353 = vpop.f32.mrb[0].mxu0
    %v1354 = vadd.f32 %v1256, %v1353
    %v1355 = vpop.f32.mrb[0].mxu0
    %1356 = vmatprep.mubr.f32.mxu0 0.0
    %1357 = vmatmul.mubr.f32.gmra.mrb[0].mxu0 %v1265
    %v1358 = vpop.f32.mrb[0].mxu0
    %v1359 = vadd.f32 %v1256, %v1358
    %v1360 = vpop.f32.mrb[0].mxu0
    %1361 = vmatprep.mubr.f32.mxu0 0.0
    %1362 = vmatmul.mubr.f32.gmra.mrb[0].mxu0 %v1268
    %v1363 = vpop.f32.mrb[0].mxu0
    %v1364 = vadd.f32 %v1256, %v1363
    %v1365 = vpop.f32.mrb[0].mxu0
    %1366 = vmatprep.mubr.f32.mxu0 0.0
    %1367 = vmatmul.mubr.f32.gmra.mrb[0].mxu0 %v1271
    %v1368 = vpop.f32.mrb[0].mxu0
    %v1369 = vadd.f32 %v1256, %v1368
    %v1370 = vpop.f32.mrb[0].mxu0
    %1371 = vmatprep.mubr.f32.mxu0 0.0
    %1372 = vmatmul.mubr.f32.gmra.mrb[0].mxu0 %v1274
    %v1373 = vpop.f32.mrb[0].mxu0
    %v1374 = vadd.f32 %v1256, %v1373
    %v1375 = vpop.f32.mrb[0].mxu0
    %1376 = vmatprep.mubr.f32.mxu0 0.0
    %1377 = vmatmul.mubr.f32.gmra.mrb[0].mxu0 %v1277
    %v1378 = vpop.f32.mrb[0].mxu0
    %v1379 = vadd.f32 %v1256, %v1378
    %v1380 = vpop.f32.mrb[0].mxu0
    %1381 = vmatprep.mubr.f32.mxu0 0.0
    %1382 = vmatmul.mubr.f32.gmra.mrb[0].mxu0 %v1280
    %v1383 = vpop.f32.mrb[0].mxu0
    %v1384 = vadd.f32 %v1256, %v1383
    %v1385 = vpop.f32.mrb[0].mxu0
    %1386 = vdwg.mxu0
    %1387 = vst.msk [vmem:[#allocation3 + $0x10] sm:$0xff] %vm169, %v1349
    %1388 = vst.msk [vmem:[#allocation3 + $0x18] sm:$0xff] %vm169, %v1354
    %1389 = vst.msk [vmem:[#allocation3 + $0x20] sm:$0xff] %vm169, %v1359
    %1390 = vst.msk [vmem:[#allocation3 + $0x28] sm:$0xff] %vm169, %v1364
    %1391 = vst.msk [vmem:[#allocation3 + $0x30] sm:$0xff] %vm169, %v1369
    %1392 = vst.msk [vmem:[#allocation3 + $0x38] sm:$0xff] %vm169, %v1374
    %1393 = vst.msk [vmem:[#allocation3 + $0x40] sm:$0xff] %vm169, %v1379
    %1394 = vst.msk [vmem:[#allocation3 + $0x48] sm:$0xff] %vm169, %v1384
    %v1395 = vld [vmem:[#allocation3 + $0x10] sm:$0xff]
    %v1396 = vld [vmem:[#allocation3 + $0x18] sm:$0xff]
    %v1397 = vld [vmem:[#allocation3 + $0x20] sm:$0xff]
    %v1398 = vld [vmem:[#allocation3 + $0x28] sm:$0xff]
    %v1399 = vld [vmem:[#allocation3 + $0x30] sm:$0xff]
    %v1400 = vld [vmem:[#allocation3 + $0x38] sm:$0xff]
    %v1401 = vld [vmem:[#allocation3 + $0x40] sm:$0xff]
    %v1402 = vld [vmem:[#allocation3 + $0x48] sm:$0xff]
    %v1403 = vld [vmem:[#allocation4 + $0x20] sm:$0xff]
    %v1404 = vld [vmem:[#allocation4 + $0x28] sm:$0xff]
    %v1405 = vld [vmem:[#allocation4 + $0x30] sm:$0xff]
    %v1406 = vld [vmem:[#allocation4 + $0x38] sm:$0xff]
    %v1407 = vld [vmem:[#allocation4 + $0x40] sm:$0xff]
    %v1408 = vld [vmem:[#allocation4 + $0x48] sm:$0xff]
    %v1409 = vld [vmem:[#allocation4 + $0x50] sm:$0xff]
    %v1410 = vld [vmem:[#allocation4 + $0x58] sm:$0xff]
    %s1411 = scalar_lea.vmem [#allocation11], 64
    %v1412 = vld [vmem:[%s1411] sm:$0xff]
    %v1413 = vld [vmem:[%s1411 + $0x8] sm:$0xff]
    %v1414 = vld [vmem:[%s1411 + $0x10] sm:$0xff]
    %v1415 = vld [vmem:[%s1411 + $0x18] sm:$0xff]
    %v1416 = vld [vmem:[%s1411 + $0x20] sm:$0xff]
    %v1417 = vld [vmem:[%s1411 + $0x28] sm:$0xff]
    %v1418 = vld [vmem:[%s1411 + $0x30] sm:$0xff]
    %v1419 = vld [vmem:[%s1411 + $0x38] sm:$0xff]
    %v1421 = vsel %vm169, %v1403, 0
    %v1424 = vsel %vm169, %v1404, 0
    %v1427 = vsel %vm169, %v1405, 0
    %v1430 = vsel %vm169, %v1406, 0
    %v1433 = vsel %vm169, %v1407, 0
    %v1436 = vsel %vm169, %v1408, 0
    %v1439 = vsel %vm169, %v1409, 0
    %v1442 = vsel %vm169, %v1410, 0
    %1444 = vmatprep.subr.mxu0 0.0
    %1445 = vmatpush1.msra.mxu0 %v1412
    %1446 = vmatprep.subr.mxu0 0.0
    %1447 = vmatpush1.msra.mxu0 %v1413
    %1448 = vmatprep.subr.mxu0 0.0
    %1449 = vmatpush1.msra.mxu0 %v1414
    %1450 = vmatprep.subr.mxu0 0.0
    %1451 = vmatpush1.msra.mxu0 %v1415
    %1452 = vmatprep.subr.mxu0 0.0
    %1453 = vmatpush1.msra.mxu0 %v1416
    %1454 = vmatprep.subr.mxu0 0.0
    %1455 = vmatpush1.msra.mxu0 %v1417
    %1456 = vmatprep.subr.mxu0 0.0
    %1457 = vmatpush1.msra.mxu0 %v1418
    %1458 = vmatprep.subr.mxu0 0.0
    %1459 = vmatpush1.msra.mxu0 %v1419
    %1460 = vmatprep.subr.mxu0 0.0
    %1461 = vmatpush1.msra.mxu0 0.0
    %1462 = vmatprep.subr.mxu0 0.0
    %1463 = vmatpush1.msra.mxu0 0.0
    %1464 = vmatprep.subr.mxu0 0.0
    %1465 = vmatpush1.msra.mxu0 0.0
    %1466 = vmatprep.subr.mxu0 0.0
    %1467 = vmatpush1.msra.mxu0 0.0
    %1468 = vmatprep.subr.mxu0 0.0
    %1469 = vmatpush1.msra.mxu0 0.0
    %1470 = vmatprep.subr.mxu0 0.0
    %1471 = vmatpush1.msra.mxu0 0.0
    %1472 = vmatprep.subr.mxu0 0.0
    %1473 = vmatpush1.msra.mxu0 0.0
    %1474 = vmatprep.subr.mxu0 0.0
    %1475 = vmatpush1.msra.mxu0 0.0
    %1476 = vmatprep.subr.mxu0 0.0
    %1477 = vmatpush1.msra.mxu0 0.0
    %1478 = vmatprep.subr.mxu0 0.0
    %1479 = vmatpush1.msra.mxu0 0.0
    %1480 = vmatprep.subr.mxu0 0.0
    %1481 = vmatpush1.msra.mxu0 0.0
    %1482 = vmatprep.subr.mxu0 0.0
    %1483 = vmatpush1.msra.mxu0 0.0
    %1484 = vmatprep.subr.mxu0 0.0
    %1485 = vmatpush1.msra.mxu0 0.0
    %1486 = vmatprep.subr.mxu0 0.0
    %1487 = vmatpush1.msra.mxu0 0.0
    %1488 = vmatprep.subr.mxu0 0.0
    %1489 = vmatpush1.msra.mxu0 0.0
    %1490 = vmatprep.subr.mxu0 0.0
    %1491 = vmatpush1.msra.mxu0 0.0
    %1492 = vmatprep.subr.mxu0 0.0
    %1493 = vmatpush1.msra.mxu0 0.0
    %1494 = vmatprep.subr.mxu0 0.0
    %1495 = vmatpush1.msra.mxu0 0.0
    %1496 = vmatprep.subr.mxu0 0.0
    %1497 = vmatpush1.msra.mxu0 0.0
    %1498 = vmatprep.subr.mxu0 0.0
    %1499 = vmatpush1.msra.mxu0 0.0
    %1500 = vmatprep.subr.mxu0 0.0
    %1501 = vmatpush1.msra.mxu0 0.0
    %1502 = vmatprep.subr.mxu0 0.0
    %1503 = vmatpush1.msra.mxu0 0.0
    %1504 = vmatprep.subr.mxu0 0.0
    %1505 = vmatpush1.msra.mxu0 0.0
    %1506 = vmatprep.subr.mxu0 0.0
    %1507 = vmatpush1.msra.mxu0 0.0
    %1508 = vmatprep.mubr.f32.mxu0 0.0
    %1509 = vmatmul.mubr.f32.gmra.mrb[0].mxu0 %v1421
    %v1510 = vpop.f32.mrb[0].mxu0
    %v1511 = vadd.f32 0.0, %v1510
    %v1512 = vpop.f32.mrb[0].mxu0
    %1513 = vmatprep.mubr.f32.mxu0 0.0
    %1514 = vmatmul.mubr.f32.gmra.mrb[0].mxu0 %v1424
    %v1515 = vpop.f32.mrb[0].mxu0
    %v1516 = vadd.f32 0.0, %v1515
    %v1517 = vpop.f32.mrb[0].mxu0
    %1518 = vmatprep.mubr.f32.mxu0 0.0
    %1519 = vmatmul.mubr.f32.gmra.mrb[0].mxu0 %v1427
    %v1520 = vpop.f32.mrb[0].mxu0
    %v1521 = vadd.f32 0.0, %v1520
    %v1522 = vpop.f32.mrb[0].mxu0
    %1523 = vmatprep.mubr.f32.mxu0 0.0
    %1524 = vmatmul.mubr.f32.gmra.mrb[0].mxu0 %v1430
    %v1525 = vpop.f32.mrb[0].mxu0
    %v1526 = vadd.f32 0.0, %v1525
    %v1527 = vpop.f32.mrb[0].mxu0
    %1528 = vmatprep.mubr.f32.mxu0 0.0
    %1529 = vmatmul.mubr.f32.gmra.mrb[0].mxu0 %v1433
    %v1530 = vpop.f32.mrb[0].mxu0
    %v1531 = vadd.f32 0.0, %v1530
    %v1532 = vpop.f32.mrb[0].mxu0
    %1533 = vmatprep.mubr.f32.mxu0 0.0
    %1534 = vmatmul.mubr.f32.gmra.mrb[0].mxu0 %v1436
    %v1535 = vpop.f32.mrb[0].mxu0
    %v1536 = vadd.f32 0.0, %v1535
    %v1537 = vpop.f32.mrb[0].mxu0
    %1538 = vmatprep.mubr.f32.mxu0 0.0
    %1539 = vmatmul.mubr.f32.gmra.mrb[0].mxu0 %v1439
    %v1540 = vpop.f32.mrb[0].mxu0
    %v1541 = vadd.f32 0.0, %v1540
    %v1542 = vpop.f32.mrb[0].mxu0
    %1543 = vmatprep.mubr.f32.mxu0 0.0
    %1544 = vmatmul.mubr.f32.gmra.mrb[0].mxu0 %v1442
    %v1545 = vpop.f32.mrb[0].mxu0
    %v1546 = vadd.f32 0.0, %v1545
    %v1547 = vpop.f32.mrb[0].mxu0
    %1548 = vdwg.mxu0
    %v1549 = vadd.f32 %v1395, %v1511
    %v1550 = vadd.f32 %v1396, %v1516
    %v1551 = vadd.f32 %v1397, %v1521
    %v1552 = vadd.f32 %v1398, %v1526
    %v1553 = vadd.f32 %v1399, %v1531
    %v1554 = vadd.f32 %v1400, %v1536
    %v1555 = vadd.f32 %v1401, %v1541
    %v1556 = vadd.f32 %v1402, %v1546
    %1557 = vst.msk [vmem:[#allocation3 + $0x10] sm:$0xff] %vm169, %v1549
    %1558 = vst.msk [vmem:[#allocation3 + $0x18] sm:$0xff] %vm169, %v1550
    %1559 = vst.msk [vmem:[#allocation3 + $0x20] sm:$0xff] %vm169, %v1551
    %1560 = vst.msk [vmem:[#allocation3 + $0x28] sm:$0xff] %vm169, %v1552
    %1561 = vst.msk [vmem:[#allocation3 + $0x30] sm:$0xff] %vm169, %v1553
    %1562 = vst.msk [vmem:[#allocation3 + $0x38] sm:$0xff] %vm169, %v1554
    %1563 = vst.msk [vmem:[#allocation3 + $0x40] sm:$0xff] %vm169, %v1555
    %1564 = vst.msk [vmem:[#allocation3 + $0x48] sm:$0xff] %vm169, %v1556
    %v1565 = vld [vmem:[#allocation3 + $0x10] sm:$0xff]
    %v1566 = vld [vmem:[#allocation3 + $0x18] sm:$0xff]
    %v1567 = vld [vmem:[#allocation3 + $0x20] sm:$0xff]
    %v1568 = vld [vmem:[#allocation3 + $0x28] sm:$0xff]
    %v1569 = vld [vmem:[#allocation3 + $0x30] sm:$0xff]
    %v1570 = vld [vmem:[#allocation3 + $0x38] sm:$0xff]
    %v1571 = vld [vmem:[#allocation3 + $0x40] sm:$0xff]
    %v1572 = vld [vmem:[#allocation3 + $0x48] sm:$0xff]
    %v1573 = vld [vmem:[#allocation4 + $0x40] sm:$0xff]
    %v1574 = vld [vmem:[#allocation4 + $0x48] sm:$0xff]
    %v1575 = vld [vmem:[#allocation4 + $0x50] sm:$0xff]
    %v1576 = vld [vmem:[#allocation4 + $0x58] sm:$0xff]
    %v1577 = vld [vmem:[#allocation4 + $0x60] sm:$0xff]
    %v1578 = vld [vmem:[#allocation4 + $0x68] sm:$0xff]
    %v1579 = vld [vmem:[#allocation4 + $0x70] sm:$0xff]
    %v1580 = vld [vmem:[#allocation4 + $0x78] sm:$0xff]
    %s1581 = scalar_lea.vmem [#allocation11], 128
    %v1582 = vld [vmem:[%s1581] sm:$0xff]
    %v1583 = vld [vmem:[%s1581 + $0x8] sm:$0xff]
    %v1584 = vld [vmem:[%s1581 + $0x10] sm:$0xff]
    %v1585 = vld [vmem:[%s1581 + $0x18] sm:$0xff]
    %v1586 = vld [vmem:[%s1581 + $0x20] sm:$0xff]
    %v1587 = vld [vmem:[%s1581 + $0x28] sm:$0xff]
    %v1588 = vld [vmem:[%s1581 + $0x30] sm:$0xff]
    %v1589 = vld [vmem:[%s1581 + $0x38] sm:$0xff]
    %v1591 = vsel %vm169, %v1573, 0
    %v1594 = vsel %vm169, %v1574, 0
    %v1597 = vsel %vm169, %v1575, 0
    %v1600 = vsel %vm169, %v1576, 0
    %v1603 = vsel %vm169, %v1577, 0
    %v1606 = vsel %vm169, %v1578, 0
    %v1609 = vsel %vm169, %v1579, 0
    %v1612 = vsel %vm169, %v1580, 0
    %1614 = vmatprep.subr.mxu0 0.0
    %1615 = vmatpush1.msra.mxu0 %v1582
    %1616 = vmatprep.subr.mxu0 0.0
    %1617 = vmatpush1.msra.mxu0 %v1583
    %1618 = vmatprep.subr.mxu0 0.0
    %1619 = vmatpush1.msra.mxu0 %v1584
    %1620 = vmatprep.subr.mxu0 0.0
    %1621 = vmatpush1.msra.mxu0 %v1585
    %1622 = vmatprep.subr.mxu0 0.0
    %1623 = vmatpush1.msra.mxu0 %v1586
    %1624 = vmatprep.subr.mxu0 0.0
    %1625 = vmatpush1.msra.mxu0 %v1587
    %1626 = vmatprep.subr.mxu0 0.0
    %1627 = vmatpush1.msra.mxu0 %v1588
    %1628 = vmatprep.subr.mxu0 0.0
    %1629 = vmatpush1.msra.mxu0 %v1589
    %1630 = vmatprep.subr.mxu0 0.0
    %1631 = vmatpush1.msra.mxu0 0.0
    %1632 = vmatprep.subr.mxu0 0.0
    %1633 = vmatpush1.msra.mxu0 0.0
    %1634 = vmatprep.subr.mxu0 0.0
    %1635 = vmatpush1.msra.mxu0 0.0
    %1636 = vmatprep.subr.mxu0 0.0
    %1637 = vmatpush1.msra.mxu0 0.0
    %1638 = vmatprep.subr.mxu0 0.0
    %1639 = vmatpush1.msra.mxu0 0.0
    %1640 = vmatprep.subr.mxu0 0.0
    %1641 = vmatpush1.msra.mxu0 0.0
    %1642 = vmatprep.subr.mxu0 0.0
    %1643 = vmatpush1.msra.mxu0 0.0
    %1644 = vmatprep.subr.mxu0 0.0
    %1645 = vmatpush1.msra.mxu0 0.0
    %1646 = vmatprep.subr.mxu0 0.0
    %1647 = vmatpush1.msra.mxu0 0.0
    %1648 = vmatprep.subr.mxu0 0.0
    %1649 = vmatpush1.msra.mxu0 0.0
    %1650 = vmatprep.subr.mxu0 0.0
    %1651 = vmatpush1.msra.mxu0 0.0
    %1652 = vmatprep.subr.mxu0 0.0
    %1653 = vmatpush1.msra.mxu0 0.0
    %1654 = vmatprep.subr.mxu0 0.0
    %1655 = vmatpush1.msra.mxu0 0.0
    %1656 = vmatprep.subr.mxu0 0.0
    %1657 = vmatpush1.msra.mxu0 0.0
    %1658 = vmatprep.subr.mxu0 0.0
    %1659 = vmatpush1.msra.mxu0 0.0
    %1660 = vmatprep.subr.mxu0 0.0
    %1661 = vmatpush1.msra.mxu0 0.0
    %1662 = vmatprep.subr.mxu0 0.0
    %1663 = vmatpush1.msra.mxu0 0.0
    %1664 = vmatprep.subr.mxu0 0.0
    %1665 = vmatpush1.msra.mxu0 0.0
    %1666 = vmatprep.subr.mxu0 0.0
    %1667 = vmatpush1.msra.mxu0 0.0
    %1668 = vmatprep.subr.mxu0 0.0
    %1669 = vmatpush1.msra.mxu0 0.0
    %1670 = vmatprep.subr.mxu0 0.0
    %1671 = vmatpush1.msra.mxu0 0.0
    %1672 = vmatprep.subr.mxu0 0.0
    %1673 = vmatpush1.msra.mxu0 0.0
    %1674 = vmatprep.subr.mxu0 0.0
    %1675 = vmatpush1.msra.mxu0 0.0
    %1676 = vmatprep.subr.mxu0 0.0
    %1677 = vmatpush1.msra.mxu0 0.0
    %1678 = vmatprep.mubr.f32.mxu0 0.0
    %1679 = vmatmul.mubr.f32.gmra.mrb[0].mxu0 %v1591
    %v1680 = vpop.f32.mrb[0].mxu0
    %v1681 = vadd.f32 0.0, %v1680
    %v1682 = vpop.f32.mrb[0].mxu0
    %1683 = vmatprep.mubr.f32.mxu0 0.0
    %1684 = vmatmul.mubr.f32.gmra.mrb[0].mxu0 %v1594
    %v1685 = vpop.f32.mrb[0].mxu0
    %v1686 = vadd.f32 0.0, %v1685
    %v1687 = vpop.f32.mrb[0].mxu0
    %1688 = vmatprep.mubr.f32.mxu0 0.0
    %1689 = vmatmul.mubr.f32.gmra.mrb[0].mxu0 %v1597
    %v1690 = vpop.f32.mrb[0].mxu0
    %v1691 = vadd.f32 0.0, %v1690
    %v1692 = vpop.f32.mrb[0].mxu0
    %1693 = vmatprep.mubr.f32.mxu0 0.0
    %1694 = vmatmul.mubr.f32.gmra.mrb[0].mxu0 %v1600
    %v1695 = vpop.f32.mrb[0].mxu0
    %v1696 = vadd.f32 0.0, %v1695
    %v1697 = vpop.f32.mrb[0].mxu0
    %1698 = vmatprep.mubr.f32.mxu0 0.0
    %1699 = vmatmul.mubr.f32.gmra.mrb[0].mxu0 %v1603
    %v1700 = vpop.f32.mrb[0].mxu0
    %v1701 = vadd.f32 0.0, %v1700
    %v1702 = vpop.f32.mrb[0].mxu0
    %1703 = vmatprep.mubr.f32.mxu0 0.0
    %1704 = vmatmul.mubr.f32.gmra.mrb[0].mxu0 %v1606
    %v1705 = vpop.f32.mrb[0].mxu0
    %v1706 = vadd.f32 0.0, %v1705
    %v1707 = vpop.f32.mrb[0].mxu0
    %1708 = vmatprep.mubr.f32.mxu0 0.0
    %1709 = vmatmul.mubr.f32.gmra.mrb[0].mxu0 %v1609
    %v1710 = vpop.f32.mrb[0].mxu0
    %v1711 = vadd.f32 0.0, %v1710
    %v1712 = vpop.f32.mrb[0].mxu0
    %1713 = vmatprep.mubr.f32.mxu0 0.0
    %1714 = vmatmul.mubr.f32.gmra.mrb[0].mxu0 %v1612
    %v1715 = vpop.f32.mrb[0].mxu0
    %v1716 = vadd.f32 0.0, %v1715
    %v1717 = vpop.f32.mrb[0].mxu0
    %1718 = vdwg.mxu0
    %v1719 = vadd.f32 %v1565, %v1681
    %v1720 = vadd.f32 %v1566, %v1686
    %v1721 = vadd.f32 %v1567, %v1691
    %v1722 = vadd.f32 %v1568, %v1696
    %v1723 = vadd.f32 %v1569, %v1701
    %v1724 = vadd.f32 %v1570, %v1706
    %v1725 = vadd.f32 %v1571, %v1711
    %v1726 = vadd.f32 %v1572, %v1716
    %1727 = vst.msk [vmem:[#allocation3 + $0x10] sm:$0xff] %vm169, %v1719
    %1728 = vst.msk [vmem:[#allocation3 + $0x18] sm:$0xff] %vm169, %v1720
    %1729 = vst.msk [vmem:[#allocation3 + $0x20] sm:$0xff] %vm169, %v1721
    %1730 = vst.msk [vmem:[#allocation3 + $0x28] sm:$0xff] %vm169, %v1722
    %1731 = vst.msk [vmem:[#allocation3 + $0x30] sm:$0xff] %vm169, %v1723
    %1732 = vst.msk [vmem:[#allocation3 + $0x38] sm:$0xff] %vm169, %v1724
    %1733 = vst.msk [vmem:[#allocation3 + $0x40] sm:$0xff] %vm169, %v1725
    %1734 = vst.msk [vmem:[#allocation3 + $0x48] sm:$0xff] %vm169, %v1726
    %v1735 = vld [vmem:[#allocation3 + $0x10] sm:$0xff]
    %v1736 = vld [vmem:[#allocation3 + $0x18] sm:$0xff]
    %v1737 = vld [vmem:[#allocation3 + $0x20] sm:$0xff]
    %v1738 = vld [vmem:[#allocation3 + $0x28] sm:$0xff]
    %v1739 = vld [vmem:[#allocation3 + $0x30] sm:$0xff]
    %v1740 = vld [vmem:[#allocation3 + $0x38] sm:$0xff]
    %v1741 = vld [vmem:[#allocation3 + $0x40] sm:$0xff]
    %v1742 = vld [vmem:[#allocation3 + $0x48] sm:$0xff]
    %v1743 = vmax.f32 %v1735, 0.0
    %v1744 = vmax.f32 %v1736, 0.0
    %v1745 = vmax.f32 %v1737, 0.0
    %v1746 = vmax.f32 %v1738, 0.0
    %v1747 = vmax.f32 %v1739, 0.0
    %v1748 = vmax.f32 %v1740, 0.0
    %v1749 = vmax.f32 %v1741, 0.0
    %v1750 = vmax.f32 %v1742, 0.0
    %1751 = vst.msk [vmem:[#allocation3 + $0x10] sm:$0xff] %vm169, %v1743
    %1752 = vst.msk [vmem:[#allocation3 + $0x18] sm:$0xff] %vm169, %v1744
    %1753 = vst.msk [vmem:[#allocation3 + $0x20] sm:$0xff] %vm169, %v1745
    %1754 = vst.msk [vmem:[#allocation3 + $0x28] sm:$0xff] %vm169, %v1746
    %1755 = vst.msk [vmem:[#allocation3 + $0x30] sm:$0xff] %vm169, %v1747
    %1756 = vst.msk [vmem:[#allocation3 + $0x38] sm:$0xff] %vm169, %v1748
    %1757 = vst.msk [vmem:[#allocation3 + $0x40] sm:$0xff] %vm169, %v1749
    %1758 = vst.msk [vmem:[#allocation3 + $0x48] sm:$0xff] %vm169, %v1750
    %v1759 = vld [vmem:[#allocation3 + $0x10] sm:$0xff]
    %v1760 = vld [vmem:[#allocation3 + $0x18] sm:$0xff]
    %v1761 = vld [vmem:[#allocation3 + $0x20] sm:$0xff]
    %v1762 = vld [vmem:[#allocation3 + $0x28] sm:$0xff]
    %v1763 = vld [vmem:[#allocation3 + $0x30] sm:$0xff]
    %v1764 = vld [vmem:[#allocation3 + $0x38] sm:$0xff]
    %v1765 = vld [vmem:[#allocation3 + $0x40] sm:$0xff]
    %v1766 = vld [vmem:[#allocation3 + $0x48] sm:$0xff]
    %v1767 = vld [vmem:[%s7] sm:$0xff]
    %v1768 = vld [vmem:[%s7 + $0x8] sm:$0xff]
    %v1769 = vld [vmem:[%s7 + $0x10] sm:$0xff]
    %v1770 = vld [vmem:[%s7 + $0x18] sm:$0xff]
    %v1771 = vld [vmem:[%s7 + $0x20] sm:$0xff]
    %v1772 = vld [vmem:[%s7 + $0x28] sm:$0xff]
    %v1773 = vld [vmem:[%s7 + $0x30] sm:$0xff]
    %v1774 = vld [vmem:[%s7 + $0x38] sm:$0xff]
    %v1775 = vld [vmem:[%s7 + $0x40] sm:$0xff]
    %v1776 = vld [vmem:[%s7 + $0x48] sm:$0xff]
    %v1777 = vld [vmem:[%s7 + $0x50] sm:$0xff]
    %v1778 = vld [vmem:[%s7 + $0x58] sm:$0xff]
    %v1779 = vld [vmem:[%s7 + $0x60] sm:$0xff]
    %v1780 = vld [vmem:[%s7 + $0x68] sm:$0xff]
    %v1781 = vld [vmem:[%s7 + $0x70] sm:$0xff]
    %v1782 = vld [vmem:[%s7 + $0x78] sm:$0xff]
    %v1783 = vld [vmem:[#allocation16] sm:$0x3]
    %v1785 = vlaneseq
    %v1786 = vshrl.u32 %v1785, 7
    %v1787 = vsub.s32 0, %v1786
    %v1788 = vrot.slane %v1783, %v1787
    %v1789 = vlaneseq
    %v1790 = vshrl.u32 %v1789, 7
    %v1791 = vsub.s32 1, %v1790
    %v1792 = vrot.slane %v1783, %v1791
    %v1796 = vsel %vm169, %v1759, 0
    %v1799 = vsel %vm169, %v1760, 0
    %v1802 = vsel %vm169, %v1761, 0
    %v1805 = vsel %vm169, %v1762, 0
    %v1808 = vsel %vm169, %v1763, 0
    %v1811 = vsel %vm169, %v1764, 0
    %v1814 = vsel %vm169, %v1765, 0
    %v1817 = vsel %vm169, %v1766, 0
    %1819 = vmatprep.subr.mxu0 %v1768
    %1820 = vmatpush1.msra.mxu0 %v1767
    %1821 = vmatprep.subr.mxu0 %v1770
    %1822 = vmatpush1.msra.mxu0 %v1769
    %1823 = vmatprep.subr.mxu0 %v1772
    %1824 = vmatpush1.msra.mxu0 %v1771
    %1825 = vmatprep.subr.mxu0 %v1774
    %1826 = vmatpush1.msra.mxu0 %v1773
    %1827 = vmatprep.subr.mxu0 %v1776
    %1828 = vmatpush1.msra.mxu0 %v1775
    %1829 = vmatprep.subr.mxu0 %v1778
    %1830 = vmatpush1.msra.mxu0 %v1777
    %1831 = vmatprep.subr.mxu0 %v1780
    %1832 = vmatpush1.msra.mxu0 %v1779
    %1833 = vmatprep.subr.mxu0 %v1782
    %1834 = vmatpush1.msra.mxu0 %v1781
    %1835 = vmatprep.subr.mxu0 0.0
    %1836 = vmatpush1.msra.mxu0 0.0
    %1837 = vmatprep.subr.mxu0 0.0
    %1838 = vmatpush1.msra.mxu0 0.0
    %1839 = vmatprep.subr.mxu0 0.0
    %1840 = vmatpush1.msra.mxu0 0.0
    %1841 = vmatprep.subr.mxu0 0.0
    %1842 = vmatpush1.msra.mxu0 0.0
    %1843 = vmatprep.subr.mxu0 0.0
    %1844 = vmatpush1.msra.mxu0 0.0
    %1845 = vmatprep.subr.mxu0 0.0
    %1846 = vmatpush1.msra.mxu0 0.0
    %1847 = vmatprep.subr.mxu0 0.0
    %1848 = vmatpush1.msra.mxu0 0.0
    %1849 = vmatprep.subr.mxu0 0.0
    %1850 = vmatpush1.msra.mxu0 0.0
    %1851 = vmatprep.subr.mxu0 0.0
    %1852 = vmatpush1.msra.mxu0 0.0
    %1853 = vmatprep.subr.mxu0 0.0
    %1854 = vmatpush1.msra.mxu0 0.0
    %1855 = vmatprep.subr.mxu0 0.0
    %1856 = vmatpush1.msra.mxu0 0.0
    %1857 = vmatprep.subr.mxu0 0.0
    %1858 = vmatpush1.msra.mxu0 0.0
    %1859 = vmatprep.subr.mxu0 0.0
    %1860 = vmatpush1.msra.mxu0 0.0
    %1861 = vmatprep.subr.mxu0 0.0
    %1862 = vmatpush1.msra.mxu0 0.0
    %1863 = vmatprep.subr.mxu0 0.0
    %1864 = vmatpush1.msra.mxu0 0.0
    %1865 = vmatprep.subr.mxu0 0.0
    %1866 = vmatpush1.msra.mxu0 0.0
    %1867 = vmatprep.subr.mxu0 0.0
    %1868 = vmatpush1.msra.mxu0 0.0
    %1869 = vmatprep.subr.mxu0 0.0
    %1870 = vmatpush1.msra.mxu0 0.0
    %1871 = vmatprep.subr.mxu0 0.0
    %1872 = vmatpush1.msra.mxu0 0.0
    %1873 = vmatprep.subr.mxu0 0.0
    %1874 = vmatpush1.msra.mxu0 0.0
    %1875 = vmatprep.subr.mxu0 0.0
    %1876 = vmatpush1.msra.mxu0 0.0
    %1877 = vmatprep.subr.mxu0 0.0
    %1878 = vmatpush1.msra.mxu0 0.0
    %1879 = vmatprep.subr.mxu0 0.0
    %1880 = vmatpush1.msra.mxu0 0.0
    %1881 = vmatprep.subr.mxu0 0.0
    %1882 = vmatpush1.msra.mxu0 0.0
    %1883 = vmatprep.mubr.f32.mxu0 0.0
    %1884 = vmatmul.mubr.f32.gmra.mrb[0].mxu0 %v1796
    %v1885 = vpop.f32.mrb[0].mxu0
    %v1886 = vadd.f32 %v1788, %v1885
    %v1887 = vpop.f32.mrb[0].mxu0
    %v1888 = vadd.f32 %v1792, %v1887
    %1889 = vmatprep.mubr.f32.mxu0 0.0
    %1890 = vmatmul.mubr.f32.gmra.mrb[0].mxu0 %v1799
    %v1891 = vpop.f32.mrb[0].mxu0
    %v1892 = vadd.f32 %v1788, %v1891
    %v1893 = vpop.f32.mrb[0].mxu0
    %v1894 = vadd.f32 %v1792, %v1893
    %1895 = vmatprep.mubr.f32.mxu0 0.0
    %1896 = vmatmul.mubr.f32.gmra.mrb[0].mxu0 %v1802
    %v1897 = vpop.f32.mrb[0].mxu0
    %v1898 = vadd.f32 %v1788, %v1897
    %v1899 = vpop.f32.mrb[0].mxu0
    %v1900 = vadd.f32 %v1792, %v1899
    %1901 = vmatprep.mubr.f32.mxu0 0.0
    %1902 = vmatmul.mubr.f32.gmra.mrb[0].mxu0 %v1805
    %v1903 = vpop.f32.mrb[0].mxu0
    %v1904 = vadd.f32 %v1788, %v1903
    %v1905 = vpop.f32.mrb[0].mxu0
    %v1906 = vadd.f32 %v1792, %v1905
    %1907 = vmatprep.mubr.f32.mxu0 0.0
    %1908 = vmatmul.mubr.f32.gmra.mrb[0].mxu0 %v1808
    %v1909 = vpop.f32.mrb[0].mxu0
    %v1910 = vadd.f32 %v1788, %v1909
    %v1911 = vpop.f32.mrb[0].mxu0
    %v1912 = vadd.f32 %v1792, %v1911
    %1913 = vmatprep.mubr.f32.mxu0 0.0
    %1914 = vmatmul.mubr.f32.gmra.mrb[0].mxu0 %v1811
    %v1915 = vpop.f32.mrb[0].mxu0
    %v1916 = vadd.f32 %v1788, %v1915
    %v1917 = vpop.f32.mrb[0].mxu0
    %v1918 = vadd.f32 %v1792, %v1917
    %1919 = vmatprep.mubr.f32.mxu0 0.0
    %1920 = vmatmul.mubr.f32.gmra.mrb[0].mxu0 %v1814
    %v1921 = vpop.f32.mrb[0].mxu0
    %v1922 = vadd.f32 %v1788, %v1921
    %v1923 = vpop.f32.mrb[0].mxu0
    %v1924 = vadd.f32 %v1792, %v1923
    %1925 = vmatprep.mubr.f32.mxu0 0.0
    %1926 = vmatmul.mubr.f32.gmra.mrb[0].mxu0 %v1817
    %v1927 = vpop.f32.mrb[0].mxu0
    %v1928 = vadd.f32 %v1788, %v1927
    %v1929 = vpop.f32.mrb[0].mxu0
    %v1930 = vadd.f32 %v1792, %v1929
    %1931 = vdwg.mxu0
    %1932 = vst [vmem:[#allocation5] sm:$0xff] %v1886
    %1933 = vst.msk [vmem:[#allocation5 + $0x8] sm:$0xff] %vm169, %v1888
    %1934 = vst [vmem:[#allocation5 + $0x10] sm:$0xff] %v1892
    %1935 = vst.msk [vmem:[#allocation5 + $0x18] sm:$0xff] %vm169, %v1894
    %1936 = vst [vmem:[#allocation5 + $0x20] sm:$0xff] %v1898
    %1937 = vst.msk [vmem:[#allocation5 + $0x28] sm:$0xff] %vm169, %v1900
    %1938 = vst [vmem:[#allocation5 + $0x30] sm:$0xff] %v1904
    %1939 = vst.msk [vmem:[#allocation5 + $0x38] sm:$0xff] %vm169, %v1906
    %1940 = vst [vmem:[#allocation5 + $0x40] sm:$0xff] %v1910
    %1941 = vst.msk [vmem:[#allocation5 + $0x48] sm:$0xff] %vm169, %v1912
    %1942 = vst [vmem:[#allocation5 + $0x50] sm:$0xff] %v1916
    %1943 = vst.msk [vmem:[#allocation5 + $0x58] sm:$0xff] %vm169, %v1918
    %1944 = vst [vmem:[#allocation5 + $0x60] sm:$0xff] %v1922
    %1945 = vst.msk [vmem:[#allocation5 + $0x68] sm:$0xff] %vm169, %v1924
    %1946 = vst [vmem:[#allocation5 + $0x70] sm:$0xff] %v1928
    %1947 = vst.msk [vmem:[#allocation5 + $0x78] sm:$0xff] %vm169, %v1930
    %v1948 = vld [vmem:[%s11] sm:$0xff]
    %v1949 = vld [vmem:[%s11 + $0x8] sm:$0xff]
    %v1950 = vld [vmem:[%s11 + $0x10] sm:$0xff]
    %v1951 = vld [vmem:[%s11 + $0x18] sm:$0xff]
    %v1952 = vld [vmem:[%s11 + $0x20] sm:$0xff]
    %v1953 = vld [vmem:[%s11 + $0x28] sm:$0xff]
    %v1954 = vld [vmem:[%s11 + $0x30] sm:$0xff]
    %v1955 = vld [vmem:[%s11 + $0x38] sm:$0xff]
    %s1956 = smul.u32 0, 2
    %s1957 = smul.addr %s1956, 8
    %s1958 = scalar_lea.vmem [#allocation5], %s1957
    %v1959 = vld [vmem:[%s1958] sm:$0xff]
    %v1960 = vld [vmem:[%s1958 + $0x8] sm:$0xff]
    %v1961 = vld [vmem:[#allocation14] sm:$0xff]
    %v1962 = vld [vmem:[#allocation14 + $0x8] sm:$0xff]
    %v1963 = vld [vmem:[#allocation14 + $0x10] sm:$0xff]
    %v1964 = vld [vmem:[#allocation14 + $0x18] sm:$0xff]
    %v1965 = vld [vmem:[#allocation14 + $0x20] sm:$0xff]
    %v1966 = vld [vmem:[#allocation14 + $0x28] sm:$0xff]
    %v1967 = vld [vmem:[#allocation14 + $0x30] sm:$0xff]
    %v1968 = vld [vmem:[#allocation14 + $0x38] sm:$0xff]
    %v1969 = vld [vmem:[#allocation14 + $0x40] sm:$0xff]
    %v1970 = vld [vmem:[#allocation14 + $0x48] sm:$0xff]
    %v1971 = vld [vmem:[#allocation14 + $0x50] sm:$0xff]
    %v1972 = vld [vmem:[#allocation14 + $0x58] sm:$0xff]
    %v1973 = vld [vmem:[#allocation14 + $0x60] sm:$0xff]
    %v1974 = vld [vmem:[#allocation14 + $0x68] sm:$0xff]
    %v1975 = vld [vmem:[#allocation14 + $0x70] sm:$0xff]
    %v1976 = vld [vmem:[#allocation14 + $0x78] sm:$0xff]
    %v1977 = vld [vmem:[#allocation17] sm:$0x3]
    %v1979 = vlaneseq
    %v1980 = vshrl.u32 %v1979, 7
    %v1981 = vsub.s32 0, %v1980
    %v1982 = vrot.slane %v1977, %v1981
    %v1983 = vlaneseq
    %v1984 = vshrl.u32 %v1983, 7
    %v1985 = vsub.s32 1, %v1984
    %v1986 = vrot.slane %v1977, %v1985
    %v1990 = vsel %vm169, 0.0, 0
    %1992 = vmatprep.subr.mxu0 %v1962
    %1993 = vmatpush1.msra.mxu0 %v1961
    %1994 = vmatprep.subr.mxu0 %v1964
    %1995 = vmatpush1.msra.mxu0 %v1963
    %1996 = vmatprep.subr.mxu0 %v1966
    %1997 = vmatpush1.msra.mxu0 %v1965
    %1998 = vmatprep.subr.mxu0 %v1968
    %1999 = vmatpush1.msra.mxu0 %v1967
    %2000 = vmatprep.subr.mxu0 %v1970
    %2001 = vmatpush1.msra.mxu0 %v1969
    %2002 = vmatprep.subr.mxu0 %v1972
    %2003 = vmatpush1.msra.mxu0 %v1971
    %2004 = vmatprep.subr.mxu0 %v1974
    %2005 = vmatpush1.msra.mxu0 %v1973
    %2006 = vmatprep.subr.mxu0 %v1976
    %2007 = vmatpush1.msra.mxu0 %v1975
    %2008 = vmatprep.subr.mxu0 0.0
    %2009 = vmatpush1.msra.mxu0 0.0
    %2010 = vmatprep.subr.mxu0 0.0
    %2011 = vmatpush1.msra.mxu0 0.0
    %2012 = vmatprep.subr.mxu0 0.0
    %2013 = vmatpush1.msra.mxu0 0.0
    %2014 = vmatprep.subr.mxu0 0.0
    %2015 = vmatpush1.msra.mxu0 0.0
    %2016 = vmatprep.subr.mxu0 0.0
    %2017 = vmatpush1.msra.mxu0 0.0
    %2018 = vmatprep.subr.mxu0 0.0
    %2019 = vmatpush1.msra.mxu0 0.0
    %2020 = vmatprep.subr.mxu0 0.0
    %2021 = vmatpush1.msra.mxu0 0.0
    %2022 = vmatprep.subr.mxu0 0.0
    %2023 = vmatpush1.msra.mxu0 0.0
    %2024 = vmatprep.subr.mxu0 0.0
    %2025 = vmatpush1.msra.mxu0 0.0
    %2026 = vmatprep.subr.mxu0 0.0
    %2027 = vmatpush1.msra.mxu0 0.0
    %2028 = vmatprep.subr.mxu0 0.0
    %2029 = vmatpush1.msra.mxu0 0.0
    %2030 = vmatprep.subr.mxu0 0.0
    %2031 = vmatpush1.msra.mxu0 0.0
    %2032 = vmatprep.subr.mxu0 0.0
    %2033 = vmatpush1.msra.mxu0 0.0
    %2034 = vmatprep.subr.mxu0 0.0
    %2035 = vmatpush1.msra.mxu0 0.0
    %2036 = vmatprep.subr.mxu0 0.0
    %2037 = vmatpush1.msra.mxu0 0.0
    %2038 = vmatprep.subr.mxu0 0.0
    %2039 = vmatpush1.msra.mxu0 0.0
    %2040 = vmatprep.subr.mxu0 0.0
    %2041 = vmatpush1.msra.mxu0 0.0
    %2042 = vmatprep.subr.mxu0 0.0
    %2043 = vmatpush1.msra.mxu0 0.0
    %2044 = vmatprep.subr.mxu0 0.0
    %2045 = vmatpush1.msra.mxu0 0.0
    %2046 = vmatprep.subr.mxu0 0.0
    %2047 = vmatpush1.msra.mxu0 0.0
    %2048 = vmatprep.subr.mxu0 0.0
    %2049 = vmatpush1.msra.mxu0 0.0
    %2050 = vmatprep.subr.mxu0 0.0
    %2051 = vmatpush1.msra.mxu0 0.0
    %2052 = vmatprep.subr.mxu0 0.0
    %2053 = vmatpush1.msra.mxu0 0.0
    %2054 = vmatprep.subr.mxu0 0.0
    %2055 = vmatpush1.msra.mxu0 0.0
    %2056 = vmatprep.mubr.f32.mxu0 0.0
    %2057 = vmatmul.mubr.f32.gmra.mrb[0].mxu0 %v1990
    %v2058 = vpop.f32.mrb[0].mxu0
    %v2059 = vadd.f32 %v1982, %v2058
    %v2060 = vpop.f32.mrb[0].mxu0
    %v2061 = vadd.f32 %v1986, %v2060
    %2062 = vdwg.mxu0
    %v2063 = vadd.f32 %v1959, %v2059
    %v2064 = vxor.u32 %v2063, 2147483648
    %v2065 = vmul.f32 %v2064, 1.442695
    %v2066 = vpow.pop %v2065
    %v2067 = vadd.f32 %v2066, 1.0
    %v2068 = vrcp.pop %v2067
    %v2069 = vmul.f32 1.0, %v2068
    %v2070 = vmul.f32 %v2069, %v2061
    %v2071 = vadd.f32 %v1960, %v2070
    %v2072 = vtanh.pop %v2071
    %v2073 = vsub.f32 1.0, %v2069
    %2075 = vrot.lane.b32.xlu0 %v2072, 64
    %v2076 = vpop.permute.xlu0 %2075
    %v2078 = vmul.f32 %v2073, %v2076
    %v2079 = vmul.f32 %v2069, 0.0
    %v2080 = vadd.f32 %v2078, %v2079
    %s2081 = smul.u32 1, 2
    %s2082 = smul.addr %s2081, 8
    %s2083 = scalar_lea.vmem [#allocation5], %s2082
    %v2084 = vld [vmem:[%s2083] sm:$0xff]
    %v2085 = vld [vmem:[%s2083 + $0x8] sm:$0xff]
    %2087 = vrot.lane.b32.xlu0 %v2080, 64
    %v2088 = vpop.permute.xlu0 %2087
    %v2089 = vsel %vm169, %v2088, 0
    %2091 = vmatprep.subr.mxu0 %v1962
    %2092 = vmatpush1.msra.mxu0 %v1961
    %2093 = vmatprep.subr.mxu0 %v1964
    %2094 = vmatpush1.msra.mxu0 %v1963
    %2095 = vmatprep.subr.mxu0 %v1966
    %2096 = vmatpush1.msra.mxu0 %v1965
    %2097 = vmatprep.subr.mxu0 %v1968
    %2098 = vmatpush1.msra.mxu0 %v1967
    %2099 = vmatprep.subr.mxu0 %v1970
    %2100 = vmatpush1.msra.mxu0 %v1969
    %2101 = vmatprep.subr.mxu0 %v1972
    %2102 = vmatpush1.msra.mxu0 %v1971
    %2103 = vmatprep.subr.mxu0 %v1974
    %2104 = vmatpush1.msra.mxu0 %v1973
    %2105 = vmatprep.subr.mxu0 %v1976
    %2106 = vmatpush1.msra.mxu0 %v1975
    %2107 = vmatprep.subr.mxu0 0.0
    %2108 = vmatpush1.msra.mxu0 0.0
    %2109 = vmatprep.subr.mxu0 0.0
    %2110 = vmatpush1.msra.mxu0 0.0
    %2111 = vmatprep.subr.mxu0 0.0
    %2112 = vmatpush1.msra.mxu0 0.0
    %2113 = vmatprep.subr.mxu0 0.0
    %2114 = vmatpush1.msra.mxu0 0.0
    %2115 = vmatprep.subr.mxu0 0.0
    %2116 = vmatpush1.msra.mxu0 0.0
    %2117 = vmatprep.subr.mxu0 0.0
    %2118 = vmatpush1.msra.mxu0 0.0
    %2119 = vmatprep.subr.mxu0 0.0
    %2120 = vmatpush1.msra.mxu0 0.0
    %2121 = vmatprep.subr.mxu0 0.0
    %2122 = vmatpush1.msra.mxu0 0.0
    %2123 = vmatprep.subr.mxu0 0.0
    %2124 = vmatpush1.msra.mxu0 0.0
    %2125 = vmatprep.subr.mxu0 0.0
    %2126 = vmatpush1.msra.mxu0 0.0
    %2127 = vmatprep.subr.mxu0 0.0
    %2128 = vmatpush1.msra.mxu0 0.0
    %2129 = vmatprep.subr.mxu0 0.0
    %2130 = vmatpush1.msra.mxu0 0.0
    %2131 = vmatprep.subr.mxu0 0.0
    %2132 = vmatpush1.msra.mxu0 0.0
    %2133 = vmatprep.subr.mxu0 0.0
    %2134 = vmatpush1.msra.mxu0 0.0
    %2135 = vmatprep.subr.mxu0 0.0
    %2136 = vmatpush1.msra.mxu0 0.0
    %2137 = vmatprep.subr.mxu0 0.0
    %2138 = vmatpush1.msra.mxu0 0.0
    %2139 = vmatprep.subr.mxu0 0.0
    %2140 = vmatpush1.msra.mxu0 0.0
    %2141 = vmatprep.subr.mxu0 0.0
    %2142 = vmatpush1.msra.mxu0 0.0
    %2143 = vmatprep.subr.mxu0 0.0
    %2144 = vmatpush1.msra.mxu0 0.0
    %2145 = vmatprep.subr.mxu0 0.0
    %2146 = vmatpush1.msra.mxu0 0.0
    %2147 = vmatprep.subr.mxu0 0.0
    %2148 = vmatpush1.msra.mxu0 0.0
    %2149 = vmatprep.subr.mxu0 0.0
    %2150 = vmatpush1.msra.mxu0 0.0
    %2151 = vmatprep.subr.mxu0 0.0
    %2152 = vmatpush1.msra.mxu0 0.0
    %2153 = vmatprep.subr.mxu0 0.0
    %2154 = vmatpush1.msra.mxu0 0.0
    %2155 = vmatprep.mubr.f32.mxu0 0.0
    %2156 = vmatmul.mubr.f32.gmra.mrb[0].mxu0 %v2089
    %v2157 = vpop.f32.mrb[0].mxu0
    %v2158 = vadd.f32 %v1982, %v2157
    %v2159 = vpop.f32.mrb[0].mxu0
    %v2160 = vadd.f32 %v1986, %v2159
    %2161 = vdwg.mxu0
    %v2162 = vadd.f32 %v2084, %v2158
    %v2163 = vxor.u32 %v2162, 2147483648
    %v2164 = vmul.f32 %v2163, 1.442695
    %v2165 = vpow.pop %v2164
    %v2166 = vadd.f32 %v2165, 1.0
    %v2167 = vrcp.pop %v2166
    %v2168 = vmul.f32 1.0, %v2167
    %v2169 = vmul.f32 %v2168, %v2160
    %v2170 = vadd.f32 %v2085, %v2169
    %v2171 = vtanh.pop %v2170
    %v2172 = vsub.f32 1.0, %v2168
    %2174 = vrot.lane.b32.xlu0 %v2171, 64
    %v2175 = vpop.permute.xlu0 %2174
    %v2177 = vmul.f32 %v2172, %v2175
    %v2178 = vmul.f32 %v2168, %v2080
    %v2179 = vadd.f32 %v2177, %v2178
    %v2180 = vld [vmem:[%s13] sm:$0x1]
    %v2182 = vlaneseq
    %v2183 = vshrl.u32 %v2182, 7
    %v2184 = vsub.s32 0, %v2183
    %v2185 = vrot.slane %v2180, %v2184
    %2187 = vmatprep.subr.mxu0 0.0
    %2188 = vmatpush1.msra.mxu0 %v1948
    %2189 = vmatprep.subr.mxu0 0.0
    %2190 = vmatpush1.msra.mxu0 %v1949
    %2191 = vmatprep.subr.mxu0 0.0
    %2192 = vmatpush1.msra.mxu0 %v1950
    %2193 = vmatprep.subr.mxu0 0.0
    %2194 = vmatpush1.msra.mxu0 %v1951
    %2195 = vmatprep.subr.mxu0 0.0
    %2196 = vmatpush1.msra.mxu0 %v1952
    %2197 = vmatprep.subr.mxu0 0.0
    %2198 = vmatpush1.msra.mxu0 %v1953
    %2199 = vmatprep.subr.mxu0 0.0
    %2200 = vmatpush1.msra.mxu0 %v1954
    %2201 = vmatprep.subr.mxu0 0.0
    %2202 = vmatpush1.msra.mxu0 %v1955
    %2203 = vmatprep.subr.mxu0 0.0
    %2204 = vmatpush1.msra.mxu0 0.0
    %2205 = vmatprep.subr.mxu0 0.0
    %2206 = vmatpush1.msra.mxu0 0.0
    %2207 = vmatprep.subr.mxu0 0.0
    %2208 = vmatpush1.msra.mxu0 0.0
    %2209 = vmatprep.subr.mxu0 0.0
    %2210 = vmatpush1.msra.mxu0 0.0
    %2211 = vmatprep.subr.mxu0 0.0
    %2212 = vmatpush1.msra.mxu0 0.0
    %2213 = vmatprep.subr.mxu0 0.0
    %2214 = vmatpush1.msra.mxu0 0.0
    %2215 = vmatprep.subr.mxu0 0.0
    %2216 = vmatpush1.msra.mxu0 0.0
    %2217 = vmatprep.subr.mxu0 0.0
    %2218 = vmatpush1.msra.mxu0 0.0
    %2219 = vmatprep.subr.mxu0 0.0
    %2220 = vmatpush1.msra.mxu0 0.0
    %2221 = vmatprep.subr.mxu0 0.0
    %2222 = vmatpush1.msra.mxu0 0.0
    %2223 = vmatprep.subr.mxu0 0.0
    %2224 = vmatpush1.msra.mxu0 0.0
    %2225 = vmatprep.subr.mxu0 0.0
    %2226 = vmatpush1.msra.mxu0 0.0
    %2227 = vmatprep.subr.mxu0 0.0
    %2228 = vmatpush1.msra.mxu0 0.0
    %2229 = vmatprep.subr.mxu0 0.0
    %2230 = vmatpush1.msra.mxu0 0.0
    %2231 = vmatprep.subr.mxu0 0.0
    %2232 = vmatpush1.msra.mxu0 0.0
    %2233 = vmatprep.subr.mxu0 0.0
    %2234 = vmatpush1.msra.mxu0 0.0
    %2235 = vmatprep.subr.mxu0 0.0
    %2236 = vmatpush1.msra.mxu0 0.0
    %2237 = vmatprep.subr.mxu0 0.0
    %2238 = vmatpush1.msra.mxu0 0.0
    %2239 = vmatprep.subr.mxu0 0.0
    %2240 = vmatpush1.msra.mxu0 0.0
    %2241 = vmatprep.subr.mxu0 0.0
    %2242 = vmatpush1.msra.mxu0 0.0
    %2243 = vmatprep.subr.mxu0 0.0
    %2244 = vmatpush1.msra.mxu0 0.0
    %2245 = vmatprep.subr.mxu0 0.0
    %2246 = vmatpush1.msra.mxu0 0.0
    %2247 = vmatprep.subr.mxu0 0.0
    %2248 = vmatpush1.msra.mxu0 0.0
    %2249 = vmatprep.subr.mxu0 0.0
    %2250 = vmatpush1.msra.mxu0 0.0
    %2251 = vmatprep.mubr.f32.mxu0 0.0
    %2252 = vmatmul.mubr.f32.gmra.mrb[0].mxu0 %v2089
    %v2253 = vpop.f32.mrb[0].mxu0
    %v2254 = vadd.f32 %v2185, %v2253
    %v2255 = vpop.f32.mrb[0].mxu0
    %2256 = vdwg.mxu0
    %v2257 = vld [vmem:[%s12] sm:$0xff]
    %v2258 = vld [vmem:[%s12 + $0x8] sm:$0xff]
    %v2259 = vld [vmem:[%s12 + $0x10] sm:$0xff]
    %v2260 = vld [vmem:[%s12 + $0x18] sm:$0xff]
    %v2261 = vld [vmem:[%s14] sm:$0x1]
    %v2263 = vlaneseq
    %v2264 = vshrl.u32 %v2263, 7
    %v2265 = vsub.s32 0, %v2264
    %v2266 = vrot.slane %v2261, %v2265
    %vm2268 = vcmask 261120
    %v2269 = vsel %vm2268, 0.0, 0
    %2271 = vmatprep.subr.mxu0 0.0
    %2272 = vmatpush1.msra.mxu0 %v2257
    %2273 = vmatprep.subr.mxu0 0.0
    %2274 = vmatpush1.msra.mxu0 %v2258
    %2275 = vmatprep.subr.mxu0 0.0
    %2276 = vmatpush1.msra.mxu0 %v2259
    %2277 = vmatprep.subr.mxu0 0.0
    %2278 = vmatpush1.msra.mxu0 %v2260
    %2279 = vmatprep.subr.mxu0 0.0
    %2280 = vmatpush1.msra.mxu0 0.0
    %2281 = vmatprep.subr.mxu0 0.0
    %2282 = vmatpush1.msra.mxu0 0.0
    %2283 = vmatprep.subr.mxu0 0.0
    %2284 = vmatpush1.msra.mxu0 0.0
    %2285 = vmatprep.subr.mxu0 0.0
    %2286 = vmatpush1.msra.mxu0 0.0
    %2287 = vmatprep.subr.mxu0 0.0
    %2288 = vmatpush1.msra.mxu0 0.0
    %2289 = vmatprep.subr.mxu0 0.0
    %2290 = vmatpush1.msra.mxu0 0.0
    %2291 = vmatprep.subr.mxu0 0.0
    %2292 = vmatpush1.msra.mxu0 0.0
    %2293 = vmatprep.subr.mxu0 0.0
    %2294 = vmatpush1.msra.mxu0 0.0
    %2295 = vmatprep.subr.mxu0 0.0
    %2296 = vmatpush1.msra.mxu0 0.0
    %2297 = vmatprep.subr.mxu0 0.0
    %2298 = vmatpush1.msra.mxu0 0.0
    %2299 = vmatprep.subr.mxu0 0.0
    %2300 = vmatpush1.msra.mxu0 0.0
    %2301 = vmatprep.subr.mxu0 0.0
    %2302 = vmatpush1.msra.mxu0 0.0
    %2303 = vmatprep.subr.mxu0 0.0
    %2304 = vmatpush1.msra.mxu0 0.0
    %2305 = vmatprep.subr.mxu0 0.0
    %2306 = vmatpush1.msra.mxu0 0.0
    %2307 = vmatprep.subr.mxu0 0.0
    %2308 = vmatpush1.msra.mxu0 0.0
    %2309 = vmatprep.subr.mxu0 0.0
    %2310 = vmatpush1.msra.mxu0 0.0
    %2311 = vmatprep.subr.mxu0 0.0
    %2312 = vmatpush1.msra.mxu0 0.0
    %2313 = vmatprep.subr.mxu0 0.0
    %2314 = vmatpush1.msra.mxu0 0.0
    %2315 = vmatprep.subr.mxu0 0.0
    %2316 = vmatpush1.msra.mxu0 0.0
    %2317 = vmatprep.subr.mxu0 0.0
    %2318 = vmatpush1.msra.mxu0 0.0
    %2319 = vmatprep.subr.mxu0 0.0
    %2320 = vmatpush1.msra.mxu0 0.0
    %2321 = vmatprep.subr.mxu0 0.0
    %2322 = vmatpush1.msra.mxu0 0.0
    %2323 = vmatprep.subr.mxu0 0.0
    %2324 = vmatpush1.msra.mxu0 0.0
    %2325 = vmatprep.subr.mxu0 0.0
    %2326 = vmatpush1.msra.mxu0 0.0
    %2327 = vmatprep.subr.mxu0 0.0
    %2328 = vmatpush1.msra.mxu0 0.0
    %2329 = vmatprep.subr.mxu0 0.0
    %2330 = vmatpush1.msra.mxu0 0.0
    %2331 = vmatprep.subr.mxu0 0.0
    %2332 = vmatpush1.msra.mxu0 0.0
    %2333 = vmatprep.subr.mxu0 0.0
    %2334 = vmatpush1.msra.mxu0 0.0
    %2335 = vmatprep.mubr.f32.mxu0 0.0
    %2336 = vmatmul.mubr.f32.gmra.mrb[0].mxu0 %v2269
    %v2337 = vpop.f32.mrb[0].mxu0
    %v2338 = vadd.f32 %v2266, %v2337
    %v2339 = vpop.f32.mrb[0].mxu0
    %2340 = vdwg.mxu0
    %v2341 = vadd.f32 %v2254, %v2338
    %v2342 = vxor.u32 %v2341, 2147483648
    %v2343 = vmul.f32 %v2342, 1.442695
    %v2344 = vpow.pop %v2343
    %v2345 = vadd.f32 %v2344, 1.0
    %v2346 = vrcp.pop %v2345
    %v2347 = vmul.f32 1.0, %v2346
    %2349 = vrot.lane.b32.xlu0 %v2338, 64
    %v2350 = vpop.permute.xlu0 %2349
    %v2352 = vmul.f32 %v2347, %v2350
    %2354 = vrot.lane.b32.xlu0 %v2352, 64
    %v2355 = vpop.permute.xlu0 %2354
    %v2357 = vadd.f32 %v2254, %v2355
    %v2358 = vtanh.pop %v2357
    %v2359 = vsub.f32 1.0, %v2347
    %2361 = vrot.lane.b32.xlu0 %v2358, 96
    %v2362 = vpop.permute.xlu0 %2361
    %v2364 = vmul.f32 %v2359, %v2362
    %v2365 = vmul.f32 %v2347, 0.0
    %v2366 = vadd.f32 %v2364, %v2365
    %s2367 = smul.u32 2, 2
    %s2368 = smul.addr %s2367, 8
    %s2369 = scalar_lea.vmem [#allocation5], %s2368
    %v2370 = vld [vmem:[%s2369] sm:$0xff]
    %v2371 = vld [vmem:[%s2369 + $0x8] sm:$0xff]
    %2373 = vrot.lane.b32.xlu0 %v2179, 64
    %v2374 = vpop.permute.xlu0 %2373
    %v2375 = vsel %vm169, %v2374, 0
    %2377 = vmatprep.subr.mxu0 %v1962
    %2378 = vmatpush1.msra.mxu0 %v1961
    %2379 = vmatprep.subr.mxu0 %v1964
    %2380 = vmatpush1.msra.mxu0 %v1963
    %2381 = vmatprep.subr.mxu0 %v1966
    %2382 = vmatpush1.msra.mxu0 %v1965
    %2383 = vmatprep.subr.mxu0 %v1968
    %2384 = vmatpush1.msra.mxu0 %v1967
    %2385 = vmatprep.subr.mxu0 %v1970
    %2386 = vmatpush1.msra.mxu0 %v1969
    %2387 = vmatprep.subr.mxu0 %v1972
    %2388 = vmatpush1.msra.mxu0 %v1971
    %2389 = vmatprep.subr.mxu0 %v1974
    %2390 = vmatpush1.msra.mxu0 %v1973
    %2391 = vmatprep.subr.mxu0 %v1976
    %2392 = vmatpush1.msra.mxu0 %v1975
    %2393 = vmatprep.subr.mxu0 0.0
    %2394 = vmatpush1.msra.mxu0 0.0
    %2395 = vmatprep.subr.mxu0 0.0
    %2396 = vmatpush1.msra.mxu0 0.0
    %2397 = vmatprep.subr.mxu0 0.0
    %2398 = vmatpush1.msra.mxu0 0.0
    %2399 = vmatprep.subr.mxu0 0.0
    %2400 = vmatpush1.msra.mxu0 0.0
    %2401 = vmatprep.subr.mxu0 0.0
    %2402 = vmatpush1.msra.mxu0 0.0
    %2403 = vmatprep.subr.mxu0 0.0
    %2404 = vmatpush1.msra.mxu0 0.0
    %2405 = vmatprep.subr.mxu0 0.0
    %2406 = vmatpush1.msra.mxu0 0.0
    %2407 = vmatprep.subr.mxu0 0.0
    %2408 = vmatpush1.msra.mxu0 0.0
    %2409 = vmatprep.subr.mxu0 0.0
    %2410 = vmatpush1.msra.mxu0 0.0
    %2411 = vmatprep.subr.mxu0 0.0
    %2412 = vmatpush1.msra.mxu0 0.0
    %2413 = vmatprep.subr.mxu0 0.0
    %2414 = vmatpush1.msra.mxu0 0.0
    %2415 = vmatprep.subr.mxu0 0.0
    %2416 = vmatpush1.msra.mxu0 0.0
    %2417 = vmatprep.subr.mxu0 0.0
    %2418 = vmatpush1.msra.mxu0 0.0
    %2419 = vmatprep.subr.mxu0 0.0
    %2420 = vmatpush1.msra.mxu0 0.0
    %2421 = vmatprep.subr.mxu0 0.0
    %2422 = vmatpush1.msra.mxu0 0.0
    %2423 = vmatprep.subr.mxu0 0.0
    %2424 = vmatpush1.msra.mxu0 0.0
    %2425 = vmatprep.subr.mxu0 0.0
    %2426 = vmatpush1.msra.mxu0 0.0
    %2427 = vmatprep.subr.mxu0 0.0
    %2428 = vmatpush1.msra.mxu0 0.0
    %2429 = vmatprep.subr.mxu0 0.0
    %2430 = vmatpush1.msra.mxu0 0.0
    %2431 = vmatprep.subr.mxu0 0.0
    %2432 = vmatpush1.msra.mxu0 0.0
    %2433 = vmatprep.subr.mxu0 0.0
    %2434 = vmatpush1.msra.mxu0 0.0
    %2435 = vmatprep.subr.mxu0 0.0
    %2436 = vmatpush1.msra.mxu0 0.0
    %2437 = vmatprep.subr.mxu0 0.0
    %2438 = vmatpush1.msra.mxu0 0.0
    %2439 = vmatprep.subr.mxu0 0.0
    %2440 = vmatpush1.msra.mxu0 0.0
    %2441 = vmatprep.mubr.f32.mxu0 0.0
    %2442 = vmatmul.mubr.f32.gmra.mrb[0].mxu0 %v2375
    %v2443 = vpop.f32.mrb[0].mxu0
    %v2444 = vadd.f32 %v1982, %v2443
    %v2445 = vpop.f32.mrb[0].mxu0
    %v2446 = vadd.f32 %v1986, %v2445
    %2447 = vdwg.mxu0
    %v2448 = vadd.f32 %v2370, %v2444
    %v2449 = vxor.u32 %v2448, 2147483648
    %v2450 = vmul.f32 %v2449, 1.442695
    %v2451 = vpow.pop %v2450
    %v2452 = vadd.f32 %v2451, 1.0
    %v2453 = vrcp.pop %v2452
    %v2454 = vmul.f32 1.0, %v2453
    %v2455 = vmul.f32 %v2454, %v2446
    %v2456 = vadd.f32 %v2371, %v2455
    %v2457 = vtanh.pop %v2456
    %v2458 = vsub.f32 1.0, %v2454
    %2460 = vrot.lane.b32.xlu0 %v2457, 64
    %v2461 = vpop.permute.xlu0 %2460
    %v2463 = vmul.f32 %v2458, %v2461
    %v2464 = vmul.f32 %v2454, %v2179
    %v2465 = vadd.f32 %v2463, %v2464
    %2466 = vmatprep.subr.mxu0 0.0
    %2467 = vmatpush1.msra.mxu0 %v1948
    %2468 = vmatprep.subr.mxu0 0.0
    %2469 = vmatpush1.msra.mxu0 %v1949
    %2470 = vmatprep.subr.mxu0 0.0
    %2471 = vmatpush1.msra.mxu0 %v1950
    %2472 = vmatprep.subr.mxu0 0.0
    %2473 = vmatpush1.msra.mxu0 %v1951
    %2474 = vmatprep.subr.mxu0 0.0
    %2475 = vmatpush1.msra.mxu0 %v1952
    %2476 = vmatprep.subr.mxu0 0.0
    %2477 = vmatpush1.msra.mxu0 %v1953
    %2478 = vmatprep.subr.mxu0 0.0
    %2479 = vmatpush1.msra.mxu0 %v1954
    %2480 = vmatprep.subr.mxu0 0.0
    %2481 = vmatpush1.msra.mxu0 %v1955
    %2482 = vmatprep.subr.mxu0 0.0
    %2483 = vmatpush1.msra.mxu0 0.0
    %2484 = vmatprep.subr.mxu0 0.0
    %2485 = vmatpush1.msra.mxu0 0.0
    %2486 = vmatprep.subr.mxu0 0.0
    %2487 = vmatpush1.msra.mxu0 0.0
    %2488 = vmatprep.subr.mxu0 0.0
    %2489 = vmatpush1.msra.mxu0 0.0
    %2490 = vmatprep.subr.mxu0 0.0
    %2491 = vmatpush1.msra.mxu0 0.0
    %2492 = vmatprep.subr.mxu0 0.0
    %2493 = vmatpush1.msra.mxu0 0.0
    %2494 = vmatprep.subr.mxu0 0.0
    %2495 = vmatpush1.msra.mxu0 0.0
    %2496 = vmatprep.subr.mxu0 0.0
    %2497 = vmatpush1.msra.mxu0 0.0
    %2498 = vmatprep.subr.mxu0 0.0
    %2499 = vmatpush1.msra.mxu0 0.0
    %2500 = vmatprep.subr.mxu0 0.0
    %2501 = vmatpush1.msra.mxu0 0.0
    %2502 = vmatprep.subr.mxu0 0.0
    %2503 = vmatpush1.msra.mxu0 0.0
    %2504 = vmatprep.subr.mxu0 0.0
    %2505 = vmatpush1.msra.mxu0 0.0
    %2506 = vmatprep.subr.mxu0 0.0
    %2507 = vmatpush1.msra.mxu0 0.0
    %2508 = vmatprep.subr.mxu0 0.0
    %2509 = vmatpush1.msra.mxu0 0.0
    %2510 = vmatprep.subr.mxu0 0.0
    %2511 = vmatpush1.msra.mxu0 0.0
    %2512 = vmatprep.subr.mxu0 0.0
    %2513 = vmatpush1.msra.mxu0 0.0
    %2514 = vmatprep.subr.mxu0 0.0
    %2515 = vmatpush1.msra.mxu0 0.0
    %2516 = vmatprep.subr.mxu0 0.0
    %2517 = vmatpush1.msra.mxu0 0.0
    %2518 = vmatprep.subr.mxu0 0.0
    %2519 = vmatpush1.msra.mxu0 0.0
    %2520 = vmatprep.subr.mxu0 0.0
    %2521 = vmatpush1.msra.mxu0 0.0
    %2522 = vmatprep.subr.mxu0 0.0
    %2523 = vmatpush1.msra.mxu0 0.0
    %2524 = vmatprep.subr.mxu0 0.0
    %2525 = vmatpush1.msra.mxu0 0.0
    %2526 = vmatprep.subr.mxu0 0.0
    %2527 = vmatpush1.msra.mxu0 0.0
    %2528 = vmatprep.subr.mxu0 0.0
    %2529 = vmatpush1.msra.mxu0 0.0
    %2530 = vmatprep.mubr.f32.mxu0 0.0
    %2531 = vmatmul.mubr.f32.gmra.mrb[0].mxu0 %v2375
    %v2532 = vpop.f32.mrb[0].mxu0
    %v2533 = vadd.f32 %v2185, %v2532
    %v2534 = vpop.f32.mrb[0].mxu0
    %2535 = vdwg.mxu0
    %2537 = vrot.lane.b32.xlu0 %v2366, 96
    %v2538 = vpop.permute.xlu0 %2537
    %v2539 = vsel %vm2268, %v2538, 0
    %2541 = vmatprep.subr.mxu0 0.0
    %2542 = vmatpush1.msra.mxu0 %v2257
    %2543 = vmatprep.subr.mxu0 0.0
    %2544 = vmatpush1.msra.mxu0 %v2258
    %2545 = vmatprep.subr.mxu0 0.0
    %2546 = vmatpush1.msra.mxu0 %v2259
    %2547 = vmatprep.subr.mxu0 0.0
    %2548 = vmatpush1.msra.mxu0 %v2260
    %2549 = vmatprep.subr.mxu0 0.0
    %2550 = vmatpush1.msra.mxu0 0.0
    %2551 = vmatprep.subr.mxu0 0.0
    %2552 = vmatpush1.msra.mxu0 0.0
    %2553 = vmatprep.subr.mxu0 0.0
    %2554 = vmatpush1.msra.mxu0 0.0
    %2555 = vmatprep.subr.mxu0 0.0
    %2556 = vmatpush1.msra.mxu0 0.0
    %2557 = vmatprep.subr.mxu0 0.0
    %2558 = vmatpush1.msra.mxu0 0.0
    %2559 = vmatprep.subr.mxu0 0.0
    %2560 = vmatpush1.msra.mxu0 0.0
    %2561 = vmatprep.subr.mxu0 0.0
    %2562 = vmatpush1.msra.mxu0 0.0
    %2563 = vmatprep.subr.mxu0 0.0
    %2564 = vmatpush1.msra.mxu0 0.0
    %2565 = vmatprep.subr.mxu0 0.0
    %2566 = vmatpush1.msra.mxu0 0.0
    %2567 = vmatprep.subr.mxu0 0.0
    %2568 = vmatpush1.msra.mxu0 0.0
    %2569 = vmatprep.subr.mxu0 0.0
    %2570 = vmatpush1.msra.mxu0 0.0
    %2571 = vmatprep.subr.mxu0 0.0
    %2572 = vmatpush1.msra.mxu0 0.0
    %2573 = vmatprep.subr.mxu0 0.0
    %2574 = vmatpush1.msra.mxu0 0.0
    %2575 = vmatprep.subr.mxu0 0.0
    %2576 = vmatpush1.msra.mxu0 0.0
    %2577 = vmatprep.subr.mxu0 0.0
    %2578 = vmatpush1.msra.mxu0 0.0
    %2579 = vmatprep.subr.mxu0 0.0
    %2580 = vmatpush1.msra.mxu0 0.0
    %2581 = vmatprep.subr.mxu0 0.0
    %2582 = vmatpush1.msra.mxu0 0.0
    %2583 = vmatprep.subr.mxu0 0.0
    %2584 = vmatpush1.msra.mxu0 0.0
    %2585 = vmatprep.subr.mxu0 0.0
    %2586 = vmatpush1.msra.mxu0 0.0
    %2587 = vmatprep.subr.mxu0 0.0
    %2588 = vmatpush1.msra.mxu0 0.0
    %2589 = vmatprep.subr.mxu0 0.0
    %2590 = vmatpush1.msra.mxu0 0.0
    %2591 = vmatprep.subr.mxu0 0.0
    %2592 = vmatpush1.msra.mxu0 0.0
    %2593 = vmatprep.subr.mxu0 0.0
    %2594 = vmatpush1.msra.mxu0 0.0
    %2595 = vmatprep.subr.mxu0 0.0
    %2596 = vmatpush1.msra.mxu0 0.0
    %2597 = vmatprep.subr.mxu0 0.0
    %2598 = vmatpush1.msra.mxu0 0.0
    %2599 = vmatprep.subr.mxu0 0.0
    %2600 = vmatpush1.msra.mxu0 0.0
    %2601 = vmatprep.subr.mxu0 0.0
    %2602 = vmatpush1.msra.mxu0 0.0
    %2603 = vmatprep.subr.mxu0 0.0
    %2604 = vmatpush1.msra.mxu0 0.0
    %2605 = vmatprep.mubr.f32.mxu0 0.0
    %2606 = vmatmul.mubr.f32.gmra.mrb[0].mxu0 %v2539
    %v2607 = vpop.f32.mrb[0].mxu0
    %v2608 = vadd.f32 %v2266, %v2607
    %v2609 = vpop.f32.mrb[0].mxu0
    %2610 = vdwg.mxu0
    %v2611 = vadd.f32 %v2533, %v2608
    %v2612 = vxor.u32 %v2611, 2147483648
    %v2613 = vmul.f32 %v2612, 1.442695
    %v2614 = vpow.pop %v2613
    %v2615 = vadd.f32 %v2614, 1.0
    %v2616 = vrcp.pop %v2615
    %v2617 = vmul.f32 1.0, %v2616
    %2619 = vrot.lane.b32.xlu0 %v2608, 64
    %v2620 = vpop.permute.xlu0 %2619
    %v2622 = vmul.f32 %v2617, %v2620
    %2624 = vrot.lane.b32.xlu0 %v2622, 64
    %v2625 = vpop.permute.xlu0 %2624
    %v2627 = vadd.f32 %v2533, %v2625
    %v2628 = vtanh.pop %v2627
    %v2629 = vsub.f32 1.0, %v2617
    %2631 = vrot.lane.b32.xlu0 %v2628, 96
    %v2632 = vpop.permute.xlu0 %2631
    %v2634 = vmul.f32 %v2629, %v2632
    %v2635 = vmul.f32 %v2617, %v2366
    %v2636 = vadd.f32 %v2634, %v2635
    %s2637 = smul.u32 3, 2
    %s2638 = smul.addr %s2637, 8
    %s2639 = scalar_lea.vmem [#allocation5], %s2638
    %v2640 = vld [vmem:[%s2639] sm:$0xff]
    %v2641 = vld [vmem:[%s2639 + $0x8] sm:$0xff]
    %2643 = vrot.lane.b32.xlu0 %v2465, 64
    %v2644 = vpop.permute.xlu0 %2643
    %v2645 = vsel %vm169, %v2644, 0
    %2647 = vmatprep.subr.mxu0 %v1962
    %2648 = vmatpush1.msra.mxu0 %v1961
    %2649 = vmatprep.subr.mxu0 %v1964
    %2650 = vmatpush1.msra.mxu0 %v1963
    %2651 = vmatprep.subr.mxu0 %v1966
    %2652 = vmatpush1.msra.mxu0 %v1965
    %2653 = vmatprep.subr.mxu0 %v1968
    %2654 = vmatpush1.msra.mxu0 %v1967
    %2655 = vmatprep.subr.mxu0 %v1970
    %2656 = vmatpush1.msra.mxu0 %v1969
    %2657 = vmatprep.subr.mxu0 %v1972
    %2658 = vmatpush1.msra.mxu0 %v1971
    %2659 = vmatprep.subr.mxu0 %v1974
    %2660 = vmatpush1.msra.mxu0 %v1973
    %2661 = vmatprep.subr.mxu0 %v1976
    %2662 = vmatpush1.msra.mxu0 %v1975
    %2663 = vmatprep.subr.mxu0 0.0
    %2664 = vmatpush1.msra.mxu0 0.0
    %2665 = vmatprep.subr.mxu0 0.0
    %2666 = vmatpush1.msra.mxu0 0.0
    %2667 = vmatprep.subr.mxu0 0.0
    %2668 = vmatpush1.msra.mxu0 0.0
    %2669 = vmatprep.subr.mxu0 0.0
    %2670 = vmatpush1.msra.mxu0 0.0
    %2671 = vmatprep.subr.mxu0 0.0
    %2672 = vmatpush1.msra.mxu0 0.0
    %2673 = vmatprep.subr.mxu0 0.0
    %2674 = vmatpush1.msra.mxu0 0.0
    %2675 = vmatprep.subr.mxu0 0.0
    %2676 = vmatpush1.msra.mxu0 0.0
    %2677 = vmatprep.subr.mxu0 0.0
    %2678 = vmatpush1.msra.mxu0 0.0
    %2679 = vmatprep.subr.mxu0 0.0
    %2680 = vmatpush1.msra.mxu0 0.0
    %2681 = vmatprep.subr.mxu0 0.0
    %2682 = vmatpush1.msra.mxu0 0.0
    %2683 = vmatprep.subr.mxu0 0.0
    %2684 = vmatpush1.msra.mxu0 0.0
    %2685 = vmatprep.subr.mxu0 0.0
    %2686 = vmatpush1.msra.mxu0 0.0
    %2687 = vmatprep.subr.mxu0 0.0
    %2688 = vmatpush1.msra.mxu0 0.0
    %2689 = vmatprep.subr.mxu0 0.0
    %2690 = vmatpush1.msra.mxu0 0.0
    %2691 = vmatprep.subr.mxu0 0.0
    %2692 = vmatpush1.msra.mxu0 0.0
    %2693 = vmatprep.subr.mxu0 0.0
    %2694 = vmatpush1.msra.mxu0 0.0
    %2695 = vmatprep.subr.mxu0 0.0
    %2696 = vmatpush1.msra.mxu0 0.0
    %2697 = vmatprep.subr.mxu0 0.0
    %2698 = vmatpush1.msra.mxu0 0.0
    %2699 = vmatprep.subr.mxu0 0.0
    %2700 = vmatpush1.msra.mxu0 0.0
    %2701 = vmatprep.subr.mxu0 0.0
    %2702 = vmatpush1.msra.mxu0 0.0
    %2703 = vmatprep.subr.mxu0 0.0
    %2704 = vmatpush1.msra.mxu0 0.0
    %2705 = vmatprep.subr.mxu0 0.0
    %2706 = vmatpush1.msra.mxu0 0.0
    %2707 = vmatprep.subr.mxu0 0.0
    %2708 = vmatpush1.msra.mxu0 0.0
    %2709 = vmatprep.subr.mxu0 0.0
    %2710 = vmatpush1.msra.mxu0 0.0
    %2711 = vmatprep.mubr.f32.mxu0 0.0
    %2712 = vmatmul.mubr.f32.gmra.mrb[0].mxu0 %v2645
    %v2713 = vpop.f32.mrb[0].mxu0
    %v2714 = vadd.f32 %v1982, %v2713
    %v2715 = vpop.f32.mrb[0].mxu0
    %v2716 = vadd.f32 %v1986, %v2715
    %2717 = vdwg.mxu0
    %v2718 = vadd.f32 %v2640, %v2714
    %v2719 = vxor.u32 %v2718, 2147483648
    %v2720 = vmul.f32 %v2719, 1.442695
    %v2721 = vpow.pop %v2720
    %v2722 = vadd.f32 %v2721, 1.0
    %v2723 = vrcp.pop %v2722
    %v2724 = vmul.f32 1.0, %v2723
    %v2725 = vmul.f32 %v2724, %v2716
    %v2726 = vadd.f32 %v2641, %v2725
    %v2727 = vtanh.pop %v2726
    %v2728 = vsub.f32 1.0, %v2724
    %2730 = vrot.lane.b32.xlu0 %v2727, 64
    %v2731 = vpop.permute.xlu0 %2730
    %v2733 = vmul.f32 %v2728, %v2731
    %v2734 = vmul.f32 %v2724, %v2465
    %v2735 = vadd.f32 %v2733, %v2734
    %2736 = vmatprep.subr.mxu0 0.0
    %2737 = vmatpush1.msra.mxu0 %v1948
    %2738 = vmatprep.subr.mxu0 0.0
    %2739 = vmatpush1.msra.mxu0 %v1949
    %2740 = vmatprep.subr.mxu0 0.0
    %2741 = vmatpush1.msra.mxu0 %v1950
    %2742 = vmatprep.subr.mxu0 0.0
    %2743 = vmatpush1.msra.mxu0 %v1951
    %2744 = vmatprep.subr.mxu0 0.0
    %2745 = vmatpush1.msra.mxu0 %v1952
    %2746 = vmatprep.subr.mxu0 0.0
    %2747 = vmatpush1.msra.mxu0 %v1953
    %2748 = vmatprep.subr.mxu0 0.0
    %2749 = vmatpush1.msra.mxu0 %v1954
    %2750 = vmatprep.subr.mxu0 0.0
    %2751 = vmatpush1.msra.mxu0 %v1955
    %2752 = vmatprep.subr.mxu0 0.0
    %2753 = vmatpush1.msra.mxu0 0.0
    %2754 = vmatprep.subr.mxu0 0.0
    %2755 = vmatpush1.msra.mxu0 0.0
    %2756 = vmatprep.subr.mxu0 0.0
    %2757 = vmatpush1.msra.mxu0 0.0
    %2758 = vmatprep.subr.mxu0 0.0
    %2759 = vmatpush1.msra.mxu0 0.0
    %2760 = vmatprep.subr.mxu0 0.0
    %2761 = vmatpush1.msra.mxu0 0.0
    %2762 = vmatprep.subr.mxu0 0.0
    %2763 = vmatpush1.msra.mxu0 0.0
    %2764 = vmatprep.subr.mxu0 0.0
    %2765 = vmatpush1.msra.mxu0 0.0
    %2766 = vmatprep.subr.mxu0 0.0
    %2767 = vmatpush1.msra.mxu0 0.0
    %2768 = vmatprep.subr.mxu0 0.0
    %2769 = vmatpush1.msra.mxu0 0.0
    %2770 = vmatprep.subr.mxu0 0.0
    %2771 = vmatpush1.msra.mxu0 0.0
    %2772 = vmatprep.subr.mxu0 0.0
    %2773 = vmatpush1.msra.mxu0 0.0
    %2774 = vmatprep.subr.mxu0 0.0
    %2775 = vmatpush1.msra.mxu0 0.0
    %2776 = vmatprep.subr.mxu0 0.0
    %2777 = vmatpush1.msra.mxu0 0.0
    %2778 = vmatprep.subr.mxu0 0.0
    %2779 = vmatpush1.msra.mxu0 0.0
    %2780 = vmatprep.subr.mxu0 0.0
    %2781 = vmatpush1.msra.mxu0 0.0
    %2782 = vmatprep.subr.mxu0 0.0
    %2783 = vmatpush1.msra.mxu0 0.0
    %2784 = vmatprep.subr.mxu0 0.0
    %2785 = vmatpush1.msra.mxu0 0.0
    %2786 = vmatprep.subr.mxu0 0.0
    %2787 = vmatpush1.msra.mxu0 0.0
    %2788 = vmatprep.subr.mxu0 0.0
    %2789 = vmatpush1.msra.mxu0 0.0
    %2790 = vmatprep.subr.mxu0 0.0
    %2791 = vmatpush1.msra.mxu0 0.0
    %2792 = vmatprep.subr.mxu0 0.0
    %2793 = vmatpush1.msra.mxu0 0.0
    %2794 = vmatprep.subr.mxu0 0.0
    %2795 = vmatpush1.msra.mxu0 0.0
    %2796 = vmatprep.subr.mxu0 0.0
    %2797 = vmatpush1.msra.mxu0 0.0
    %2798 = vmatprep.subr.mxu0 0.0
    %2799 = vmatpush1.msra.mxu0 0.0
    %2800 = vmatprep.mubr.f32.mxu0 0.0
    %2801 = vmatmul.mubr.f32.gmra.mrb[0].mxu0 %v2645
    %v2802 = vpop.f32.mrb[0].mxu0
    %v2803 = vadd.f32 %v2185, %v2802
    %v2804 = vpop.f32.mrb[0].mxu0
    %2805 = vdwg.mxu0
    %2807 = vrot.lane.b32.xlu0 %v2636, 96
    %v2808 = vpop.permute.xlu0 %2807
    %v2809 = vsel %vm2268, %v2808, 0
    %2811 = vmatprep.subr.mxu0 0.0
    %2812 = vmatpush1.msra.mxu0 %v2257
    %2813 = vmatprep.subr.mxu0 0.0
    %2814 = vmatpush1.msra.mxu0 %v2258
    %2815 = vmatprep.subr.mxu0 0.0
    %2816 = vmatpush1.msra.mxu0 %v2259
    %2817 = vmatprep.subr.mxu0 0.0
    %2818 = vmatpush1.msra.mxu0 %v2260
    %2819 = vmatprep.subr.mxu0 0.0
    %2820 = vmatpush1.msra.mxu0 0.0
    %2821 = vmatprep.subr.mxu0 0.0
    %2822 = vmatpush1.msra.mxu0 0.0
    %2823 = vmatprep.subr.mxu0 0.0
    %2824 = vmatpush1.msra.mxu0 0.0
    %2825 = vmatprep.subr.mxu0 0.0
    %2826 = vmatpush1.msra.mxu0 0.0
    %2827 = vmatprep.subr.mxu0 0.0
    %2828 = vmatpush1.msra.mxu0 0.0
    %2829 = vmatprep.subr.mxu0 0.0
    %2830 = vmatpush1.msra.mxu0 0.0
    %2831 = vmatprep.subr.mxu0 0.0
    %2832 = vmatpush1.msra.mxu0 0.0
    %2833 = vmatprep.subr.mxu0 0.0
    %2834 = vmatpush1.msra.mxu0 0.0
    %2835 = vmatprep.subr.mxu0 0.0
    %2836 = vmatpush1.msra.mxu0 0.0
    %2837 = vmatprep.subr.mxu0 0.0
    %2838 = vmatpush1.msra.mxu0 0.0
    %2839 = vmatprep.subr.mxu0 0.0
    %2840 = vmatpush1.msra.mxu0 0.0
    %2841 = vmatprep.subr.mxu0 0.0
    %2842 = vmatpush1.msra.mxu0 0.0
    %2843 = vmatprep.subr.mxu0 0.0
    %2844 = vmatpush1.msra.mxu0 0.0
    %2845 = vmatprep.subr.mxu0 0.0
    %2846 = vmatpush1.msra.mxu0 0.0
    %2847 = vmatprep.subr.mxu0 0.0
    %2848 = vmatpush1.msra.mxu0 0.0
    %2849 = vmatprep.subr.mxu0 0.0
    %2850 = vmatpush1.msra.mxu0 0.0
    %2851 = vmatprep.subr.mxu0 0.0
    %2852 = vmatpush1.msra.mxu0 0.0
    %2853 = vmatprep.subr.mxu0 0.0
    %2854 = vmatpush1.msra.mxu0 0.0
    %2855 = vmatprep.subr.mxu0 0.0
    %2856 = vmatpush1.msra.mxu0 0.0
    %2857 = vmatprep.subr.mxu0 0.0
    %2858 = vmatpush1.msra.mxu0 0.0
    %2859 = vmatprep.subr.mxu0 0.0
    %2860 = vmatpush1.msra.mxu0 0.0
    %2861 = vmatprep.subr.mxu0 0.0
    %2862 = vmatpush1.msra.mxu0 0.0
    %2863 = vmatprep.subr.mxu0 0.0
    %2864 = vmatpush1.msra.mxu0 0.0
    %2865 = vmatprep.subr.mxu0 0.0
    %2866 = vmatpush1.msra.mxu0 0.0
    %2867 = vmatprep.subr.mxu0 0.0
    %2868 = vmatpush1.msra.mxu0 0.0
    %2869 = vmatprep.subr.mxu0 0.0
    %2870 = vmatpush1.msra.mxu0 0.0
    %2871 = vmatprep.subr.mxu0 0.0
    %2872 = vmatpush1.msra.mxu0 0.0
    %2873 = vmatprep.subr.mxu0 0.0
    %2874 = vmatpush1.msra.mxu0 0.0
    %2875 = vmatprep.mubr.f32.mxu0 0.0
    %2876 = vmatmul.mubr.f32.gmra.mrb[0].mxu0 %v2809
    %v2877 = vpop.f32.mrb[0].mxu0
    %v2878 = vadd.f32 %v2266, %v2877
    %v2879 = vpop.f32.mrb[0].mxu0
    %2880 = vdwg.mxu0
    %v2881 = vadd.f32 %v2803, %v2878
    %v2882 = vxor.u32 %v2881, 2147483648
    %v2883 = vmul.f32 %v2882, 1.442695
    %v2884 = vpow.pop %v2883
    %v2885 = vadd.f32 %v2884, 1.0
    %v2886 = vrcp.pop %v2885
    %v2887 = vmul.f32 1.0, %v2886
    %2889 = vrot.lane.b32.xlu0 %v2878, 64
    %v2890 = vpop.permute.xlu0 %2889
    %v2892 = vmul.f32 %v2887, %v2890
    %2894 = vrot.lane.b32.xlu0 %v2892, 64
    %v2895 = vpop.permute.xlu0 %2894
    %v2897 = vadd.f32 %v2803, %v2895
    %v2898 = vtanh.pop %v2897
    %v2899 = vsub.f32 1.0, %v2887
    %2901 = vrot.lane.b32.xlu0 %v2898, 96
    %v2902 = vpop.permute.xlu0 %2901
    %v2904 = vmul.f32 %v2899, %v2902
    %v2905 = vmul.f32 %v2887, %v2636
    %v2906 = vadd.f32 %v2904, %v2905
    %s2907 = smul.u32 4, 2
    %s2908 = smul.addr %s2907, 8
    %s2909 = scalar_lea.vmem [#allocation5], %s2908
    %v2910 = vld [vmem:[%s2909] sm:$0xff]
    %v2911 = vld [vmem:[%s2909 + $0x8] sm:$0xff]
    %2913 = vrot.lane.b32.xlu0 %v2735, 64
    %v2914 = vpop.permute.xlu0 %2913
    %v2915 = vsel %vm169, %v2914, 0
    %2917 = vmatprep.subr.mxu0 %v1962
    %2918 = vmatpush1.msra.mxu0 %v1961
    %2919 = vmatprep.subr.mxu0 %v1964
    %2920 = vmatpush1.msra.mxu0 %v1963
    %2921 = vmatprep.subr.mxu0 %v1966
    %2922 = vmatpush1.msra.mxu0 %v1965
    %2923 = vmatprep.subr.mxu0 %v1968
    %2924 = vmatpush1.msra.mxu0 %v1967
    %2925 = vmatprep.subr.mxu0 %v1970
    %2926 = vmatpush1.msra.mxu0 %v1969
    %2927 = vmatprep.subr.mxu0 %v1972
    %2928 = vmatpush1.msra.mxu0 %v1971
    %2929 = vmatprep.subr.mxu0 %v1974
    %2930 = vmatpush1.msra.mxu0 %v1973
    %2931 = vmatprep.subr.mxu0 %v1976
    %2932 = vmatpush1.msra.mxu0 %v1975
    %2933 = vmatprep.subr.mxu0 0.0
    %2934 = vmatpush1.msra.mxu0 0.0
    %2935 = vmatprep.subr.mxu0 0.0
    %2936 = vmatpush1.msra.mxu0 0.0
    %2937 = vmatprep.subr.mxu0 0.0
    %2938 = vmatpush1.msra.mxu0 0.0
    %2939 = vmatprep.subr.mxu0 0.0
    %2940 = vmatpush1.msra.mxu0 0.0
    %2941 = vmatprep.subr.mxu0 0.0
    %2942 = vmatpush1.msra.mxu0 0.0
    %2943 = vmatprep.subr.mxu0 0.0
    %2944 = vmatpush1.msra.mxu0 0.0
    %2945 = vmatprep.subr.mxu0 0.0
    %2946 = vmatpush1.msra.mxu0 0.0
    %2947 = vmatprep.subr.mxu0 0.0
    %2948 = vmatpush1.msra.mxu0 0.0
    %2949 = vmatprep.subr.mxu0 0.0
    %2950 = vmatpush1.msra.mxu0 0.0
    %2951 = vmatprep.subr.mxu0 0.0
    %2952 = vmatpush1.msra.mxu0 0.0
    %2953 = vmatprep.subr.mxu0 0.0
    %2954 = vmatpush1.msra.mxu0 0.0
    %2955 = vmatprep.subr.mxu0 0.0
    %2956 = vmatpush1.msra.mxu0 0.0
    %2957 = vmatprep.subr.mxu0 0.0
    %2958 = vmatpush1.msra.mxu0 0.0
    %2959 = vmatprep.subr.mxu0 0.0
    %2960 = vmatpush1.msra.mxu0 0.0
    %2961 = vmatprep.subr.mxu0 0.0
    %2962 = vmatpush1.msra.mxu0 0.0
    %2963 = vmatprep.subr.mxu0 0.0
    %2964 = vmatpush1.msra.mxu0 0.0
    %2965 = vmatprep.subr.mxu0 0.0
    %2966 = vmatpush1.msra.mxu0 0.0
    %2967 = vmatprep.subr.mxu0 0.0
    %2968 = vmatpush1.msra.mxu0 0.0
    %2969 = vmatprep.subr.mxu0 0.0
    %2970 = vmatpush1.msra.mxu0 0.0
    %2971 = vmatprep.subr.mxu0 0.0
    %2972 = vmatpush1.msra.mxu0 0.0
    %2973 = vmatprep.subr.mxu0 0.0
    %2974 = vmatpush1.msra.mxu0 0.0
    %2975 = vmatprep.subr.mxu0 0.0
    %2976 = vmatpush1.msra.mxu0 0.0
    %2977 = vmatprep.subr.mxu0 0.0
    %2978 = vmatpush1.msra.mxu0 0.0
    %2979 = vmatprep.subr.mxu0 0.0
    %2980 = vmatpush1.msra.mxu0 0.0
    %2981 = vmatprep.mubr.f32.mxu0 0.0
    %2982 = vmatmul.mubr.f32.gmra.mrb[0].mxu0 %v2915
    %v2983 = vpop.f32.mrb[0].mxu0
    %v2984 = vadd.f32 %v1982, %v2983
    %v2985 = vpop.f32.mrb[0].mxu0
    %v2986 = vadd.f32 %v1986, %v2985
    %2987 = vdwg.mxu0
    %v2988 = vadd.f32 %v2910, %v2984
    %v2989 = vxor.u32 %v2988, 2147483648
    %v2990 = vmul.f32 %v2989, 1.442695
    %v2991 = vpow.pop %v2990
    %v2992 = vadd.f32 %v2991, 1.0
    %v2993 = vrcp.pop %v2992
    %v2994 = vmul.f32 1.0, %v2993
    %v2995 = vmul.f32 %v2994, %v2986
    %v2996 = vadd.f32 %v2911, %v2995
    %v2997 = vtanh.pop %v2996
    %v2998 = vsub.f32 1.0, %v2994
    %3000 = vrot.lane.b32.xlu0 %v2997, 64
    %v3001 = vpop.permute.xlu0 %3000
    %v3003 = vmul.f32 %v2998, %v3001
    %v3004 = vmul.f32 %v2994, %v2735
    %v3005 = vadd.f32 %v3003, %v3004
    %3006 = vmatprep.subr.mxu0 0.0
    %3007 = vmatpush1.msra.mxu0 %v1948
    %3008 = vmatprep.subr.mxu0 0.0
    %3009 = vmatpush1.msra.mxu0 %v1949
    %3010 = vmatprep.subr.mxu0 0.0
    %3011 = vmatpush1.msra.mxu0 %v1950
    %3012 = vmatprep.subr.mxu0 0.0
    %3013 = vmatpush1.msra.mxu0 %v1951
    %3014 = vmatprep.subr.mxu0 0.0
    %3015 = vmatpush1.msra.mxu0 %v1952
    %3016 = vmatprep.subr.mxu0 0.0
    %3017 = vmatpush1.msra.mxu0 %v1953
    %3018 = vmatprep.subr.mxu0 0.0
    %3019 = vmatpush1.msra.mxu0 %v1954
    %3020 = vmatprep.subr.mxu0 0.0
    %3021 = vmatpush1.msra.mxu0 %v1955
    %3022 = vmatprep.subr.mxu0 0.0
    %3023 = vmatpush1.msra.mxu0 0.0
    %3024 = vmatprep.subr.mxu0 0.0
    %3025 = vmatpush1.msra.mxu0 0.0
    %3026 = vmatprep.subr.mxu0 0.0
    %3027 = vmatpush1.msra.mxu0 0.0
    %3028 = vmatprep.subr.mxu0 0.0
    %3029 = vmatpush1.msra.mxu0 0.0
    %3030 = vmatprep.subr.mxu0 0.0
    %3031 = vmatpush1.msra.mxu0 0.0
    %3032 = vmatprep.subr.mxu0 0.0
    %3033 = vmatpush1.msra.mxu0 0.0
    %3034 = vmatprep.subr.mxu0 0.0
    %3035 = vmatpush1.msra.mxu0 0.0
    %3036 = vmatprep.subr.mxu0 0.0
    %3037 = vmatpush1.msra.mxu0 0.0
    %3038 = vmatprep.subr.mxu0 0.0
    %3039 = vmatpush1.msra.mxu0 0.0
    %3040 = vmatprep.subr.mxu0 0.0
    %3041 = vmatpush1.msra.mxu0 0.0
    %3042 = vmatprep.subr.mxu0 0.0
    %3043 = vmatpush1.msra.mxu0 0.0
    %3044 = vmatprep.subr.mxu0 0.0
    %3045 = vmatpush1.msra.mxu0 0.0
    %3046 = vmatprep.subr.mxu0 0.0
    %3047 = vmatpush1.msra.mxu0 0.0
    %3048 = vmatprep.subr.mxu0 0.0
    %3049 = vmatpush1.msra.mxu0 0.0
    %3050 = vmatprep.subr.mxu0 0.0
    %3051 = vmatpush1.msra.mxu0 0.0
    %3052 = vmatprep.subr.mxu0 0.0
    %3053 = vmatpush1.msra.mxu0 0.0
    %3054 = vmatprep.subr.mxu0 0.0
    %3055 = vmatpush1.msra.mxu0 0.0
    %3056 = vmatprep.subr.mxu0 0.0
    %3057 = vmatpush1.msra.mxu0 0.0
    %3058 = vmatprep.subr.mxu0 0.0
    %3059 = vmatpush1.msra.mxu0 0.0
    %3060 = vmatprep.subr.mxu0 0.0
    %3061 = vmatpush1.msra.mxu0 0.0
    %3062 = vmatprep.subr.mxu0 0.0
    %3063 = vmatpush1.msra.mxu0 0.0
    %3064 = vmatprep.subr.mxu0 0.0
    %3065 = vmatpush1.msra.mxu0 0.0
    %3066 = vmatprep.subr.mxu0 0.0
    %3067 = vmatpush1.msra.mxu0 0.0
    %3068 = vmatprep.subr.mxu0 0.0
    %3069 = vmatpush1.msra.mxu0 0.0
    %3070 = vmatprep.mubr.f32.mxu0 0.0
    %3071 = vmatmul.mubr.f32.gmra.mrb[0].mxu0 %v2915
    %v3072 = vpop.f32.mrb[0].mxu0
    %v3073 = vadd.f32 %v2185, %v3072
    %v3074 = vpop.f32.mrb[0].mxu0
    %3075 = vdwg.mxu0
    %3077 = vrot.lane.b32.xlu0 %v2906, 96
    %v3078 = vpop.permute.xlu0 %3077
    %v3079 = vsel %vm2268, %v3078, 0
    %3081 = vmatprep.subr.mxu0 0.0
    %3082 = vmatpush1.msra.mxu0 %v2257
    %3083 = vmatprep.subr.mxu0 0.0
    %3084 = vmatpush1.msra.mxu0 %v2258
    %3085 = vmatprep.subr.mxu0 0.0
    %3086 = vmatpush1.msra.mxu0 %v2259
    %3087 = vmatprep.subr.mxu0 0.0
    %3088 = vmatpush1.msra.mxu0 %v2260
    %3089 = vmatprep.subr.mxu0 0.0
    %3090 = vmatpush1.msra.mxu0 0.0
    %3091 = vmatprep.subr.mxu0 0.0
    %3092 = vmatpush1.msra.mxu0 0.0
    %3093 = vmatprep.subr.mxu0 0.0
    %3094 = vmatpush1.msra.mxu0 0.0
    %3095 = vmatprep.subr.mxu0 0.0
    %3096 = vmatpush1.msra.mxu0 0.0
    %3097 = vmatprep.subr.mxu0 0.0
    %3098 = vmatpush1.msra.mxu0 0.0
    %3099 = vmatprep.subr.mxu0 0.0
    %3100 = vmatpush1.msra.mxu0 0.0
    %3101 = vmatprep.subr.mxu0 0.0
    %3102 = vmatpush1.msra.mxu0 0.0
    %3103 = vmatprep.subr.mxu0 0.0
    %3104 = vmatpush1.msra.mxu0 0.0
    %3105 = vmatprep.subr.mxu0 0.0
    %3106 = vmatpush1.msra.mxu0 0.0
    %3107 = vmatprep.subr.mxu0 0.0
    %3108 = vmatpush1.msra.mxu0 0.0
    %3109 = vmatprep.subr.mxu0 0.0
    %3110 = vmatpush1.msra.mxu0 0.0
    %3111 = vmatprep.subr.mxu0 0.0
    %3112 = vmatpush1.msra.mxu0 0.0
    %3113 = vmatprep.subr.mxu0 0.0
    %3114 = vmatpush1.msra.mxu0 0.0
    %3115 = vmatprep.subr.mxu0 0.0
    %3116 = vmatpush1.msra.mxu0 0.0
    %3117 = vmatprep.subr.mxu0 0.0
    %3118 = vmatpush1.msra.mxu0 0.0
    %3119 = vmatprep.subr.mxu0 0.0
    %3120 = vmatpush1.msra.mxu0 0.0
    %3121 = vmatprep.subr.mxu0 0.0
    %3122 = vmatpush1.msra.mxu0 0.0
    %3123 = vmatprep.subr.mxu0 0.0
    %3124 = vmatpush1.msra.mxu0 0.0
    %3125 = vmatprep.subr.mxu0 0.0
    %3126 = vmatpush1.msra.mxu0 0.0
    %3127 = vmatprep.subr.mxu0 0.0
    %3128 = vmatpush1.msra.mxu0 0.0
    %3129 = vmatprep.subr.mxu0 0.0
    %3130 = vmatpush1.msra.mxu0 0.0
    %3131 = vmatprep.subr.mxu0 0.0
    %3132 = vmatpush1.msra.mxu0 0.0
    %3133 = vmatprep.subr.mxu0 0.0
    %3134 = vmatpush1.msra.mxu0 0.0
    %3135 = vmatprep.subr.mxu0 0.0
    %3136 = vmatpush1.msra.mxu0 0.0
    %3137 = vmatprep.subr.mxu0 0.0
    %3138 = vmatpush1.msra.mxu0 0.0
    %3139 = vmatprep.subr.mxu0 0.0
    %3140 = vmatpush1.msra.mxu0 0.0
    %3141 = vmatprep.subr.mxu0 0.0
    %3142 = vmatpush1.msra.mxu0 0.0
    %3143 = vmatprep.subr.mxu0 0.0
    %3144 = vmatpush1.msra.mxu0 0.0
    %3145 = vmatprep.mubr.f32.mxu0 0.0
    %3146 = vmatmul.mubr.f32.gmra.mrb[0].mxu0 %v3079
    %v3147 = vpop.f32.mrb[0].mxu0
    %v3148 = vadd.f32 %v2266, %v3147
    %v3149 = vpop.f32.mrb[0].mxu0
    %3150 = vdwg.mxu0
    %v3151 = vadd.f32 %v3073, %v3148
    %v3152 = vxor.u32 %v3151, 2147483648
    %v3153 = vmul.f32 %v3152, 1.442695
    %v3154 = vpow.pop %v3153
    %v3155 = vadd.f32 %v3154, 1.0
    %v3156 = vrcp.pop %v3155
    %v3157 = vmul.f32 1.0, %v3156
    %3159 = vrot.lane.b32.xlu0 %v3148, 64
    %v3160 = vpop.permute.xlu0 %3159
    %v3162 = vmul.f32 %v3157, %v3160
    %3164 = vrot.lane.b32.xlu0 %v3162, 64
    %v3165 = vpop.permute.xlu0 %3164
    %v3167 = vadd.f32 %v3073, %v3165
    %v3168 = vtanh.pop %v3167
    %v3169 = vsub.f32 1.0, %v3157
    %3171 = vrot.lane.b32.xlu0 %v3168, 96
    %v3172 = vpop.permute.xlu0 %3171
    %v3174 = vmul.f32 %v3169, %v3172
    %v3175 = vmul.f32 %v3157, %v2906
    %v3176 = vadd.f32 %v3174, %v3175
    %s3177 = smul.u32 5, 2
    %s3178 = smul.addr %s3177, 8
    %s3179 = scalar_lea.vmem [#allocation5], %s3178
    %v3180 = vld [vmem:[%s3179] sm:$0xff]
    %v3181 = vld [vmem:[%s3179 + $0x8] sm:$0xff]
    %3183 = vrot.lane.b32.xlu0 %v3005, 64
    %v3184 = vpop.permute.xlu0 %3183
    %v3185 = vsel %vm169, %v3184, 0
    %3187 = vmatprep.subr.mxu0 %v1962
    %3188 = vmatpush1.msra.mxu0 %v1961
    %3189 = vmatprep.subr.mxu0 %v1964
    %3190 = vmatpush1.msra.mxu0 %v1963
    %3191 = vmatprep.subr.mxu0 %v1966
    %3192 = vmatpush1.msra.mxu0 %v1965
    %3193 = vmatprep.subr.mxu0 %v1968
    %3194 = vmatpush1.msra.mxu0 %v1967
    %3195 = vmatprep.subr.mxu0 %v1970
    %3196 = vmatpush1.msra.mxu0 %v1969
    %3197 = vmatprep.subr.mxu0 %v1972
    %3198 = vmatpush1.msra.mxu0 %v1971
    %3199 = vmatprep.subr.mxu0 %v1974
    %3200 = vmatpush1.msra.mxu0 %v1973
    %3201 = vmatprep.subr.mxu0 %v1976
    %3202 = vmatpush1.msra.mxu0 %v1975
    %3203 = vmatprep.subr.mxu0 0.0
    %3204 = vmatpush1.msra.mxu0 0.0
    %3205 = vmatprep.subr.mxu0 0.0
    %3206 = vmatpush1.msra.mxu0 0.0
    %3207 = vmatprep.subr.mxu0 0.0
    %3208 = vmatpush1.msra.mxu0 0.0
    %3209 = vmatprep.subr.mxu0 0.0
    %3210 = vmatpush1.msra.mxu0 0.0
    %3211 = vmatprep.subr.mxu0 0.0
    %3212 = vmatpush1.msra.mxu0 0.0
    %3213 = vmatprep.subr.mxu0 0.0
    %3214 = vmatpush1.msra.mxu0 0.0
    %3215 = vmatprep.subr.mxu0 0.0
    %3216 = vmatpush1.msra.mxu0 0.0
    %3217 = vmatprep.subr.mxu0 0.0
    %3218 = vmatpush1.msra.mxu0 0.0
    %3219 = vmatprep.subr.mxu0 0.0
    %3220 = vmatpush1.msra.mxu0 0.0
    %3221 = vmatprep.subr.mxu0 0.0
    %3222 = vmatpush1.msra.mxu0 0.0
    %3223 = vmatprep.subr.mxu0 0.0
    %3224 = vmatpush1.msra.mxu0 0.0
    %3225 = vmatprep.subr.mxu0 0.0
    %3226 = vmatpush1.msra.mxu0 0.0
    %3227 = vmatprep.subr.mxu0 0.0
    %3228 = vmatpush1.msra.mxu0 0.0
    %3229 = vmatprep.subr.mxu0 0.0
    %3230 = vmatpush1.msra.mxu0 0.0
    %3231 = vmatprep.subr.mxu0 0.0
    %3232 = vmatpush1.msra.mxu0 0.0
    %3233 = vmatprep.subr.mxu0 0.0
    %3234 = vmatpush1.msra.mxu0 0.0
    %3235 = vmatprep.subr.mxu0 0.0
    %3236 = vmatpush1.msra.mxu0 0.0
    %3237 = vmatprep.subr.mxu0 0.0
    %3238 = vmatpush1.msra.mxu0 0.0
    %3239 = vmatprep.subr.mxu0 0.0
    %3240 = vmatpush1.msra.mxu0 0.0
    %3241 = vmatprep.subr.mxu0 0.0
    %3242 = vmatpush1.msra.mxu0 0.0
    %3243 = vmatprep.subr.mxu0 0.0
    %3244 = vmatpush1.msra.mxu0 0.0
    %3245 = vmatprep.subr.mxu0 0.0
    %3246 = vmatpush1.msra.mxu0 0.0
    %3247 = vmatprep.subr.mxu0 0.0
    %3248 = vmatpush1.msra.mxu0 0.0
    %3249 = vmatprep.subr.mxu0 0.0
    %3250 = vmatpush1.msra.mxu0 0.0
    %3251 = vmatprep.mubr.f32.mxu0 0.0
    %3252 = vmatmul.mubr.f32.gmra.mrb[0].mxu0 %v3185
    %v3253 = vpop.f32.mrb[0].mxu0
    %v3254 = vadd.f32 %v1982, %v3253
    %v3255 = vpop.f32.mrb[0].mxu0
    %v3256 = vadd.f32 %v1986, %v3255
    %3257 = vdwg.mxu0
    %v3258 = vadd.f32 %v3180, %v3254
    %v3259 = vxor.u32 %v3258, 2147483648
    %v3260 = vmul.f32 %v3259, 1.442695
    %v3261 = vpow.pop %v3260
    %v3262 = vadd.f32 %v3261, 1.0
    %v3263 = vrcp.pop %v3262
    %v3264 = vmul.f32 1.0, %v3263
    %v3265 = vmul.f32 %v3264, %v3256
    %v3266 = vadd.f32 %v3181, %v3265
    %v3267 = vtanh.pop %v3266
    %v3268 = vsub.f32 1.0, %v3264
    %3270 = vrot.lane.b32.xlu0 %v3267, 64
    %v3271 = vpop.permute.xlu0 %3270
    %v3273 = vmul.f32 %v3268, %v3271
    %v3274 = vmul.f32 %v3264, %v3005
    %v3275 = vadd.f32 %v3273, %v3274
    %3276 = vmatprep.subr.mxu0 0.0
    %3277 = vmatpush1.msra.mxu0 %v1948
    %3278 = vmatprep.subr.mxu0 0.0
    %3279 = vmatpush1.msra.mxu0 %v1949
    %3280 = vmatprep.subr.mxu0 0.0
    %3281 = vmatpush1.msra.mxu0 %v1950
    %3282 = vmatprep.subr.mxu0 0.0
    %3283 = vmatpush1.msra.mxu0 %v1951
    %3284 = vmatprep.subr.mxu0 0.0
    %3285 = vmatpush1.msra.mxu0 %v1952
    %3286 = vmatprep.subr.mxu0 0.0
    %3287 = vmatpush1.msra.mxu0 %v1953
    %3288 = vmatprep.subr.mxu0 0.0
    %3289 = vmatpush1.msra.mxu0 %v1954
    %3290 = vmatprep.subr.mxu0 0.0
    %3291 = vmatpush1.msra.mxu0 %v1955
    %3292 = vmatprep.subr.mxu0 0.0
    %3293 = vmatpush1.msra.mxu0 0.0
    %3294 = vmatprep.subr.mxu0 0.0
    %3295 = vmatpush1.msra.mxu0 0.0
    %3296 = vmatprep.subr.mxu0 0.0
    %3297 = vmatpush1.msra.mxu0 0.0
    %3298 = vmatprep.subr.mxu0 0.0
    %3299 = vmatpush1.msra.mxu0 0.0
    %3300 = vmatprep.subr.mxu0 0.0
    %3301 = vmatpush1.msra.mxu0 0.0
    %3302 = vmatprep.subr.mxu0 0.0
    %3303 = vmatpush1.msra.mxu0 0.0
    %3304 = vmatprep.subr.mxu0 0.0
    %3305 = vmatpush1.msra.mxu0 0.0
    %3306 = vmatprep.subr.mxu0 0.0
    %3307 = vmatpush1.msra.mxu0 0.0
    %3308 = vmatprep.subr.mxu0 0.0
    %3309 = vmatpush1.msra.mxu0 0.0
    %3310 = vmatprep.subr.mxu0 0.0
    %3311 = vmatpush1.msra.mxu0 0.0
    %3312 = vmatprep.subr.mxu0 0.0
    %3313 = vmatpush1.msra.mxu0 0.0
    %3314 = vmatprep.subr.mxu0 0.0
    %3315 = vmatpush1.msra.mxu0 0.0
    %3316 = vmatprep.subr.mxu0 0.0
    %3317 = vmatpush1.msra.mxu0 0.0
    %3318 = vmatprep.subr.mxu0 0.0
    %3319 = vmatpush1.msra.mxu0 0.0
    %3320 = vmatprep.subr.mxu0 0.0
    %3321 = vmatpush1.msra.mxu0 0.0
    %3322 = vmatprep.subr.mxu0 0.0
    %3323 = vmatpush1.msra.mxu0 0.0
    %3324 = vmatprep.subr.mxu0 0.0
    %3325 = vmatpush1.msra.mxu0 0.0
    %3326 = vmatprep.subr.mxu0 0.0
    %3327 = vmatpush1.msra.mxu0 0.0
    %3328 = vmatprep.subr.mxu0 0.0
    %3329 = vmatpush1.msra.mxu0 0.0
    %3330 = vmatprep.subr.mxu0 0.0
    %3331 = vmatpush1.msra.mxu0 0.0
    %3332 = vmatprep.subr.mxu0 0.0
    %3333 = vmatpush1.msra.mxu0 0.0
    %3334 = vmatprep.subr.mxu0 0.0
    %3335 = vmatpush1.msra.mxu0 0.0
    %3336 = vmatprep.subr.mxu0 0.0
    %3337 = vmatpush1.msra.mxu0 0.0
    %3338 = vmatprep.subr.mxu0 0.0
    %3339 = vmatpush1.msra.mxu0 0.0
    %3340 = vmatprep.mubr.f32.mxu0 0.0
    %3341 = vmatmul.mubr.f32.gmra.mrb[0].mxu0 %v3185
    %v3342 = vpop.f32.mrb[0].mxu0
    %v3343 = vadd.f32 %v2185, %v3342
    %v3344 = vpop.f32.mrb[0].mxu0
    %3345 = vdwg.mxu0
    %3347 = vrot.lane.b32.xlu0 %v3176, 96
    %v3348 = vpop.permute.xlu0 %3347
    %v3349 = vsel %vm2268, %v3348, 0
    %3351 = vmatprep.subr.mxu0 0.0
    %3352 = vmatpush1.msra.mxu0 %v2257
    %3353 = vmatprep.subr.mxu0 0.0
    %3354 = vmatpush1.msra.mxu0 %v2258
    %3355 = vmatprep.subr.mxu0 0.0
    %3356 = vmatpush1.msra.mxu0 %v2259
    %3357 = vmatprep.subr.mxu0 0.0
    %3358 = vmatpush1.msra.mxu0 %v2260
    %3359 = vmatprep.subr.mxu0 0.0
    %3360 = vmatpush1.msra.mxu0 0.0
    %3361 = vmatprep.subr.mxu0 0.0
    %3362 = vmatpush1.msra.mxu0 0.0
    %3363 = vmatprep.subr.mxu0 0.0
    %3364 = vmatpush1.msra.mxu0 0.0
    %3365 = vmatprep.subr.mxu0 0.0
    %3366 = vmatpush1.msra.mxu0 0.0
    %3367 = vmatprep.subr.mxu0 0.0
    %3368 = vmatpush1.msra.mxu0 0.0
    %3369 = vmatprep.subr.mxu0 0.0
    %3370 = vmatpush1.msra.mxu0 0.0
    %3371 = vmatprep.subr.mxu0 0.0
    %3372 = vmatpush1.msra.mxu0 0.0
    %3373 = vmatprep.subr.mxu0 0.0
    %3374 = vmatpush1.msra.mxu0 0.0
    %3375 = vmatprep.subr.mxu0 0.0
    %3376 = vmatpush1.msra.mxu0 0.0
    %3377 = vmatprep.subr.mxu0 0.0
    %3378 = vmatpush1.msra.mxu0 0.0
    %3379 = vmatprep.subr.mxu0 0.0
    %3380 = vmatpush1.msra.mxu0 0.0
    %3381 = vmatprep.subr.mxu0 0.0
    %3382 = vmatpush1.msra.mxu0 0.0
    %3383 = vmatprep.subr.mxu0 0.0
    %3384 = vmatpush1.msra.mxu0 0.0
    %3385 = vmatprep.subr.mxu0 0.0
    %3386 = vmatpush1.msra.mxu0 0.0
    %3387 = vmatprep.subr.mxu0 0.0
    %3388 = vmatpush1.msra.mxu0 0.0
    %3389 = vmatprep.subr.mxu0 0.0
    %3390 = vmatpush1.msra.mxu0 0.0
    %3391 = vmatprep.subr.mxu0 0.0
    %3392 = vmatpush1.msra.mxu0 0.0
    %3393 = vmatprep.subr.mxu0 0.0
    %3394 = vmatpush1.msra.mxu0 0.0
    %3395 = vmatprep.subr.mxu0 0.0
    %3396 = vmatpush1.msra.mxu0 0.0
    %3397 = vmatprep.subr.mxu0 0.0
    %3398 = vmatpush1.msra.mxu0 0.0
    %3399 = vmatprep.subr.mxu0 0.0
    %3400 = vmatpush1.msra.mxu0 0.0
    %3401 = vmatprep.subr.mxu0 0.0
    %3402 = vmatpush1.msra.mxu0 0.0
    %3403 = vmatprep.subr.mxu0 0.0
    %3404 = vmatpush1.msra.mxu0 0.0
    %3405 = vmatprep.subr.mxu0 0.0
    %3406 = vmatpush1.msra.mxu0 0.0
    %3407 = vmatprep.subr.mxu0 0.0
    %3408 = vmatpush1.msra.mxu0 0.0
    %3409 = vmatprep.subr.mxu0 0.0
    %3410 = vmatpush1.msra.mxu0 0.0
    %3411 = vmatprep.subr.mxu0 0.0
    %3412 = vmatpush1.msra.mxu0 0.0
    %3413 = vmatprep.subr.mxu0 0.0
    %3414 = vmatpush1.msra.mxu0 0.0
    %3415 = vmatprep.mubr.f32.mxu0 0.0
    %3416 = vmatmul.mubr.f32.gmra.mrb[0].mxu0 %v3349
    %v3417 = vpop.f32.mrb[0].mxu0
    %v3418 = vadd.f32 %v2266, %v3417
    %v3419 = vpop.f32.mrb[0].mxu0
    %3420 = vdwg.mxu0
    %v3421 = vadd.f32 %v3343, %v3418
    %v3422 = vxor.u32 %v3421, 2147483648
    %v3423 = vmul.f32 %v3422, 1.442695
    %v3424 = vpow.pop %v3423
    %v3425 = vadd.f32 %v3424, 1.0
    %v3426 = vrcp.pop %v3425
    %v3427 = vmul.f32 1.0, %v3426
    %3429 = vrot.lane.b32.xlu0 %v3418, 64
    %v3430 = vpop.permute.xlu0 %3429
    %v3432 = vmul.f32 %v3427, %v3430
    %3434 = vrot.lane.b32.xlu0 %v3432, 64
    %v3435 = vpop.permute.xlu0 %3434
    %v3437 = vadd.f32 %v3343, %v3435
    %v3438 = vtanh.pop %v3437
    %v3439 = vsub.f32 1.0, %v3427
    %3441 = vrot.lane.b32.xlu0 %v3438, 96
    %v3442 = vpop.permute.xlu0 %3441
    %v3444 = vmul.f32 %v3439, %v3442
    %v3445 = vmul.f32 %v3427, %v3176
    %v3446 = vadd.f32 %v3444, %v3445
    %s3447 = smul.u32 6, 2
    %s3448 = smul.addr %s3447, 8
    %s3449 = scalar_lea.vmem [#allocation5], %s3448
    %v3450 = vld [vmem:[%s3449] sm:$0xff]
    %v3451 = vld [vmem:[%s3449 + $0x8] sm:$0xff]
    %3453 = vrot.lane.b32.xlu0 %v3275, 64
    %v3454 = vpop.permute.xlu0 %3453
    %v3455 = vsel %vm169, %v3454, 0
    %3457 = vmatprep.subr.mxu0 %v1962
    %3458 = vmatpush1.msra.mxu0 %v1961
    %3459 = vmatprep.subr.mxu0 %v1964
    %3460 = vmatpush1.msra.mxu0 %v1963
    %3461 = vmatprep.subr.mxu0 %v1966
    %3462 = vmatpush1.msra.mxu0 %v1965
    %3463 = vmatprep.subr.mxu0 %v1968
    %3464 = vmatpush1.msra.mxu0 %v1967
    %3465 = vmatprep.subr.mxu0 %v1970
    %3466 = vmatpush1.msra.mxu0 %v1969
    %3467 = vmatprep.subr.mxu0 %v1972
    %3468 = vmatpush1.msra.mxu0 %v1971
    %3469 = vmatprep.subr.mxu0 %v1974
    %3470 = vmatpush1.msra.mxu0 %v1973
    %3471 = vmatprep.subr.mxu0 %v1976
    %3472 = vmatpush1.msra.mxu0 %v1975
    %3473 = vmatprep.subr.mxu0 0.0
    %3474 = vmatpush1.msra.mxu0 0.0
    %3475 = vmatprep.subr.mxu0 0.0
    %3476 = vmatpush1.msra.mxu0 0.0
    %3477 = vmatprep.subr.mxu0 0.0
    %3478 = vmatpush1.msra.mxu0 0.0
    %3479 = vmatprep.subr.mxu0 0.0
    %3480 = vmatpush1.msra.mxu0 0.0
    %3481 = vmatprep.subr.mxu0 0.0
    %3482 = vmatpush1.msra.mxu0 0.0
    %3483 = vmatprep.subr.mxu0 0.0
    %3484 = vmatpush1.msra.mxu0 0.0
    %3485 = vmatprep.subr.mxu0 0.0
    %3486 = vmatpush1.msra.mxu0 0.0
    %3487 = vmatprep.subr.mxu0 0.0
    %3488 = vmatpush1.msra.mxu0 0.0
    %3489 = vmatprep.subr.mxu0 0.0
    %3490 = vmatpush1.msra.mxu0 0.0
    %3491 = vmatprep.subr.mxu0 0.0
    %3492 = vmatpush1.msra.mxu0 0.0
    %3493 = vmatprep.subr.mxu0 0.0
    %3494 = vmatpush1.msra.mxu0 0.0
    %3495 = vmatprep.subr.mxu0 0.0
    %3496 = vmatpush1.msra.mxu0 0.0
    %3497 = vmatprep.subr.mxu0 0.0
    %3498 = vmatpush1.msra.mxu0 0.0
    %3499 = vmatprep.subr.mxu0 0.0
    %3500 = vmatpush1.msra.mxu0 0.0
    %3501 = vmatprep.subr.mxu0 0.0
    %3502 = vmatpush1.msra.mxu0 0.0
    %3503 = vmatprep.subr.mxu0 0.0
    %3504 = vmatpush1.msra.mxu0 0.0
    %3505 = vmatprep.subr.mxu0 0.0
    %3506 = vmatpush1.msra.mxu0 0.0
    %3507 = vmatprep.subr.mxu0 0.0
    %3508 = vmatpush1.msra.mxu0 0.0
    %3509 = vmatprep.subr.mxu0 0.0
    %3510 = vmatpush1.msra.mxu0 0.0
    %3511 = vmatprep.subr.mxu0 0.0
    %3512 = vmatpush1.msra.mxu0 0.0
    %3513 = vmatprep.subr.mxu0 0.0
    %3514 = vmatpush1.msra.mxu0 0.0
    %3515 = vmatprep.subr.mxu0 0.0
    %3516 = vmatpush1.msra.mxu0 0.0
    %3517 = vmatprep.subr.mxu0 0.0
    %3518 = vmatpush1.msra.mxu0 0.0
    %3519 = vmatprep.subr.mxu0 0.0
    %3520 = vmatpush1.msra.mxu0 0.0
    %3521 = vmatprep.mubr.f32.mxu0 0.0
    %3522 = vmatmul.mubr.f32.gmra.mrb[0].mxu0 %v3455
    %v3523 = vpop.f32.mrb[0].mxu0
    %v3524 = vadd.f32 %v1982, %v3523
    %v3525 = vpop.f32.mrb[0].mxu0
    %v3526 = vadd.f32 %v1986, %v3525
    %3527 = vdwg.mxu0
    %v3528 = vadd.f32 %v3450, %v3524
    %v3529 = vxor.u32 %v3528, 2147483648
    %v3530 = vmul.f32 %v3529, 1.442695
    %v3531 = vpow.pop %v3530
    %v3532 = vadd.f32 %v3531, 1.0
    %v3533 = vrcp.pop %v3532
    %v3534 = vmul.f32 1.0, %v3533
    %v3535 = vmul.f32 %v3534, %v3526
    %v3536 = vadd.f32 %v3451, %v3535
    %v3537 = vtanh.pop %v3536
    %v3538 = vsub.f32 1.0, %v3534
    %3540 = vrot.lane.b32.xlu0 %v3537, 64
    %v3541 = vpop.permute.xlu0 %3540
    %v3543 = vmul.f32 %v3538, %v3541
    %v3544 = vmul.f32 %v3534, %v3275
    %v3545 = vadd.f32 %v3543, %v3544
    %3546 = vmatprep.subr.mxu0 0.0
    %3547 = vmatpush1.msra.mxu0 %v1948
    %3548 = vmatprep.subr.mxu0 0.0
    %3549 = vmatpush1.msra.mxu0 %v1949
    %3550 = vmatprep.subr.mxu0 0.0
    %3551 = vmatpush1.msra.mxu0 %v1950
    %3552 = vmatprep.subr.mxu0 0.0
    %3553 = vmatpush1.msra.mxu0 %v1951
    %3554 = vmatprep.subr.mxu0 0.0
    %3555 = vmatpush1.msra.mxu0 %v1952
    %3556 = vmatprep.subr.mxu0 0.0
    %3557 = vmatpush1.msra.mxu0 %v1953
    %3558 = vmatprep.subr.mxu0 0.0
    %3559 = vmatpush1.msra.mxu0 %v1954
    %3560 = vmatprep.subr.mxu0 0.0
    %3561 = vmatpush1.msra.mxu0 %v1955
    %3562 = vmatprep.subr.mxu0 0.0
    %3563 = vmatpush1.msra.mxu0 0.0
    %3564 = vmatprep.subr.mxu0 0.0
    %3565 = vmatpush1.msra.mxu0 0.0
    %3566 = vmatprep.subr.mxu0 0.0
    %3567 = vmatpush1.msra.mxu0 0.0
    %3568 = vmatprep.subr.mxu0 0.0
    %3569 = vmatpush1.msra.mxu0 0.0
    %3570 = vmatprep.subr.mxu0 0.0
    %3571 = vmatpush1.msra.mxu0 0.0
    %3572 = vmatprep.subr.mxu0 0.0
    %3573 = vmatpush1.msra.mxu0 0.0
    %3574 = vmatprep.subr.mxu0 0.0
    %3575 = vmatpush1.msra.mxu0 0.0
    %3576 = vmatprep.subr.mxu0 0.0
    %3577 = vmatpush1.msra.mxu0 0.0
    %3578 = vmatprep.subr.mxu0 0.0
    %3579 = vmatpush1.msra.mxu0 0.0
    %3580 = vmatprep.subr.mxu0 0.0
    %3581 = vmatpush1.msra.mxu0 0.0
    %3582 = vmatprep.subr.mxu0 0.0
    %3583 = vmatpush1.msra.mxu0 0.0
    %3584 = vmatprep.subr.mxu0 0.0
    %3585 = vmatpush1.msra.mxu0 0.0
    %3586 = vmatprep.subr.mxu0 0.0
    %3587 = vmatpush1.msra.mxu0 0.0
    %3588 = vmatprep.subr.mxu0 0.0
    %3589 = vmatpush1.msra.mxu0 0.0
    %3590 = vmatprep.subr.mxu0 0.0
    %3591 = vmatpush1.msra.mxu0 0.0
    %3592 = vmatprep.subr.mxu0 0.0
    %3593 = vmatpush1.msra.mxu0 0.0
    %3594 = vmatprep.subr.mxu0 0.0
    %3595 = vmatpush1.msra.mxu0 0.0
    %3596 = vmatprep.subr.mxu0 0.0
    %3597 = vmatpush1.msra.mxu0 0.0
    %3598 = vmatprep.subr.mxu0 0.0
    %3599 = vmatpush1.msra.mxu0 0.0
    %3600 = vmatprep.subr.mxu0 0.0
    %3601 = vmatpush1.msra.mxu0 0.0
    %3602 = vmatprep.subr.mxu0 0.0
    %3603 = vmatpush1.msra.mxu0 0.0
    %3604 = vmatprep.subr.mxu0 0.0
    %3605 = vmatpush1.msra.mxu0 0.0
    %3606 = vmatprep.subr.mxu0 0.0
    %3607 = vmatpush1.msra.mxu0 0.0
    %3608 = vmatprep.subr.mxu0 0.0
    %3609 = vmatpush1.msra.mxu0 0.0
    %3610 = vmatprep.mubr.f32.mxu0 0.0
    %3611 = vmatmul.mubr.f32.gmra.mrb[0].mxu0 %v3455
    %v3612 = vpop.f32.mrb[0].mxu0
    %v3613 = vadd.f32 %v2185, %v3612
    %v3614 = vpop.f32.mrb[0].mxu0
    %3615 = vdwg.mxu0
    %3617 = vrot.lane.b32.xlu0 %v3446, 96
    %v3618 = vpop.permute.xlu0 %3617
    %v3619 = vsel %vm2268, %v3618, 0
    %3621 = vmatprep.subr.mxu0 0.0
    %3622 = vmatpush1.msra.mxu0 %v2257
    %3623 = vmatprep.subr.mxu0 0.0
    %3624 = vmatpush1.msra.mxu0 %v2258
    %3625 = vmatprep.subr.mxu0 0.0
    %3626 = vmatpush1.msra.mxu0 %v2259
    %3627 = vmatprep.subr.mxu0 0.0
    %3628 = vmatpush1.msra.mxu0 %v2260
    %3629 = vmatprep.subr.mxu0 0.0
    %3630 = vmatpush1.msra.mxu0 0.0
    %3631 = vmatprep.subr.mxu0 0.0
    %3632 = vmatpush1.msra.mxu0 0.0
    %3633 = vmatprep.subr.mxu0 0.0
    %3634 = vmatpush1.msra.mxu0 0.0
    %3635 = vmatprep.subr.mxu0 0.0
    %3636 = vmatpush1.msra.mxu0 0.0
    %3637 = vmatprep.subr.mxu0 0.0
    %3638 = vmatpush1.msra.mxu0 0.0
    %3639 = vmatprep.subr.mxu0 0.0
    %3640 = vmatpush1.msra.mxu0 0.0
    %3641 = vmatprep.subr.mxu0 0.0
    %3642 = vmatpush1.msra.mxu0 0.0
    %3643 = vmatprep.subr.mxu0 0.0
    %3644 = vmatpush1.msra.mxu0 0.0
    %3645 = vmatprep.subr.mxu0 0.0
    %3646 = vmatpush1.msra.mxu0 0.0
    %3647 = vmatprep.subr.mxu0 0.0
    %3648 = vmatpush1.msra.mxu0 0.0
    %3649 = vmatprep.subr.mxu0 0.0
    %3650 = vmatpush1.msra.mxu0 0.0
    %3651 = vmatprep.subr.mxu0 0.0
    %3652 = vmatpush1.msra.mxu0 0.0
    %3653 = vmatprep.subr.mxu0 0.0
    %3654 = vmatpush1.msra.mxu0 0.0
    %3655 = vmatprep.subr.mxu0 0.0
    %3656 = vmatpush1.msra.mxu0 0.0
    %3657 = vmatprep.subr.mxu0 0.0
    %3658 = vmatpush1.msra.mxu0 0.0
    %3659 = vmatprep.subr.mxu0 0.0
    %3660 = vmatpush1.msra.mxu0 0.0
    %3661 = vmatprep.subr.mxu0 0.0
    %3662 = vmatpush1.msra.mxu0 0.0
    %3663 = vmatprep.subr.mxu0 0.0
    %3664 = vmatpush1.msra.mxu0 0.0
    %3665 = vmatprep.subr.mxu0 0.0
    %3666 = vmatpush1.msra.mxu0 0.0
    %3667 = vmatprep.subr.mxu0 0.0
    %3668 = vmatpush1.msra.mxu0 0.0
    %3669 = vmatprep.subr.mxu0 0.0
    %3670 = vmatpush1.msra.mxu0 0.0
    %3671 = vmatprep.subr.mxu0 0.0
    %3672 = vmatpush1.msra.mxu0 0.0
    %3673 = vmatprep.subr.mxu0 0.0
    %3674 = vmatpush1.msra.mxu0 0.0
    %3675 = vmatprep.subr.mxu0 0.0
    %3676 = vmatpush1.msra.mxu0 0.0
    %3677 = vmatprep.subr.mxu0 0.0
    %3678 = vmatpush1.msra.mxu0 0.0
    %3679 = vmatprep.subr.mxu0 0.0
    %3680 = vmatpush1.msra.mxu0 0.0
    %3681 = vmatprep.subr.mxu0 0.0
    %3682 = vmatpush1.msra.mxu0 0.0
    %3683 = vmatprep.subr.mxu0 0.0
    %3684 = vmatpush1.msra.mxu0 0.0
    %3685 = vmatprep.mubr.f32.mxu0 0.0
    %3686 = vmatmul.mubr.f32.gmra.mrb[0].mxu0 %v3619
    %v3687 = vpop.f32.mrb[0].mxu0
    %v3688 = vadd.f32 %v2266, %v3687
    %v3689 = vpop.f32.mrb[0].mxu0
    %3690 = vdwg.mxu0
    %v3691 = vadd.f32 %v3613, %v3688
    %v3692 = vxor.u32 %v3691, 2147483648
    %v3693 = vmul.f32 %v3692, 1.442695
    %v3694 = vpow.pop %v3693
    %v3695 = vadd.f32 %v3694, 1.0
    %v3696 = vrcp.pop %v3695
    %v3697 = vmul.f32 1.0, %v3696
    %3699 = vrot.lane.b32.xlu0 %v3688, 64
    %v3700 = vpop.permute.xlu0 %3699
    %v3702 = vmul.f32 %v3697, %v3700
    %3704 = vrot.lane.b32.xlu0 %v3702, 64
    %v3705 = vpop.permute.xlu0 %3704
    %v3707 = vadd.f32 %v3613, %v3705
    %v3708 = vtanh.pop %v3707
    %v3709 = vsub.f32 1.0, %v3697
    %3711 = vrot.lane.b32.xlu0 %v3708, 96
    %v3712 = vpop.permute.xlu0 %3711
    %v3714 = vmul.f32 %v3709, %v3712
    %v3715 = vmul.f32 %v3697, %v3446
    %v3716 = vadd.f32 %v3714, %v3715
    %s3717 = smul.u32 7, 2
    %s3718 = smul.addr %s3717, 8
    %s3719 = scalar_lea.vmem [#allocation5], %s3718
    %v3720 = vld [vmem:[%s3719] sm:$0xff]
    %v3721 = vld [vmem:[%s3719 + $0x8] sm:$0xff]
    %3723 = vrot.lane.b32.xlu0 %v3545, 64
    %v3724 = vpop.permute.xlu0 %3723
    %v3725 = vsel %vm169, %v3724, 0
    %3727 = vmatprep.subr.mxu0 %v1962
    %3728 = vmatpush1.msra.mxu0 %v1961
    %3729 = vmatprep.subr.mxu0 %v1964
    %3730 = vmatpush1.msra.mxu0 %v1963
    %3731 = vmatprep.subr.mxu0 %v1966
    %3732 = vmatpush1.msra.mxu0 %v1965
    %3733 = vmatprep.subr.mxu0 %v1968
    %3734 = vmatpush1.msra.mxu0 %v1967
    %3735 = vmatprep.subr.mxu0 %v1970
    %3736 = vmatpush1.msra.mxu0 %v1969
    %3737 = vmatprep.subr.mxu0 %v1972
    %3738 = vmatpush1.msra.mxu0 %v1971
    %3739 = vmatprep.subr.mxu0 %v1974
    %3740 = vmatpush1.msra.mxu0 %v1973
    %3741 = vmatprep.subr.mxu0 %v1976
    %3742 = vmatpush1.msra.mxu0 %v1975
    %3743 = vmatprep.subr.mxu0 0.0
    %3744 = vmatpush1.msra.mxu0 0.0
    %3745 = vmatprep.subr.mxu0 0.0
    %3746 = vmatpush1.msra.mxu0 0.0
    %3747 = vmatprep.subr.mxu0 0.0
    %3748 = vmatpush1.msra.mxu0 0.0
    %3749 = vmatprep.subr.mxu0 0.0
    %3750 = vmatpush1.msra.mxu0 0.0
    %3751 = vmatprep.subr.mxu0 0.0
    %3752 = vmatpush1.msra.mxu0 0.0
    %3753 = vmatprep.subr.mxu0 0.0
    %3754 = vmatpush1.msra.mxu0 0.0
    %3755 = vmatprep.subr.mxu0 0.0
    %3756 = vmatpush1.msra.mxu0 0.0
    %3757 = vmatprep.subr.mxu0 0.0
    %3758 = vmatpush1.msra.mxu0 0.0
    %3759 = vmatprep.subr.mxu0 0.0
    %3760 = vmatpush1.msra.mxu0 0.0
    %3761 = vmatprep.subr.mxu0 0.0
    %3762 = vmatpush1.msra.mxu0 0.0
    %3763 = vmatprep.subr.mxu0 0.0
    %3764 = vmatpush1.msra.mxu0 0.0
    %3765 = vmatprep.subr.mxu0 0.0
    %3766 = vmatpush1.msra.mxu0 0.0
    %3767 = vmatprep.subr.mxu0 0.0
    %3768 = vmatpush1.msra.mxu0 0.0
    %3769 = vmatprep.subr.mxu0 0.0
    %3770 = vmatpush1.msra.mxu0 0.0
    %3771 = vmatprep.subr.mxu0 0.0
    %3772 = vmatpush1.msra.mxu0 0.0
    %3773 = vmatprep.subr.mxu0 0.0
    %3774 = vmatpush1.msra.mxu0 0.0
    %3775 = vmatprep.subr.mxu0 0.0
    %3776 = vmatpush1.msra.mxu0 0.0
    %3777 = vmatprep.subr.mxu0 0.0
    %3778 = vmatpush1.msra.mxu0 0.0
    %3779 = vmatprep.subr.mxu0 0.0
    %3780 = vmatpush1.msra.mxu0 0.0
    %3781 = vmatprep.subr.mxu0 0.0
    %3782 = vmatpush1.msra.mxu0 0.0
    %3783 = vmatprep.subr.mxu0 0.0
    %3784 = vmatpush1.msra.mxu0 0.0
    %3785 = vmatprep.subr.mxu0 0.0
    %3786 = vmatpush1.msra.mxu0 0.0
    %3787 = vmatprep.subr.mxu0 0.0
    %3788 = vmatpush1.msra.mxu0 0.0
    %3789 = vmatprep.subr.mxu0 0.0
    %3790 = vmatpush1.msra.mxu0 0.0
    %3791 = vmatprep.mubr.f32.mxu0 0.0
    %3792 = vmatmul.mubr.f32.gmra.mrb[0].mxu0 %v3725
    %v3793 = vpop.f32.mrb[0].mxu0
    %v3794 = vadd.f32 %v1982, %v3793
    %v3795 = vpop.f32.mrb[0].mxu0
    %v3796 = vadd.f32 %v1986, %v3795
    %3797 = vdwg.mxu0
    %v3798 = vadd.f32 %v3720, %v3794
    %v3799 = vxor.u32 %v3798, 2147483648
    %v3800 = vmul.f32 %v3799, 1.442695
    %v3801 = vpow.pop %v3800
    %v3802 = vadd.f32 %v3801, 1.0
    %v3803 = vrcp.pop %v3802
    %v3804 = vmul.f32 1.0, %v3803
    %v3805 = vmul.f32 %v3804, %v3796
    %v3806 = vadd.f32 %v3721, %v3805
    %v3807 = vtanh.pop %v3806
    %v3808 = vsub.f32 1.0, %v3804
    %3810 = vrot.lane.b32.xlu0 %v3807, 64
    %v3811 = vpop.permute.xlu0 %3810
    %v3813 = vmul.f32 %v3808, %v3811
    %v3814 = vmul.f32 %v3804, %v3545
    %v3815 = vadd.f32 %v3813, %v3814
    %3816 = vmatprep.subr.mxu0 0.0
    %3817 = vmatpush1.msra.mxu0 %v1948
    %3818 = vmatprep.subr.mxu0 0.0
    %3819 = vmatpush1.msra.mxu0 %v1949
    %3820 = vmatprep.subr.mxu0 0.0
    %3821 = vmatpush1.msra.mxu0 %v1950
    %3822 = vmatprep.subr.mxu0 0.0
    %3823 = vmatpush1.msra.mxu0 %v1951
    %3824 = vmatprep.subr.mxu0 0.0
    %3825 = vmatpush1.msra.mxu0 %v1952
    %3826 = vmatprep.subr.mxu0 0.0
    %3827 = vmatpush1.msra.mxu0 %v1953
    %3828 = vmatprep.subr.mxu0 0.0
    %3829 = vmatpush1.msra.mxu0 %v1954
    %3830 = vmatprep.subr.mxu0 0.0
    %3831 = vmatpush1.msra.mxu0 %v1955
    %3832 = vmatprep.subr.mxu0 0.0
    %3833 = vmatpush1.msra.mxu0 0.0
    %3834 = vmatprep.subr.mxu0 0.0
    %3835 = vmatpush1.msra.mxu0 0.0
    %3836 = vmatprep.subr.mxu0 0.0
    %3837 = vmatpush1.msra.mxu0 0.0
    %3838 = vmatprep.subr.mxu0 0.0
    %3839 = vmatpush1.msra.mxu0 0.0
    %3840 = vmatprep.subr.mxu0 0.0
    %3841 = vmatpush1.msra.mxu0 0.0
    %3842 = vmatprep.subr.mxu0 0.0
    %3843 = vmatpush1.msra.mxu0 0.0
    %3844 = vmatprep.subr.mxu0 0.0
    %3845 = vmatpush1.msra.mxu0 0.0
    %3846 = vmatprep.subr.mxu0 0.0
    %3847 = vmatpush1.msra.mxu0 0.0
    %3848 = vmatprep.subr.mxu0 0.0
    %3849 = vmatpush1.msra.mxu0 0.0
    %3850 = vmatprep.subr.mxu0 0.0
    %3851 = vmatpush1.msra.mxu0 0.0
    %3852 = vmatprep.subr.mxu0 0.0
    %3853 = vmatpush1.msra.mxu0 0.0
    %3854 = vmatprep.subr.mxu0 0.0
    %3855 = vmatpush1.msra.mxu0 0.0
    %3856 = vmatprep.subr.mxu0 0.0
    %3857 = vmatpush1.msra.mxu0 0.0
    %3858 = vmatprep.subr.mxu0 0.0
    %3859 = vmatpush1.msra.mxu0 0.0
    %3860 = vmatprep.subr.mxu0 0.0
    %3861 = vmatpush1.msra.mxu0 0.0
    %3862 = vmatprep.subr.mxu0 0.0
    %3863 = vmatpush1.msra.mxu0 0.0
    %3864 = vmatprep.subr.mxu0 0.0
    %3865 = vmatpush1.msra.mxu0 0.0
    %3866 = vmatprep.subr.mxu0 0.0
    %3867 = vmatpush1.msra.mxu0 0.0
    %3868 = vmatprep.subr.mxu0 0.0
    %3869 = vmatpush1.msra.mxu0 0.0
    %3870 = vmatprep.subr.mxu0 0.0
    %3871 = vmatpush1.msra.mxu0 0.0
    %3872 = vmatprep.subr.mxu0 0.0
    %3873 = vmatpush1.msra.mxu0 0.0
    %3874 = vmatprep.subr.mxu0 0.0
    %3875 = vmatpush1.msra.mxu0 0.0
    %3876 = vmatprep.subr.mxu0 0.0
    %3877 = vmatpush1.msra.mxu0 0.0
    %3878 = vmatprep.subr.mxu0 0.0
    %3879 = vmatpush1.msra.mxu0 0.0
    %3880 = vmatprep.mubr.f32.mxu0 0.0
    %3881 = vmatmul.mubr.f32.gmra.mrb[0].mxu0 %v3725
    %v3882 = vpop.f32.mrb[0].mxu0
    %v3883 = vadd.f32 %v2185, %v3882
    %v3884 = vpop.f32.mrb[0].mxu0
    %3885 = vdwg.mxu0
    %3887 = vrot.lane.b32.xlu0 %v3716, 96
    %v3888 = vpop.permute.xlu0 %3887
    %v3889 = vsel %vm2268, %v3888, 0
    %3891 = vmatprep.subr.mxu0 0.0
    %3892 = vmatpush1.msra.mxu0 %v2257
    %3893 = vmatprep.subr.mxu0 0.0
    %3894 = vmatpush1.msra.mxu0 %v2258
    %3895 = vmatprep.subr.mxu0 0.0
    %3896 = vmatpush1.msra.mxu0 %v2259
    %3897 = vmatprep.subr.mxu0 0.0
    %3898 = vmatpush1.msra.mxu0 %v2260
    %3899 = vmatprep.subr.mxu0 0.0
    %3900 = vmatpush1.msra.mxu0 0.0
    %3901 = vmatprep.subr.mxu0 0.0
    %3902 = vmatpush1.msra.mxu0 0.0
    %3903 = vmatprep.subr.mxu0 0.0
    %3904 = vmatpush1.msra.mxu0 0.0
    %3905 = vmatprep.subr.mxu0 0.0
    %3906 = vmatpush1.msra.mxu0 0.0
    %3907 = vmatprep.subr.mxu0 0.0
    %3908 = vmatpush1.msra.mxu0 0.0
    %3909 = vmatprep.subr.mxu0 0.0
    %3910 = vmatpush1.msra.mxu0 0.0
    %3911 = vmatprep.subr.mxu0 0.0
    %3912 = vmatpush1.msra.mxu0 0.0
    %3913 = vmatprep.subr.mxu0 0.0
    %3914 = vmatpush1.msra.mxu0 0.0
    %3915 = vmatprep.subr.mxu0 0.0
    %3916 = vmatpush1.msra.mxu0 0.0
    %3917 = vmatprep.subr.mxu0 0.0
    %3918 = vmatpush1.msra.mxu0 0.0
    %3919 = vmatprep.subr.mxu0 0.0
    %3920 = vmatpush1.msra.mxu0 0.0
    %3921 = vmatprep.subr.mxu0 0.0
    %3922 = vmatpush1.msra.mxu0 0.0
    %3923 = vmatprep.subr.mxu0 0.0
    %3924 = vmatpush1.msra.mxu0 0.0
    %3925 = vmatprep.subr.mxu0 0.0
    %3926 = vmatpush1.msra.mxu0 0.0
    %3927 = vmatprep.subr.mxu0 0.0
    %3928 = vmatpush1.msra.mxu0 0.0
    %3929 = vmatprep.subr.mxu0 0.0
    %3930 = vmatpush1.msra.mxu0 0.0
    %3931 = vmatprep.subr.mxu0 0.0
    %3932 = vmatpush1.msra.mxu0 0.0
    %3933 = vmatprep.subr.mxu0 0.0
    %3934 = vmatpush1.msra.mxu0 0.0
    %3935 = vmatprep.subr.mxu0 0.0
    %3936 = vmatpush1.msra.mxu0 0.0
    %3937 = vmatprep.subr.mxu0 0.0
    %3938 = vmatpush1.msra.mxu0 0.0
    %3939 = vmatprep.subr.mxu0 0.0
    %3940 = vmatpush1.msra.mxu0 0.0
    %3941 = vmatprep.subr.mxu0 0.0
    %3942 = vmatpush1.msra.mxu0 0.0
    %3943 = vmatprep.subr.mxu0 0.0
    %3944 = vmatpush1.msra.mxu0 0.0
    %3945 = vmatprep.subr.mxu0 0.0
    %3946 = vmatpush1.msra.mxu0 0.0
    %3947 = vmatprep.subr.mxu0 0.0
    %3948 = vmatpush1.msra.mxu0 0.0
    %3949 = vmatprep.subr.mxu0 0.0
    %3950 = vmatpush1.msra.mxu0 0.0
    %3951 = vmatprep.subr.mxu0 0.0
    %3952 = vmatpush1.msra.mxu0 0.0
    %3953 = vmatprep.subr.mxu0 0.0
    %3954 = vmatpush1.msra.mxu0 0.0
    %3955 = vmatprep.mubr.f32.mxu0 0.0
    %3956 = vmatmul.mubr.f32.gmra.mrb[0].mxu0 %v3889
    %v3957 = vpop.f32.mrb[0].mxu0
    %v3958 = vadd.f32 %v2266, %v3957
    %v3959 = vpop.f32.mrb[0].mxu0
    %3960 = vdwg.mxu0
    %v3961 = vadd.f32 %v3883, %v3958
    %v3962 = vxor.u32 %v3961, 2147483648
    %v3963 = vmul.f32 %v3962, 1.442695
    %v3964 = vpow.pop %v3963
    %v3965 = vadd.f32 %v3964, 1.0
    %v3966 = vrcp.pop %v3965
    %v3967 = vmul.f32 1.0, %v3966
    %3969 = vrot.lane.b32.xlu0 %v3958, 64
    %v3970 = vpop.permute.xlu0 %3969
    %v3972 = vmul.f32 %v3967, %v3970
    %3974 = vrot.lane.b32.xlu0 %v3972, 64
    %v3975 = vpop.permute.xlu0 %3974
    %v3977 = vadd.f32 %v3883, %v3975
    %v3978 = vtanh.pop %v3977
    %v3979 = vsub.f32 1.0, %v3967
    %3981 = vrot.lane.b32.xlu0 %v3978, 96
    %v3982 = vpop.permute.xlu0 %3981
    %v3984 = vmul.f32 %v3979, %v3982
    %v3985 = vmul.f32 %v3967, %v3716
    %v3986 = vadd.f32 %v3984, %v3985
    %3988 = vrot.lane.b32.xlu0 %v3815, 64
    %v3989 = vpop.permute.xlu0 %3988
    %v3990 = vsel %vm169, %v3989, 0
    %3992 = vmatprep.subr.mxu0 0.0
    %3993 = vmatpush1.msra.mxu0 %v1948
    %3994 = vmatprep.subr.mxu0 0.0
    %3995 = vmatpush1.msra.mxu0 %v1949
    %3996 = vmatprep.subr.mxu0 0.0
    %3997 = vmatpush1.msra.mxu0 %v1950
    %3998 = vmatprep.subr.mxu0 0.0
    %3999 = vmatpush1.msra.mxu0 %v1951
    %4000 = vmatprep.subr.mxu0 0.0
    %4001 = vmatpush1.msra.mxu0 %v1952
    %4002 = vmatprep.subr.mxu0 0.0
    %4003 = vmatpush1.msra.mxu0 %v1953
    %4004 = vmatprep.subr.mxu0 0.0
    %4005 = vmatpush1.msra.mxu0 %v1954
    %4006 = vmatprep.subr.mxu0 0.0
    %4007 = vmatpush1.msra.mxu0 %v1955
    %4008 = vmatprep.subr.mxu0 0.0
    %4009 = vmatpush1.msra.mxu0 0.0
    %4010 = vmatprep.subr.mxu0 0.0
    %4011 = vmatpush1.msra.mxu0 0.0
    %4012 = vmatprep.subr.mxu0 0.0
    %4013 = vmatpush1.msra.mxu0 0.0
    %4014 = vmatprep.subr.mxu0 0.0
    %4015 = vmatpush1.msra.mxu0 0.0
    %4016 = vmatprep.subr.mxu0 0.0
    %4017 = vmatpush1.msra.mxu0 0.0
    %4018 = vmatprep.subr.mxu0 0.0
    %4019 = vmatpush1.msra.mxu0 0.0
    %4020 = vmatprep.subr.mxu0 0.0
    %4021 = vmatpush1.msra.mxu0 0.0
    %4022 = vmatprep.subr.mxu0 0.0
    %4023 = vmatpush1.msra.mxu0 0.0
    %4024 = vmatprep.subr.mxu0 0.0
    %4025 = vmatpush1.msra.mxu0 0.0
    %4026 = vmatprep.subr.mxu0 0.0
    %4027 = vmatpush1.msra.mxu0 0.0
    %4028 = vmatprep.subr.mxu0 0.0
    %4029 = vmatpush1.msra.mxu0 0.0
    %4030 = vmatprep.subr.mxu0 0.0
    %4031 = vmatpush1.msra.mxu0 0.0
    %4032 = vmatprep.subr.mxu0 0.0
    %4033 = vmatpush1.msra.mxu0 0.0
    %4034 = vmatprep.subr.mxu0 0.0
    %4035 = vmatpush1.msra.mxu0 0.0
    %4036 = vmatprep.subr.mxu0 0.0
    %4037 = vmatpush1.msra.mxu0 0.0
    %4038 = vmatprep.subr.mxu0 0.0
    %4039 = vmatpush1.msra.mxu0 0.0
    %4040 = vmatprep.subr.mxu0 0.0
    %4041 = vmatpush1.msra.mxu0 0.0
    %4042 = vmatprep.subr.mxu0 0.0
    %4043 = vmatpush1.msra.mxu0 0.0
    %4044 = vmatprep.subr.mxu0 0.0
    %4045 = vmatpush1.msra.mxu0 0.0
    %4046 = vmatprep.subr.mxu0 0.0
    %4047 = vmatpush1.msra.mxu0 0.0
    %4048 = vmatprep.subr.mxu0 0.0
    %4049 = vmatpush1.msra.mxu0 0.0
    %4050 = vmatprep.subr.mxu0 0.0
    %4051 = vmatpush1.msra.mxu0 0.0
    %4052 = vmatprep.subr.mxu0 0.0
    %4053 = vmatpush1.msra.mxu0 0.0
    %4054 = vmatprep.subr.mxu0 0.0
    %4055 = vmatpush1.msra.mxu0 0.0
    %4056 = vmatprep.mubr.f32.mxu0 0.0
    %4057 = vmatmul.mubr.f32.gmra.mrb[0].mxu0 %v3990
    %v4058 = vpop.f32.mrb[0].mxu0
    %v4059 = vadd.f32 %v2185, %v4058
    %v4060 = vpop.f32.mrb[0].mxu0
    %4061 = vdwg.mxu0
    %4063 = vrot.lane.b32.xlu0 %v3986, 96
    %v4064 = vpop.permute.xlu0 %4063
    %v4065 = vsel %vm2268, %v4064, 0
    %4067 = vmatprep.subr.mxu0 0.0
    %4068 = vmatpush1.msra.mxu0 %v2257
    %4069 = vmatprep.subr.mxu0 0.0
    %4070 = vmatpush1.msra.mxu0 %v2258
    %4071 = vmatprep.subr.mxu0 0.0
    %4072 = vmatpush1.msra.mxu0 %v2259
    %4073 = vmatprep.subr.mxu0 0.0
    %4074 = vmatpush1.msra.mxu0 %v2260
    %4075 = vmatprep.subr.mxu0 0.0
    %4076 = vmatpush1.msra.mxu0 0.0
    %4077 = vmatprep.subr.mxu0 0.0
    %4078 = vmatpush1.msra.mxu0 0.0
    %4079 = vmatprep.subr.mxu0 0.0
    %4080 = vmatpush1.msra.mxu0 0.0
    %4081 = vmatprep.subr.mxu0 0.0
    %4082 = vmatpush1.msra.mxu0 0.0
    %4083 = vmatprep.subr.mxu0 0.0
    %4084 = vmatpush1.msra.mxu0 0.0
    %4085 = vmatprep.subr.mxu0 0.0
    %4086 = vmatpush1.msra.mxu0 0.0
    %4087 = vmatprep.subr.mxu0 0.0
    %4088 = vmatpush1.msra.mxu0 0.0
    %4089 = vmatprep.subr.mxu0 0.0
    %4090 = vmatpush1.msra.mxu0 0.0
    %4091 = vmatprep.subr.mxu0 0.0
    %4092 = vmatpush1.msra.mxu0 0.0
    %4093 = vmatprep.subr.mxu0 0.0
    %4094 = vmatpush1.msra.mxu0 0.0
    %4095 = vmatprep.subr.mxu0 0.0
    %4096 = vmatpush1.msra.mxu0 0.0
    %4097 = vmatprep.subr.mxu0 0.0
    %4098 = vmatpush1.msra.mxu0 0.0
    %4099 = vmatprep.subr.mxu0 0.0
    %4100 = vmatpush1.msra.mxu0 0.0
    %4101 = vmatprep.subr.mxu0 0.0
    %4102 = vmatpush1.msra.mxu0 0.0
    %4103 = vmatprep.subr.mxu0 0.0
    %4104 = vmatpush1.msra.mxu0 0.0
    %4105 = vmatprep.subr.mxu0 0.0
    %4106 = vmatpush1.msra.mxu0 0.0
    %4107 = vmatprep.subr.mxu0 0.0
    %4108 = vmatpush1.msra.mxu0 0.0
    %4109 = vmatprep.subr.mxu0 0.0
    %4110 = vmatpush1.msra.mxu0 0.0
    %4111 = vmatprep.subr.mxu0 0.0
    %4112 = vmatpush1.msra.mxu0 0.0
    %4113 = vmatprep.subr.mxu0 0.0
    %4114 = vmatpush1.msra.mxu0 0.0
    %4115 = vmatprep.subr.mxu0 0.0
    %4116 = vmatpush1.msra.mxu0 0.0
    %4117 = vmatprep.subr.mxu0 0.0
    %4118 = vmatpush1.msra.mxu0 0.0
    %4119 = vmatprep.subr.mxu0 0.0
    %4120 = vmatpush1.msra.mxu0 0.0
    %4121 = vmatprep.subr.mxu0 0.0
    %4122 = vmatpush1.msra.mxu0 0.0
    %4123 = vmatprep.subr.mxu0 0.0
    %4124 = vmatpush1.msra.mxu0 0.0
    %4125 = vmatprep.subr.mxu0 0.0
    %4126 = vmatpush1.msra.mxu0 0.0
    %4127 = vmatprep.subr.mxu0 0.0
    %4128 = vmatpush1.msra.mxu0 0.0
    %4129 = vmatprep.subr.mxu0 0.0
    %4130 = vmatpush1.msra.mxu0 0.0
    %4131 = vmatprep.mubr.f32.mxu0 0.0
    %4132 = vmatmul.mubr.f32.gmra.mrb[0].mxu0 %v4065
    %v4133 = vpop.f32.mrb[0].mxu0
    %v4134 = vadd.f32 %v2266, %v4133
    %v4135 = vpop.f32.mrb[0].mxu0
    %4136 = vdwg.mxu0
    %v4137 = vadd.f32 %v4059, %v4134
    %v4138 = vxor.u32 %v4137, 2147483648
    %v4139 = vmul.f32 %v4138, 1.442695
    %v4140 = vpow.pop %v4139
    %v4141 = vadd.f32 %v4140, 1.0
    %v4142 = vrcp.pop %v4141
    %v4143 = vmul.f32 1.0, %v4142
    %4145 = vrot.lane.b32.xlu0 %v4134, 64
    %v4146 = vpop.permute.xlu0 %4145
    %v4148 = vmul.f32 %v4143, %v4146
    %4150 = vrot.lane.b32.xlu0 %v4148, 64
    %v4151 = vpop.permute.xlu0 %4150
    %v4153 = vadd.f32 %v4059, %v4151
    %v4154 = vtanh.pop %v4153
    %v4155 = vsub.f32 1.0, %v4143
    %4157 = vrot.lane.b32.xlu0 %v4154, 96
    %v4158 = vpop.permute.xlu0 %4157
    %v4160 = vmul.f32 %v4155, %v4158
    %v4161 = vmul.f32 %v4143, %v3986
    %v4162 = vadd.f32 %v4160, %v4161
    %v4163 = vld [vmem:[%s15] sm:$0xff]
    %v4164 = vld [vmem:[%s15 + $0x8] sm:$0xff]
    %v4165 = vld [vmem:[%s15 + $0x10] sm:$0xff]
    %v4166 = vld [vmem:[%s15 + $0x18] sm:$0xff]
    %v4167 = vld [vmem:[#allocation19] sm:$0x1]
    %v4169 = vlaneseq
    %v4170 = vshrl.u32 %v4169, 7
    %v4171 = vsub.s32 0, %v4170
    %v4172 = vrot.slane %v4167, %v4171
    %4175 = vrot.lane.b32.xlu0 %v4162, 96
    %v4176 = vpop.permute.xlu0 %4175
    %v4177 = vsel %vm2268, %v4176, 0
    %4179 = vmatprep.subr.mxu0 0.0
    %4180 = vmatpush1.msra.mxu0 %v4163
    %4181 = vmatprep.subr.mxu0 0.0
    %4182 = vmatpush1.msra.mxu0 %v4164
    %4183 = vmatprep.subr.mxu0 0.0
    %4184 = vmatpush1.msra.mxu0 %v4165
    %4185 = vmatprep.subr.mxu0 0.0
    %4186 = vmatpush1.msra.mxu0 %v4166
    %4187 = vmatprep.subr.mxu0 0.0
    %4188 = vmatpush1.msra.mxu0 0.0
    %4189 = vmatprep.subr.mxu0 0.0
    %4190 = vmatpush1.msra.mxu0 0.0
    %4191 = vmatprep.subr.mxu0 0.0
    %4192 = vmatpush1.msra.mxu0 0.0
    %4193 = vmatprep.subr.mxu0 0.0
    %4194 = vmatpush1.msra.mxu0 0.0
    %4195 = vmatprep.subr.mxu0 0.0
    %4196 = vmatpush1.msra.mxu0 0.0
    %4197 = vmatprep.subr.mxu0 0.0
    %4198 = vmatpush1.msra.mxu0 0.0
    %4199 = vmatprep.subr.mxu0 0.0
    %4200 = vmatpush1.msra.mxu0 0.0
    %4201 = vmatprep.subr.mxu0 0.0
    %4202 = vmatpush1.msra.mxu0 0.0
    %4203 = vmatprep.subr.mxu0 0.0
    %4204 = vmatpush1.msra.mxu0 0.0
    %4205 = vmatprep.subr.mxu0 0.0
    %4206 = vmatpush1.msra.mxu0 0.0
    %4207 = vmatprep.subr.mxu0 0.0
    %4208 = vmatpush1.msra.mxu0 0.0
    %4209 = vmatprep.subr.mxu0 0.0
    %4210 = vmatpush1.msra.mxu0 0.0
    %4211 = vmatprep.subr.mxu0 0.0
    %4212 = vmatpush1.msra.mxu0 0.0
    %4213 = vmatprep.subr.mxu0 0.0
    %4214 = vmatpush1.msra.mxu0 0.0
    %4215 = vmatprep.subr.mxu0 0.0
    %4216 = vmatpush1.msra.mxu0 0.0
    %4217 = vmatprep.subr.mxu0 0.0
    %4218 = vmatpush1.msra.mxu0 0.0
    %4219 = vmatprep.subr.mxu0 0.0
    %4220 = vmatpush1.msra.mxu0 0.0
    %4221 = vmatprep.subr.mxu0 0.0
    %4222 = vmatpush1.msra.mxu0 0.0
    %4223 = vmatprep.subr.mxu0 0.0
    %4224 = vmatpush1.msra.mxu0 0.0
    %4225 = vmatprep.subr.mxu0 0.0
    %4226 = vmatpush1.msra.mxu0 0.0
    %4227 = vmatprep.subr.mxu0 0.0
    %4228 = vmatpush1.msra.mxu0 0.0
    %4229 = vmatprep.subr.mxu0 0.0
    %4230 = vmatpush1.msra.mxu0 0.0
    %4231 = vmatprep.subr.mxu0 0.0
    %4232 = vmatpush1.msra.mxu0 0.0
    %4233 = vmatprep.subr.mxu0 0.0
    %4234 = vmatpush1.msra.mxu0 0.0
    %4235 = vmatprep.subr.mxu0 0.0
    %4236 = vmatpush1.msra.mxu0 0.0
    %4237 = vmatprep.subr.mxu0 0.0
    %4238 = vmatpush1.msra.mxu0 0.0
    %4239 = vmatprep.subr.mxu0 0.0
    %4240 = vmatpush1.msra.mxu0 0.0
    %4241 = vmatprep.subr.mxu0 0.0
    %4242 = vmatpush1.msra.mxu0 0.0
    %4243 = vmatprep.mubr.f32.mxu0 0.0
    %4244 = vmatmul.mubr.f32.gmra.mrb[0].mxu0 %v4177
    %v4245 = vpop.f32.mrb[0].mxu0
    %v4246 = vadd.f32 %v4172, %v4245
    %v4247 = vpop.f32.mrb[0].mxu0
    %4248 = vdwg.mxu0
    %vm4249 = vcmask 64512
    %4250 = vst.msk [vmem:[%s17] sm:$0xff] %vm4249, %v4246
    // Predicated region
    $region106: #{stgp_forward.1} parent=1 // pred_check
      _
    $region107: #{stgp_forward.1} parent=1 // pred_check_branch
      %4252 = sbr.rel (0) target = $region109
    $region108: #{stgp_forward.1} parent=1 // pred_region
      _
    $region109: #{stgp_forward.1} parent=1 // pred_fallthru
      _
    // Predicated region
    $region110: #{stgp_forward.1} parent=1 // pred_check
      _
    $region111: #{stgp_forward.1} parent=1 // pred_check_branch
      %4254 = sbr.rel (0) target = $region113
    $region112: #{stgp_forward.1} parent=1 // pred_region
      _
    $region113: #{stgp_forward.1} parent=1 // pred_fallthru
      _
    %4255 = vsyncpa [#allocation7], 1
    %4256 = vsyncpa [#allocation9], 1
    %4257 = vsyncpa [#allocation12], 1
    %4258 = vsyncpa [#allocation15], 1
    %4259 = vsyncpa [#allocation18], 1

</llo_original>
